<compile_context>
chip_gen: v6e
topology: v6e:2x2x1
jax: 0.10.0
libtpu: 0.0.40
codegen_flags: <defaults>
</compile_context>

<pallas_src>
import jax
import jax.numpy as jnp
from jax.experimental import pallas as pl
from jax.experimental.pallas import tpu as pltpu


# ----------------------------------------------------------------------------
# Fused SPPELAN kernel (one grid step == one batch image, whole H x W in VMEM)
# ----------------------------------------------------------------------------
def _sppelan_kernel(x_ref, w1_ref, s1_ref, b1_ref, w5_ref, s5_ref, b5_ref,
                    o_ref, buf_ref):
    # x_ref  : (1, c1, M)   f32   (NCHW flattened, M = H*W on lanes)
    # w1_ref : (c1, c3)     bf16
    # w5_ref : (4*c3, c2)   bf16
    # o_ref  : (1, c2, M)   (NCHW flattened)
    # buf_ref: (H+4, W, c3) f32   H-halo pool scratch
    Hp4, W, c3 = buf_ref.shape
    H = Hp4 - 4
    M = x_ref.shape[2]

    # ---- refresh the 4 thin -inf halo rows (outer-dim strips, dense stores) ----
    halo = jnp.full((2, W, c3), -jnp.inf, dtype=jnp.float32)
    buf_ref[pl.ds(0, 2), :, :] = halo
    buf_ref[pl.ds(H + 2, 2), :, :] = halo

    # ---- W-boundary masks for the pooling rolls (hoisted, computed once) -------
    col = jax.lax.broadcasted_iota(jnp.int32, (W, c3), 0)
    right1, right2 = col < (W - 1), col < (W - 2)
    left1, left2 = col >= 1, col >= 2
    neg_inf = jnp.float32(-jnp.inf)

    def store_center(y3d):
        # Rows [2, H+2): offset on the OUTER dim -> free address offset,
        # unmasked dense stores (no vst.msk, no relayout).
        buf_ref[pl.ds(2, H), :, :] = y3d

    def pool5():
        # 5x5 max-pool (stride 1, pad 2), separable.
        # H shifts: outer-dim address-offset views read straight from the ref.
        t = buf_ref[pl.ds(0, H), :, :]
        for di in range(1, 5):
            t = jnp.maximum(t, buf_ref[pl.ds(di, H), :, :])
        # W shifts: XLU rolls (sublane rotate) + boundary masks -> no unaligned
        # sublane slices / materialized copies.  roll(shift=W-d) == look right d.
        m = t
        m = jnp.maximum(m, jnp.where(right1, pltpu.roll(t, shift=W - 1, axis=1), neg_inf))
        m = jnp.maximum(m, jnp.where(right2, pltpu.roll(t, shift=W - 2, axis=1), neg_inf))
        m = jnp.maximum(m, jnp.where(left1, pltpu.roll(t, shift=1, axis=1), neg_inf))
        m = jnp.maximum(m, jnp.where(left2, pltpu.roll(t, shift=2, axis=1), neg_inf))
        return m                                           # (H, W, c3)

    # ---- cv1: 1x1 conv (contract c1, trans-A matmul) + folded BN + SiLU --------
    x2d = x_ref[0].astype(jnp.bfloat16)                    # (c1, M)
    y1 = jax.lax.dot_general(x2d, w1_ref[...],
                             dimension_numbers=(((0,), (0,)), ((), ())),
                             preferred_element_type=jnp.float32)      # (M, c3)
    y1 = y1 * s1_ref[...] + b1_ref[...]
    y1 = y1 * jax.nn.sigmoid(y1)

    # ---- chained 5x5 max-pools + cv5 (the 4*c3 concat never hits HBM) ----------
    if c3 < 64:
        # Small c3: a K=c3 matmul leaves the MXU nearly empty -> stage the four
        # branches in VMEM and do a single K=4*c3 cv5 matmul.
        store_center(y1.reshape(H, W, c3))
        y2 = pool5()
        store_center(y2)
        y3 = pool5()
        store_center(y3)
        y4 = pool5()
        ycat = jnp.concatenate(
            [y1, y2.reshape(M, c3), y3.reshape(M, c3), y4.reshape(M, c3)], axis=1)
        acc = jnp.dot(ycat.astype(jnp.bfloat16), w5_ref[...],
                      preferred_element_type=jnp.float32)              # (M, c2)
    else:
        # Production-sized c3: accumulate cv5 as 4 partial matmuls so MXU work
        # overlaps the next pool's VPU/XLU work.
        acc = jnp.dot(y1.astype(jnp.bfloat16), w5_ref[pl.ds(0, c3), :],
                      preferred_element_type=jnp.float32)
        store_center(y1.reshape(H, W, c3))
        for k in range(1, 4):
            yk = pool5()
            acc = acc + jnp.dot(yk.reshape(M, c3).astype(jnp.bfloat16),
                                w5_ref[pl.ds(k * c3, c3), :],
                                preferred_element_type=jnp.float32)
            if k < 3:
                store_center(yk)

    # ---- cv5 folded BN + SiLU; transpose in VMEM so the HBM store is NCHW ------
    out = acc * s5_ref[...] + b5_ref[...]
    out = out * jax.nn.sigmoid(out)                                    # (M, c2)
    o_ref[0] = jnp.transpose(out, (1, 0)).astype(o_ref.dtype)          # (c2, M)


def _vmem_limit_bytes(H, W, c1, c2, c3):
    f = 4
    M = H * W
    io = 2 * (c1 + c2) * M * f                      # double-buffered in/out blocks
    scratch = (H + 4) * W * c3 * f                  # halo pool buffer
    temps = (12 * c3 + 6 * c2) * M * f              # pooled temps, ycat, acc, masks
    weights = 2 * (c1 * c3 + 4 * c3 * c2) * 2 + 4 * (c3 + c2) * f
    need = int(1.5 * (io + scratch + temps + weights)) + (8 << 20)
    try:   # generation-aware ceiling: ~46 MiB on v7x (64 MiB), ~92 MiB on v5e/v6e
        cap = pltpu.get_tpu_info().vmem_capacity_bytes
    except Exception:
        cap = 128 << 20
    ceiling = min(int(0.72 * cap), 100 << 20)
    return max(min(need, ceiling), 32 << 20)


def _sppelan_fused(x_nchw, params):
    N, c1, H, W = x_nchw.shape
    c3 = params["w1"].shape[1]
    c2 = params["w5"].shape[1]
    M = H * W

    x_flat = x_nchw.reshape(N, c1, M)               # free (contiguous) reshape
    w1 = params["w1"].astype(jnp.bfloat16)          # bf16 MXU operands
    w5 = params["w5"].astype(jnp.bfloat16)          # (4*c3, c2)

    out_flat = pl.pallas_call(
        _sppelan_kernel,
        out_shape=jax.ShapeDtypeStruct((N, c2, M), x_nchw.dtype),
        grid_spec=pltpu.PrefetchScalarGridSpec(
            num_scalar_prefetch=0,
            grid=(N,),
            in_specs=[
                pl.BlockSpec((1, c1, M), lambda n: (n, 0, 0)),        # x (N,C,HW)
                pl.BlockSpec((c1, c3), lambda n: (0, 0)),             # w1
                pl.BlockSpec((1, c3), lambda n: (0, 0)),              # s1
                pl.BlockSpec((1, c3), lambda n: (0, 0)),              # b1
                pl.BlockSpec((4 * c3, c2), lambda n: (0, 0)),         # w5
                pl.BlockSpec((1, c2), lambda n: (0, 0)),              # s5
                pl.BlockSpec((1, c2), lambda n: (0, 0)),              # b5
            ],
            out_specs=pl.BlockSpec((1, c2, M), lambda n: (n, 0, 0)),
            scratch_shapes=[pltpu.VMEM((H + 4, W, c3), jnp.float32)],
        ),
        compiler_params=pltpu.CompilerParams(
            dimension_semantics=("parallel",),
            vmem_limit_bytes=_vmem_limit_bytes(H, W, c1, c2, c3),
        ),
    )(
        x_flat, w1,
        params["s1"].reshape(1, c3), params["b1"].reshape(1, c3),
        w5,
        params["s5"].reshape(1, c2), params["b5"].reshape(1, c2),
    )
    return out_flat.reshape(N, c2, H, W)            # free reshape back to NCHW


# ----------------------------------------------------------------------------
# Public forward: PyTorch-style NCHW in / NCHW out (no XLA transposes)
# ----------------------------------------------------------------------------
@jax.jit
def sppelan_forward(x_nchw, params):
    return _sppelan_fused(x_nchw, params)


# ----------------------------------------------------------------------------
# Deterministic parameter init (Conv weight + BN folded into scale/bias)
# ----------------------------------------------------------------------------
def init_params(key, c1, c2, c3, eps=1e-5):
    def conv_bn(key, cin, cout):
        kw, kg, kb, km, kv = jax.random.split(key, 5)
        w = 0.1 * jax.random.normal(kw, (cin, cout), jnp.float32)
        gamma = 1.0 + 0.1 * jax.random.normal(kg, (cout,), jnp.float32)
        beta = 0.1 * jax.random.normal(kb, (cout,), jnp.float32)
        mean = 0.1 * jax.random.normal(km, (cout,), jnp.float32)
        var = jax.nn.softplus(jax.random.normal(kv, (cout,), jnp.float32)) + 0.5
        s = gamma / jnp.sqrt(var + eps)
        b = beta - mean * s
        return w, s, b

    k1, k5 = jax.random.split(key)
    w1, s1, b1 = conv_bn(k1, c1, c3)
    w5, s5, b5 = conv_bn(k5, 4 * c3, c2)
    return {"w1": w1, "s1": s1, "b1": b1, "w5": w5, "s5": s5, "b5": b5}


# ----------------------------------------------------------------------------
# Pure-JAX reference (f32) for correctness check
# ----------------------------------------------------------------------------
def sppelan_reference(x_nchw, p):
    def conv(x, w, s, b):
        y = jnp.einsum("nchw,cd->ndhw", x, w)
        y = y * s[None, :, None, None] + b[None, :, None, None]
        return y * jax.nn.sigmoid(y)

    def pool(x):
        return jax.lax.reduce_window(
            x, -jnp.inf, jax.lax.max,
            (1, 1, 5, 5), (1, 1, 1, 1),
            [(0, 0), (0, 0), (2, 2), (2, 2)],
        )

    y1 = conv(x_nchw, p["w1"], p["s1"], p["b1"])
    y2 = pool(y1)
    y3 = pool(y2)
    y4 = pool(y3)
    return conv(jnp.concatenate([y1, y2, y3, y4], axis=1), p["w5"], p["s5"], p["b5"])


if __name__ == "__main__":
    key = jax.random.PRNGKey(0)

    def run_case(case_key, N, c1, c2, c3, H, W, label):
        kx, kp = jax.random.split(case_key)
        x = jax.random.normal(kx, (N, c1, H, W), jnp.float32)
        params = init_params(kp, c1, c2, c3)
        out = jax.block_until_ready(sppelan_forward(x, params))
        ref = sppelan_reference(x, params)
        assert out.shape == (N, c2, H, W), (label, out.shape)
        err = float(jnp.max(jnp.abs(out - ref)))
        # bf16 MXU operands (f32 accumulate) -> relaxed tolerance vs f32 reference.
        assert jnp.allclose(out, ref, rtol=5e-2, atol=5e-2), (label, err)
        return err

    k1, k2 = jax.random.split(key)
    # Small-channel config (exercises the single fused K=4*c3 cv5 matmul path).
    run_case(k1, N=2, c1=4, c2=8, c3=4, H=16, W=16, label="small")
    # Production-like channels (exercises the 4-partial-matmul cv5 path).
    run_case(k2, N=1, c1=64, c2=64, c3=128, H=16, W=16, label="wide")

    print("KERNEL_OK")
</pallas_src>

<mosaic_0001>
module attributes {stable_mosaic.version = 11 : i64} {
  func.func @_sppelan_kernel(%arg0: i32, %arg1: memref<1x4x256xf32, #tpu.memory_space<vmem>>, %arg2: memref<4x4xbf16, #tpu.memory_space<vmem>>, %arg3: memref<1x4xf32, #tpu.memory_space<vmem>>, %arg4: memref<1x4xf32, #tpu.memory_space<vmem>>, %arg5: memref<16x8xbf16, #tpu.memory_space<vmem>>, %arg6: memref<1x8xf32, #tpu.memory_space<vmem>>, %arg7: memref<1x8xf32, #tpu.memory_space<vmem>>, %arg8: memref<1x8x256xf32, #tpu.memory_space<vmem>>, %arg9: memref<20x16x4xf32, #tpu.memory_space<vmem>>) attributes {dimension_semantics = [#tpu.dimension_semantics<parallel>], iteration_bounds = array<i64: 2>, scalar_prefetch = 0 : i64, scratch_operands = 1 : i64, tpu.core_type = #tpu.core_type<tc>, window_params = [{transform_indices = @transform_0, window_bounds = array<i64: 1, 4, 256>}, {pipeline_mode = #tpu.pipeline_mode<synchronous>, transform_indices = @transform_1, window_bounds = array<i64: 4, 4>}, {pipeline_mode = #tpu.pipeline_mode<synchronous>, transform_indices = @transform_2, window_bounds = array<i64: 1, 4>}, {pipeline_mode = #tpu.pipeline_mode<synchronous>, transform_indices = @transform_3, window_bounds = array<i64: 1, 4>}, {pipeline_mode = #tpu.pipeline_mode<synchronous>, transform_indices = @transform_4, window_bounds = array<i64: 16, 8>}, {pipeline_mode = #tpu.pipeline_mode<synchronous>, transform_indices = @transform_5, window_bounds = array<i64: 1, 8>}, {pipeline_mode = #tpu.pipeline_mode<synchronous>, transform_indices = @transform_6, window_bounds = array<i64: 1, 8>}, {transform_indices = @transform_7, window_bounds = array<i64: 1, 8, 256>}]} {
    %cst = arith.constant 0xFF800000 : f32
    %0 = vector.broadcast %cst : f32 to vector<2x16x4xf32>
    %c0 = arith.constant 0 : index
    %c0_0 = arith.constant 0 : index
    %c0_1 = arith.constant 0 : index
    %1 = vector.load %arg9[%c0, %c0_0, %c0_1] : memref<20x16x4xf32, #tpu.memory_space<vmem>>, vector<2x16x4xf32>
    tpu.vector_store %arg9[%c0, %c0_0, %c0_1], %0 {strides = array<i32>} : memref<20x16x4xf32, #tpu.memory_space<vmem>>, vector<2x16x4xf32>,
    %c18 = arith.constant 18 : index
    %c0_2 = arith.constant 0 : index
    %c0_3 = arith.constant 0 : index
    %2 = vector.load %arg9[%c18, %c0_2, %c0_3] : memref<20x16x4xf32, #tpu.memory_space<vmem>>, vector<2x16x4xf32>
    tpu.vector_store %arg9[%c18, %c0_2, %c0_3], %0 {strides = array<i32>} : memref<20x16x4xf32, #tpu.memory_space<vmem>>, vector<2x16x4xf32>,
    %3 = tpu.iota {dimensions = array<i32: 0>} : vector<16x4xi32>
    %c15_i32 = arith.constant 15 : i32
    %4 = vector.broadcast %c15_i32 : i32 to vector<16x4xi32>
    %5 = arith.cmpi slt, %3, %4 : vector<16x4xi32>
    %c14_i32 = arith.constant 14 : i32
    %6 = vector.broadcast %c14_i32 : i32 to vector<16x4xi32>
    %7 = arith.cmpi slt, %3, %6 : vector<16x4xi32>
    %c1_i32 = arith.constant 1 : i32
    %8 = vector.broadcast %c1_i32 : i32 to vector<16x4xi32>
    %9 = arith.cmpi sge, %3, %8 : vector<16x4xi32>
    %c2_i32 = arith.constant 2 : i32
    %10 = vector.broadcast %c2_i32 : i32 to vector<16x4xi32>
    %11 = arith.cmpi sge, %3, %10 : vector<16x4xi32>
    %c0_4 = arith.constant 0 : index
    %c0_5 = arith.constant 0 : index
    %c0_6 = arith.constant 0 : index
    %12 = vector.load %arg1[%c0_4, %c0_5, %c0_6] : memref<1x4x256xf32, #tpu.memory_space<vmem>>, vector<1x4x256xf32>
    %13 = vector.shape_cast %12 : vector<1x4x256xf32> to vector<4x256xf32>
    %14 = arith.truncf %13 : vector<4x256xf32> to vector<4x256xbf16>
    %c0_7 = arith.constant 0 : index
    %c0_8 = arith.constant 0 : index
    %15 = vector.load %arg2[%c0_7, %c0_8] : memref<4x4xbf16, #tpu.memory_space<vmem>>, vector<4x4xbf16>
    %cst_9 = arith.constant dense<0.000000e+00> : vector<256x4xf32>
    %16 = tpu.matmul %14, %15, %cst_9 {dimension_numbers = #tpu.dot_dimension_numbers<[0], [0], [1], [1], [0, 1, 1, 1], [], []>} : vector<4x256xbf16>, vector<4x4xbf16>, vector<256x4xf32> -> vector<256x4xf32>
    %c0_10 = arith.constant 0 : index
    %c0_11 = arith.constant 0 : index
    %17 = vector.load %arg3[%c0_10, %c0_11] : memref<1x4xf32, #tpu.memory_space<vmem>>, vector<1x4xf32>
    %18 = vector.broadcast %17 : vector<1x4xf32> to vector<256x4xf32>
    %19 = arith.mulf %16, %18 : vector<256x4xf32>
    %c0_12 = arith.constant 0 : index
    %c0_13 = arith.constant 0 : index
    %20 = vector.load %arg4[%c0_12, %c0_13] : memref<1x4xf32, #tpu.memory_space<vmem>>, vector<1x4xf32>
    %21 = vector.broadcast %20 : vector<1x4xf32> to vector<256x4xf32>
    %22 = arith.addf %19, %21 : vector<256x4xf32>
    %23 = arith.negf %22 : vector<256x4xf32>
    %24 = math.exp %23 : vector<256x4xf32>
    %cst_14 = arith.constant 1.000000e+00 : f32
    %25 = vector.broadcast %cst_14 : f32 to vector<256x4xf32>
    %26 = arith.addf %25, %24 : vector<256x4xf32>
    %27 = arith.divf %25, %26 : vector<256x4xf32>
    %28 = arith.mulf %22, %27 : vector<256x4xf32>
    %29 = vector.shape_cast %28 : vector<256x4xf32> to vector<16x16x4xf32>
    %c2 = arith.constant 2 : index
    %c0_15 = arith.constant 0 : index
    %c0_16 = arith.constant 0 : index
    %30 = vector.load %arg9[%c2, %c0_15, %c0_16] : memref<20x16x4xf32, #tpu.memory_space<vmem>>, vector<16x16x4xf32>
    tpu.vector_store %arg9[%c2, %c0_15, %c0_16], %29 {strides = array<i32>} : memref<20x16x4xf32, #tpu.memory_space<vmem>>, vector<16x16x4xf32>,
    %c0_17 = arith.constant 0 : index
    %c0_18 = arith.constant 0 : index
    %c0_19 = arith.constant 0 : index
    %31 = vector.load %arg9[%c0_17, %c0_18, %c0_19] : memref<20x16x4xf32, #tpu.memory_space<vmem>>, vector<16x16x4xf32>
    %c1 = arith.constant 1 : index
    %c0_20 = arith.constant 0 : index
    %c0_21 = arith.constant 0 : index
    %32 = vector.load %arg9[%c1, %c0_20, %c0_21] : memref<20x16x4xf32, #tpu.memory_space<vmem>>, vector<16x16x4xf32>
    %33 = arith.maximumf %31, %32 : vector<16x16x4xf32>
    %c2_22 = arith.constant 2 : index
    %c0_23 = arith.constant 0 : index
    %c0_24 = arith.constant 0 : index
    %34 = vector.load %arg9[%c2_22, %c0_23, %c0_24] : memref<20x16x4xf32, #tpu.memory_space<vmem>>, vector<16x16x4xf32>
    %35 = arith.maximumf %33, %34 : vector<16x16x4xf32>
    %c3 = arith.constant 3 : index
    %c0_25 = arith.constant 0 : index
    %c0_26 = arith.constant 0 : index
    %36 = vector.load %arg9[%c3, %c0_25, %c0_26] : memref<20x16x4xf32, #tpu.memory_space<vmem>>, vector<16x16x4xf32>
    %37 = arith.maximumf %35, %36 : vector<16x16x4xf32>
    %c4 = arith.constant 4 : index
    %c0_27 = arith.constant 0 : index
    %c0_28 = arith.constant 0 : index
    %38 = vector.load %arg9[%c4, %c0_27, %c0_28] : memref<20x16x4xf32, #tpu.memory_space<vmem>>, vector<16x16x4xf32>
    %39 = arith.maximumf %37, %38 : vector<16x16x4xf32>
    %c15_i32_29 = arith.constant 15 : i32
    %40 = tpu.dynamic_rotate %39 by %c15_i32_29 dim 1 : vector<16x16x4xf32>, i32 -> vector<16x16x4xf32>
    %cst_30 = arith.constant 0xFF800000 : f32
    %41 = vector.shape_cast %5 : vector<16x4xi1> to vector<1x16x4xi1>
    %42 = vector.broadcast %41 : vector<1x16x4xi1> to vector<16x16x4xi1>
    %43 = vector.broadcast %cst_30 : f32 to vector<16x16x4xf32>
    %44 = arith.select %42, %40, %43 : vector<16x16x4xi1>, vector<16x16x4xf32>
    %45 = arith.maximumf %39, %44 : vector<16x16x4xf32>
    %c14_i32_31 = arith.constant 14 : i32
    %46 = tpu.dynamic_rotate %39 by %c14_i32_31 dim 1 : vector<16x16x4xf32>, i32 -> vector<16x16x4xf32>
    %cst_32 = arith.constant 0xFF800000 : f32
    %47 = vector.shape_cast %7 : vector<16x4xi1> to vector<1x16x4xi1>
    %48 = vector.broadcast %47 : vector<1x16x4xi1> to vector<16x16x4xi1>
    %49 = vector.broadcast %cst_32 : f32 to vector<16x16x4xf32>
    %50 = arith.select %48, %46, %49 : vector<16x16x4xi1>, vector<16x16x4xf32>
    %51 = arith.maximumf %45, %50 : vector<16x16x4xf32>
    %c1_i32_33 = arith.constant 1 : i32
    %52 = tpu.dynamic_rotate %39 by %c1_i32_33 dim 1 : vector<16x16x4xf32>, i32 -> vector<16x16x4xf32>
    %cst_34 = arith.constant 0xFF800000 : f32
    %53 = vector.shape_cast %9 : vector<16x4xi1> to vector<1x16x4xi1>
    %54 = vector.broadcast %53 : vector<1x16x4xi1> to vector<16x16x4xi1>
    %55 = vector.broadcast %cst_34 : f32 to vector<16x16x4xf32>
    %56 = arith.select %54, %52, %55 : vector<16x16x4xi1>, vector<16x16x4xf32>
    %57 = arith.maximumf %51, %56 : vector<16x16x4xf32>
    %c2_i32_35 = arith.constant 2 : i32
    %58 = tpu.dynamic_rotate %39 by %c2_i32_35 dim 1 : vector<16x16x4xf32>, i32 -> vector<16x16x4xf32>
    %cst_36 = arith.constant 0xFF800000 : f32
    %59 = vector.shape_cast %11 : vector<16x4xi1> to vector<1x16x4xi1>
    %60 = vector.broadcast %59 : vector<1x16x4xi1> to vector<16x16x4xi1>
    %61 = vector.broadcast %cst_36 : f32 to vector<16x16x4xf32>
    %62 = arith.select %60, %58, %61 : vector<16x16x4xi1>, vector<16x16x4xf32>
    %63 = arith.maximumf %57, %62 : vector<16x16x4xf32>
    %c2_37 = arith.constant 2 : index
    %c0_38 = arith.constant 0 : index
    %c0_39 = arith.constant 0 : index
    %64 = vector.load %arg9[%c2_37, %c0_38, %c0_39] : memref<20x16x4xf32, #tpu.memory_space<vmem>>, vector<16x16x4xf32>
    tpu.vector_store %arg9[%c2_37, %c0_38, %c0_39], %63 {strides = array<i32>} : memref<20x16x4xf32, #tpu.memory_space<vmem>>, vector<16x16x4xf32>,
    %c0_40 = arith.constant 0 : index
    %c0_41 = arith.constant 0 : index
    %c0_42 = arith.constant 0 : index
    %65 = vector.load %arg9[%c0_40, %c0_41, %c0_42] : memref<20x16x4xf32, #tpu.memory_space<vmem>>, vector<16x16x4xf32>
    %c1_43 = arith.constant 1 : index
    %c0_44 = arith.constant 0 : index
    %c0_45 = arith.constant 0 : index
    %66 = vector.load %arg9[%c1_43, %c0_44, %c0_45] : memref<20x16x4xf32, #tpu.memory_space<vmem>>, vector<16x16x4xf32>
    %67 = arith.maximumf %65, %66 : vector<16x16x4xf32>
    %c2_46 = arith.constant 2 : index
    %c0_47 = arith.constant 0 : index
    %c0_48 = arith.constant 0 : index
    %68 = vector.load %arg9[%c2_46, %c0_47, %c0_48] : memref<20x16x4xf32, #tpu.memory_space<vmem>>, vector<16x16x4xf32>
    %69 = arith.maximumf %67, %68 : vector<16x16x4xf32>
    %c3_49 = arith.constant 3 : index
    %c0_50 = arith.constant 0 : index
    %c0_51 = arith.constant 0 : index
    %70 = vector.load %arg9[%c3_49, %c0_50, %c0_51] : memref<20x16x4xf32, #tpu.memory_space<vmem>>, vector<16x16x4xf32>
    %71 = arith.maximumf %69, %70 : vector<16x16x4xf32>
    %c4_52 = arith.constant 4 : index
    %c0_53 = arith.constant 0 : index
    %c0_54 = arith.constant 0 : index
    %72 = vector.load %arg9[%c4_52, %c0_53, %c0_54] : memref<20x16x4xf32, #tpu.memory_space<vmem>>, vector<16x16x4xf32>
    %73 = arith.maximumf %71, %72 : vector<16x16x4xf32>
    %c15_i32_55 = arith.constant 15 : i32
    %74 = tpu.dynamic_rotate %73 by %c15_i32_55 dim 1 : vector<16x16x4xf32>, i32 -> vector<16x16x4xf32>
    %cst_56 = arith.constant 0xFF800000 : f32
    %75 = vector.shape_cast %5 : vector<16x4xi1> to vector<1x16x4xi1>
    %76 = vector.broadcast %75 : vector<1x16x4xi1> to vector<16x16x4xi1>
    %77 = vector.broadcast %cst_56 : f32 to vector<16x16x4xf32>
    %78 = arith.select %76, %74, %77 : vector<16x16x4xi1>, vector<16x16x4xf32>
    %79 = arith.maximumf %73, %78 : vector<16x16x4xf32>
    %c14_i32_57 = arith.constant 14 : i32
    %80 = tpu.dynamic_rotate %73 by %c14_i32_57 dim 1 : vector<16x16x4xf32>, i32 -> vector<16x16x4xf32>
    %cst_58 = arith.constant 0xFF800000 : f32
    %81 = vector.shape_cast %7 : vector<16x4xi1> to vector<1x16x4xi1>
    %82 = vector.broadcast %81 : vector<1x16x4xi1> to vector<16x16x4xi1>
    %83 = vector.broadcast %cst_58 : f32 to vector<16x16x4xf32>
    %84 = arith.select %82, %80, %83 : vector<16x16x4xi1>, vector<16x16x4xf32>
    %85 = arith.maximumf %79, %84 : vector<16x16x4xf32>
    %c1_i32_59 = arith.constant 1 : i32
    %86 = tpu.dynamic_rotate %73 by %c1_i32_59 dim 1 : vector<16x16x4xf32>, i32 -> vector<16x16x4xf32>
    %cst_60 = arith.constant 0xFF800000 : f32
    %87 = vector.shape_cast %9 : vector<16x4xi1> to vector<1x16x4xi1>
    %88 = vector.broadcast %87 : vector<1x16x4xi1> to vector<16x16x4xi1>
    %89 = vector.broadcast %cst_60 : f32 to vector<16x16x4xf32>
    %90 = arith.select %88, %86, %89 : vector<16x16x4xi1>, vector<16x16x4xf32>
    %91 = arith.maximumf %85, %90 : vector<16x16x4xf32>
    %c2_i32_61 = arith.constant 2 : i32
    %92 = tpu.dynamic_rotate %73 by %c2_i32_61 dim 1 : vector<16x16x4xf32>, i32 -> vector<16x16x4xf32>
    %cst_62 = arith.constant 0xFF800000 : f32
    %93 = vector.shape_cast %11 : vector<16x4xi1> to vector<1x16x4xi1>
    %94 = vector.broadcast %93 : vector<1x16x4xi1> to vector<16x16x4xi1>
    %95 = vector.broadcast %cst_62 : f32 to vector<16x16x4xf32>
    %96 = arith.select %94, %92, %95 : vector<16x16x4xi1>, vector<16x16x4xf32>
    %97 = arith.maximumf %91, %96 : vector<16x16x4xf32>
    %c2_63 = arith.constant 2 : index
    %c0_64 = arith.constant 0 : index
    %c0_65 = arith.constant 0 : index
    %98 = vector.load %arg9[%c2_63, %c0_64, %c0_65] : memref<20x16x4xf32, #tpu.memory_space<vmem>>, vector<16x16x4xf32>
    tpu.vector_store %arg9[%c2_63, %c0_64, %c0_65], %97 {strides = array<i32>} : memref<20x16x4xf32, #tpu.memory_space<vmem>>, vector<16x16x4xf32>,
    %c0_66 = arith.constant 0 : index
    %c0_67 = arith.constant 0 : index
    %c0_68 = arith.constant 0 : index
    %99 = vector.load %arg9[%c0_66, %c0_67, %c0_68] : memref<20x16x4xf32, #tpu.memory_space<vmem>>, vector<16x16x4xf32>
    %c1_69 = arith.constant 1 : index
    %c0_70 = arith.constant 0 : index
    %c0_71 = arith.constant 0 : index
    %100 = vector.load %arg9[%c1_69, %c0_70, %c0_71] : memref<20x16x4xf32, #tpu.memory_space<vmem>>, vector<16x16x4xf32>
    %101 = arith.maximumf %99, %100 : vector<16x16x4xf32>
    %c2_72 = arith.constant 2 : index
    %c0_73 = arith.constant 0 : index
    %c0_74 = arith.constant 0 : index
    %102 = vector.load %arg9[%c2_72, %c0_73, %c0_74] : memref<20x16x4xf32, #tpu.memory_space<vmem>>, vector<16x16x4xf32>
    %103 = arith.maximumf %101, %102 : vector<16x16x4xf32>
    %c3_75 = arith.constant 3 : index
    %c0_76 = arith.constant 0 : index
    %c0_77 = arith.constant 0 : index
    %104 = vector.load %arg9[%c3_75, %c0_76, %c0_77] : memref<20x16x4xf32, #tpu.memory_space<vmem>>, vector<16x16x4xf32>
    %105 = arith.maximumf %103, %104 : vector<16x16x4xf32>
    %c4_78 = arith.constant 4 : index
    %c0_79 = arith.constant 0 : index
    %c0_80 = arith.constant 0 : index
    %106 = vector.load %arg9[%c4_78, %c0_79, %c0_80] : memref<20x16x4xf32, #tpu.memory_space<vmem>>, vector<16x16x4xf32>
    %107 = arith.maximumf %105, %106 : vector<16x16x4xf32>
    %c15_i32_81 = arith.constant 15 : i32
    %108 = tpu.dynamic_rotate %107 by %c15_i32_81 dim 1 : vector<16x16x4xf32>, i32 -> vector<16x16x4xf32>
    %cst_82 = arith.constant 0xFF800000 : f32
    %109 = vector.shape_cast %5 : vector<16x4xi1> to vector<1x16x4xi1>
    %110 = vector.broadcast %109 : vector<1x16x4xi1> to vector<16x16x4xi1>
    %111 = vector.broadcast %cst_82 : f32 to vector<16x16x4xf32>
    %112 = arith.select %110, %108, %111 : vector<16x16x4xi1>, vector<16x16x4xf32>
    %113 = arith.maximumf %107, %112 : vector<16x16x4xf32>
    %c14_i32_83 = arith.constant 14 : i32
    %114 = tpu.dynamic_rotate %107 by %c14_i32_83 dim 1 : vector<16x16x4xf32>, i32 -> vector<16x16x4xf32>
    %cst_84 = arith.constant 0xFF800000 : f32
    %115 = vector.shape_cast %7 : vector<16x4xi1> to vector<1x16x4xi1>
    %116 = vector.broadcast %115 : vector<1x16x4xi1> to vector<16x16x4xi1>
    %117 = vector.broadcast %cst_84 : f32 to vector<16x16x4xf32>
    %118 = arith.select %116, %114, %117 : vector<16x16x4xi1>, vector<16x16x4xf32>
    %119 = arith.maximumf %113, %118 : vector<16x16x4xf32>
    %c1_i32_85 = arith.constant 1 : i32
    %120 = tpu.dynamic_rotate %107 by %c1_i32_85 dim 1 : vector<16x16x4xf32>, i32 -> vector<16x16x4xf32>
    %cst_86 = arith.constant 0xFF800000 : f32
    %121 = vector.shape_cast %9 : vector<16x4xi1> to vector<1x16x4xi1>
    %122 = vector.broadcast %121 : vector<1x16x4xi1> to vector<16x16x4xi1>
    %123 = vector.broadcast %cst_86 : f32 to vector<16x16x4xf32>
    %124 = arith.select %122, %120, %123 : vector<16x16x4xi1>, vector<16x16x4xf32>
    %125 = arith.maximumf %119, %124 : vector<16x16x4xf32>
    %c2_i32_87 = arith.constant 2 : i32
    %126 = tpu.dynamic_rotate %107 by %c2_i32_87 dim 1 : vector<16x16x4xf32>, i32 -> vector<16x16x4xf32>
    %cst_88 = arith.constant 0xFF800000 : f32
    %127 = vector.shape_cast %11 : vector<16x4xi1> to vector<1x16x4xi1>
    %128 = vector.broadcast %127 : vector<1x16x4xi1> to vector<16x16x4xi1>
    %129 = vector.broadcast %cst_88 : f32 to vector<16x16x4xf32>
    %130 = arith.select %128, %126, %129 : vector<16x16x4xi1>, vector<16x16x4xf32>
    %131 = arith.maximumf %125, %130 : vector<16x16x4xf32>
    %132 = vector.shape_cast %63 : vector<16x16x4xf32> to vector<256x4xf32>
    %133 = vector.shape_cast %97 : vector<16x16x4xf32> to vector<256x4xf32>
    %134 = vector.shape_cast %131 : vector<16x16x4xf32> to vector<256x4xf32>
    %135 = tpu.concatenate %28, %132, %133, %134 in 1 : vector<256x4xf32>, vector<256x4xf32>, vector<256x4xf32>, vector<256x4xf32> -> vector<256x16xf32>
    %136 = arith.truncf %135 : vector<256x16xf32> to vector<256x16xbf16>
    %c0_89 = arith.constant 0 : index
    %c0_90 = arith.constant 0 : index
    %137 = vector.load %arg5[%c0_89, %c0_90] : memref<16x8xbf16, #tpu.memory_space<vmem>>, vector<16x8xbf16>
    %cst_91 = arith.constant dense<0.000000e+00> : vector<256x8xf32>
    %138 = tpu.matmul %136, %137, %cst_91 {dimension_numbers = #tpu.dot_dimension_numbers<[1], [0], [0], [1], [0, 0, 1, 1], [], []>} : vector<256x16xbf16>, vector<16x8xbf16>, vector<256x8xf32> -> vector<256x8xf32>
    %c0_92 = arith.constant 0 : index
    %c0_93 = arith.constant 0 : index
    %139 = vector.load %arg6[%c0_92, %c0_93] : memref<1x8xf32, #tpu.memory_space<vmem>>, vector<1x8xf32>
    %140 = vector.broadcast %139 : vector<1x8xf32> to vector<256x8xf32>
    %141 = arith.mulf %138, %140 : vector<256x8xf32>
    %c0_94 = arith.constant 0 : index
    %c0_95 = arith.constant 0 : index
    %142 = vector.load %arg7[%c0_94, %c0_95] : memref<1x8xf32, #tpu.memory_space<vmem>>, vector<1x8xf32>
    %143 = vector.broadcast %142 : vector<1x8xf32> to vector<256x8xf32>
    %144 = arith.addf %141, %143 : vector<256x8xf32>
    %145 = arith.negf %144 : vector<256x8xf32>
    %146 = math.exp %145 : vector<256x8xf32>
    %cst_96 = arith.constant 1.000000e+00 : f32
    %147 = vector.broadcast %cst_96 : f32 to vector<256x8xf32>
    %148 = arith.addf %147, %146 : vector<256x8xf32>
    %149 = arith.divf %147, %148 : vector<256x8xf32>
    %150 = arith.mulf %144, %149 : vector<256x8xf32>
    %151 = tpu.transpose %150, [1, 0] : vector<256x8xf32> -> vector<8x256xf32>
    %c0_97 = arith.constant 0 : index
    %c0_98 = arith.constant 0 : index
    %c0_99 = arith.constant 0 : index
    %152 = vector.load %arg8[%c0_97, %c0_98, %c0_99] : memref<1x8x256xf32, #tpu.memory_space<vmem>>, vector<1x8x256xf32>
    %153 = vector.shape_cast %152 : vector<1x8x256xf32> to vector<8x256xf32>
    %154 = vector.shape_cast %151 : vector<8x256xf32> to vector<1x8x256xf32>
    tpu.vector_store %arg8[%c0_97, %c0_98, %c0_99], %154 {strides = array<i32>} : memref<1x8x256xf32, #tpu.memory_space<vmem>>, vector<1x8x256xf32>,
    return
  }
  func.func @transform_0(%arg0: i32) -> (i32, i32, i32) {
    %c0_i32 = arith.constant 0 : i32
    %c0_i32_0 = arith.constant 0 : i32
    %c0_i32_1 = arith.constant 0 : i32
    return %arg0, %c0_i32, %c0_i32_0 : i32, i32, i32
  }
  func.func @transform_1(%arg0: i32) -> (i32, i32) {
    %c0_i32 = arith.constant 0 : i32
    %c0_i32_0 = arith.constant 0 : i32
    %c0_i32_1 = arith.constant 0 : i32
    return %c0_i32, %c0_i32_0 : i32, i32
  }
  func.func @transform_2(%arg0: i32) -> (i32, i32) {
    %c0_i32 = arith.constant 0 : i32
    %c0_i32_0 = arith.constant 0 : i32
    %c0_i32_1 = arith.constant 0 : i32
    return %c0_i32, %c0_i32_0 : i32, i32
  }
  func.func @transform_3(%arg0: i32) -> (i32, i32) {
    %c0_i32 = arith.constant 0 : i32
    %c0_i32_0 = arith.constant 0 : i32
    %c0_i32_1 = arith.constant 0 : i32
    return %c0_i32, %c0_i32_0 : i32, i32
  }
  func.func @transform_4(%arg0: i32) -> (i32, i32) {
    %c0_i32 = arith.constant 0 : i32
    %c0_i32_0 = arith.constant 0 : i32
    %c0_i32_1 = arith.constant 0 : i32
    return %c0_i32, %c0_i32_0 : i32, i32
  }
  func.func @transform_5(%arg0: i32) -> (i32, i32) {
    %c0_i32 = arith.constant 0 : i32
    %c0_i32_0 = arith.constant 0 : i32
    %c0_i32_1 = arith.constant 0 : i32
    return %c0_i32, %c0_i32_0 : i32, i32
  }
  func.func @transform_6(%arg0: i32) -> (i32, i32) {
    %c0_i32 = arith.constant 0 : i32
    %c0_i32_0 = arith.constant 0 : i32
    %c0_i32_1 = arith.constant 0 : i32
    return %c0_i32, %c0_i32_0 : i32, i32
  }
  func.func @transform_7(%arg0: i32) -> (i32, i32, i32) {
    %c0_i32 = arith.constant 0 : i32
    %c0_i32_0 = arith.constant 0 : i32
    %c0_i32_1 = arith.constant 0 : i32
    return %arg0, %c0_i32, %c0_i32_0 : i32, i32, i32
  }
}

</mosaic_0001>

<llo_original>
// kernel: sppelan_forward.1
$region0: #{sppelan_forward.1}
  #allocation0 [shape = 'u32[]', space=smem, size = 0x4, offset = 0x4, fixed_abs, tag = 'smem constant byte address 0x4 - core index']
  #allocation1 [shape = 'u32[144,128]{1,0:T(1,128)}', space=vmem, size = 0x12000, scoped, tag = 'internal scratch']
  #allocation2 [shape = 'f32[20,16,4]{2,1,0:T(8,128)}', space=vmem, size = 0x28000, scoped, tag = 'scratch operand']
  %s0 = inlined_call_operand.vmem [shape: f32[2,4,256], index: 0, kind: input, shape index: {}]
  %s1 = inlined_call_operand.vmem [shape: bf16[4,4], index: 1, kind: input, shape index: {}]
  %s2 = inlined_call_operand.vmem [shape: f32[1,4], index: 2, kind: input, shape index: {}]
  %s3 = inlined_call_operand.vmem [shape: f32[1,4], index: 3, kind: input, shape index: {}]
  %s4 = inlined_call_operand.vmem [shape: bf16[16,8], index: 4, kind: input, shape index: {}]
  %s5 = inlined_call_operand.vmem [shape: f32[1,8], index: 5, kind: input, shape index: {}]
  %s6 = inlined_call_operand.vmem [shape: f32[1,8], index: 6, kind: input, shape index: {}]
  %s7 = inlined_call_operand.vmem [shape: f32[2,8,256], index: 7, kind: output, shape index: {}]
  %s8 = sld [smem:[#allocation0]]
  $region61: #{sppelan_forward.1} parent=0
    _
  %s10 = ssub.s32 1, %s8
  %s11 = scalar_select 0, %s10, %s8
  loop: start=0, step=1, limit=4
  $region2: #{sppelan_forward.1} parent=0 // loop_pre_header
    _
  $region3: #{sppelan_forward.1} parent=0 // loop_header
    %s13 = sphi 0, %s17
    %p14 = scmp.ge.s32.totalorder %s13, 4
    %s23 = sphi 0, %s25
    %s26 = sphi 0, %s23
    %s27 = sphi 0, %s26
    %s43 = sphi 0, %s27
    %s47 = sphi 0, %s47
    %s49 = sphi 0, %s47
    %s50 = sphi 0, %s49
    %s64 = sphi 0, %s50
    %s68 = sphi 0, %s68
    %s70 = sphi 0, %s68
    %s71 = sphi 0, %s70
    %s85 = sphi 0, %s71
    %s89 = sphi 0, %s89
    %s91 = sphi 0, %s89
    %s92 = sphi 0, %s91
    %s106 = sphi 0, %s92
    %s110 = sphi 0, %s110
    %s112 = sphi 0, %s110
    %s113 = sphi 0, %s112
    %s127 = sphi 0, %s113
    %s131 = sphi 0, %s131
    %s133 = sphi 0, %s131
    %s134 = sphi 0, %s133
    %s148 = sphi 0, %s134
    %s152 = sphi 0, %s152
    %s154 = sphi 0, %s152
    %s155 = sphi 0, %s154
    %s169 = sphi 0, %s155
    %s175 = sphi 0, %s177
    %s178 = sphi 0, %s175
    %s179 = sphi 0, %s178
    %s195 = sphi 0, %s179
  $region4: #{sppelan_forward.1} parent=0 // loop_header_branch
    %16 = sbr.rel (%p14) target = $region8
  $region5: #{sppelan_forward.1} parent=0 // loop_body
    %s18 = ssub.s32 %s13, 1
    %s19 = ssub.s32 %s13, 2
    %s20 = sadd.s32 %s13, 1
    %s21 = ssub.s32 %s13, %s20
    %p22 = scmp.eq.s32.totalorder %s21, 0
    %s24 = sadd.s32 %s23, 1
    %s25 = scalar_select %p22, %s23, %s24
    %p28 = pneg %p22
    %p29 = scmp.eq.s32.totalorder %s13, 1
    %p30 = por %p28, %p29
    %p31 = scmp.ne.s32.totalorder %s23, %s26
    %p32 = scmp.eq.s32.totalorder %s13, 0
    %p33 = por %p31, %p32
    %p34 = scmp.ne.s32.totalorder %s23, %s26
    %p35 = scmp.eq.s32.totalorder %s18, 1
    %p36 = por %p34, %p35
    %p37 = scmp.ne.s32.totalorder %s26, %s27
    %p38 = scmp.eq.s32.totalorder %s18, 0
    %p39 = por %p37, %p38
    %p40 = scmp.ne.s32.totalorder %s26, %s27
    %p41 = scmp.eq.s32.totalorder %s19, 1
    %p42 = por %p40, %p41
    %p44 = scmp.ne.s32.totalorder %s27, %s43
    %p45 = scmp.eq.s32.totalorder %s19, 0
    %p46 = por %p44, %p45
    %s48 = sadd.s32 %s47, 1
    %p51 = scmp.eq.s32.totalorder %s13, 1
    %p52 = scmp.ne.s32.totalorder %s47, %s49
    %p53 = scmp.eq.s32.totalorder %s13, 0
    %p54 = por %p52, %p53
    %p55 = scmp.ne.s32.totalorder %s47, %s49
    %p56 = scmp.eq.s32.totalorder %s18, 1
    %p57 = por %p55, %p56
    %p58 = scmp.ne.s32.totalorder %s49, %s50
    %p59 = scmp.eq.s32.totalorder %s18, 0
    %p60 = por %p58, %p59
    %p61 = scmp.ne.s32.totalorder %s49, %s50
    %p62 = scmp.eq.s32.totalorder %s19, 1
    %p63 = por %p61, %p62
    %p65 = scmp.ne.s32.totalorder %s50, %s64
    %p66 = scmp.eq.s32.totalorder %s19, 0
    %p67 = por %p65, %p66
    %s69 = sadd.s32 %s68, 1
    %p72 = scmp.eq.s32.totalorder %s13, 1
    %p73 = scmp.ne.s32.totalorder %s68, %s70
    %p74 = scmp.eq.s32.totalorder %s13, 0
    %p75 = por %p73, %p74
    %p76 = scmp.ne.s32.totalorder %s68, %s70
    %p77 = scmp.eq.s32.totalorder %s18, 1
    %p78 = por %p76, %p77
    %p79 = scmp.ne.s32.totalorder %s70, %s71
    %p80 = scmp.eq.s32.totalorder %s18, 0
    %p81 = por %p79, %p80
    %p82 = scmp.ne.s32.totalorder %s70, %s71
    %p83 = scmp.eq.s32.totalorder %s19, 1
    %p84 = por %p82, %p83
    %p86 = scmp.ne.s32.totalorder %s71, %s85
    %p87 = scmp.eq.s32.totalorder %s19, 0
    %p88 = por %p86, %p87
    %s90 = sadd.s32 %s89, 1
    %p93 = scmp.eq.s32.totalorder %s13, 1
    %p94 = scmp.ne.s32.totalorder %s89, %s91
    %p95 = scmp.eq.s32.totalorder %s13, 0
    %p96 = por %p94, %p95
    %p97 = scmp.ne.s32.totalorder %s89, %s91
    %p98 = scmp.eq.s32.totalorder %s18, 1
    %p99 = por %p97, %p98
    %p100 = scmp.ne.s32.totalorder %s91, %s92
    %p101 = scmp.eq.s32.totalorder %s18, 0
    %p102 = por %p100, %p101
    %p103 = scmp.ne.s32.totalorder %s91, %s92
    %p104 = scmp.eq.s32.totalorder %s19, 1
    %p105 = por %p103, %p104
    %p107 = scmp.ne.s32.totalorder %s92, %s106
    %p108 = scmp.eq.s32.totalorder %s19, 0
    %p109 = por %p107, %p108
    %s111 = sadd.s32 %s110, 1
    %p114 = scmp.eq.s32.totalorder %s13, 1
    %p115 = scmp.ne.s32.totalorder %s110, %s112
    %p116 = scmp.eq.s32.totalorder %s13, 0
    %p117 = por %p115, %p116
    %p118 = scmp.ne.s32.totalorder %s110, %s112
    %p119 = scmp.eq.s32.totalorder %s18, 1
    %p120 = por %p118, %p119
    %p121 = scmp.ne.s32.totalorder %s112, %s113
    %p122 = scmp.eq.s32.totalorder %s18, 0
    %p123 = por %p121, %p122
    %p124 = scmp.ne.s32.totalorder %s112, %s113
    %p125 = scmp.eq.s32.totalorder %s19, 1
    %p126 = por %p124, %p125
    %p128 = scmp.ne.s32.totalorder %s113, %s127
    %p129 = scmp.eq.s32.totalorder %s19, 0
    %p130 = por %p128, %p129
    %s132 = sadd.s32 %s131, 1
    %p135 = scmp.eq.s32.totalorder %s13, 1
    %p136 = scmp.ne.s32.totalorder %s131, %s133
    %p137 = scmp.eq.s32.totalorder %s13, 0
    %p138 = por %p136, %p137
    %p139 = scmp.ne.s32.totalorder %s131, %s133
    %p140 = scmp.eq.s32.totalorder %s18, 1
    %p141 = por %p139, %p140
    %p142 = scmp.ne.s32.totalorder %s133, %s134
    %p143 = scmp.eq.s32.totalorder %s18, 0
    %p144 = por %p142, %p143
    %p145 = scmp.ne.s32.totalorder %s133, %s134
    %p146 = scmp.eq.s32.totalorder %s19, 1
    %p147 = por %p145, %p146
    %p149 = scmp.ne.s32.totalorder %s134, %s148
    %p150 = scmp.eq.s32.totalorder %s19, 0
    %p151 = por %p149, %p150
    %s153 = sadd.s32 %s152, 1
    %p156 = scmp.eq.s32.totalorder %s13, 1
    %p157 = scmp.ne.s32.totalorder %s152, %s154
    %p158 = scmp.eq.s32.totalorder %s13, 0
    %p159 = por %p157, %p158
    %p160 = scmp.ne.s32.totalorder %s152, %s154
    %p161 = scmp.eq.s32.totalorder %s18, 1
    %p162 = por %p160, %p161
    %p163 = scmp.ne.s32.totalorder %s154, %s155
    %p164 = scmp.eq.s32.totalorder %s18, 0
    %p165 = por %p163, %p164
    %p166 = scmp.ne.s32.totalorder %s154, %s155
    %p167 = scmp.eq.s32.totalorder %s19, 1
    %p168 = por %p166, %p167
    %p170 = scmp.ne.s32.totalorder %s155, %s169
    %p171 = scmp.eq.s32.totalorder %s19, 0
    %p172 = por %p170, %p171
    %s173 = ssub.s32 %s13, %s20
    %p174 = scmp.eq.s32.totalorder %s173, 0
    %s176 = sadd.s32 %s175, 1
    %s177 = scalar_select %p174, %s175, %s176
    %p180 = pneg %p174
    %p181 = scmp.eq.s32.totalorder %s13, 1
    %p182 = por %p180, %p181
    %p183 = scmp.ne.s32.totalorder %s175, %s178
    %p184 = scmp.eq.s32.totalorder %s13, 0
    %p185 = por %p183, %p184
    %p186 = scmp.ne.s32.totalorder %s175, %s178
    %p187 = scmp.eq.s32.totalorder %s18, 1
    %p188 = por %p186, %p187
    %p189 = scmp.ne.s32.totalorder %s178, %s179
    %p190 = scmp.eq.s32.totalorder %s18, 0
    %p191 = por %p189, %p190
    %p192 = scmp.ne.s32.totalorder %s178, %s179
    %p193 = scmp.eq.s32.totalorder %s19, 1
    %p194 = por %p192, %p193
    %p196 = scmp.ne.s32.totalorder %s179, %s195
    %p197 = scmp.eq.s32.totalorder %s19, 0
    %p198 = por %p196, %p197
    %p199 = scmp.le.s32.totalorder 1, %s13
    %p200 = scmp.lt.s32.totalorder %s13, 3
    %p201 = pnand %p199, %p200
    %p202 = pneg %p201
    // Predicated region
    $region9: #{sppelan_forward.1} parent=5 // pred_check
      _
    $region10: #{sppelan_forward.1} parent=5 // pred_check_branch
      %204 = sbr.rel (%p201) target = $region12
    $region11: #{sppelan_forward.1} parent=5 // pred_region
      %s205 = ssub.s32 %s13, 1
      // Predicated region
      $region13: #{sppelan_forward.1} parent=11 // pred_check
        %p206 = pneg %p60
      $region14: #{sppelan_forward.1} parent=11 // pred_check_branch
        %208 = sbr.rel (%p206) target = $region16
      $region15: #{sppelan_forward.1} parent=11 // pred_region
        _
      $region16: #{sppelan_forward.1} parent=11 // pred_fallthru
        _
      // Predicated region
      $region17: #{sppelan_forward.1} parent=11 // pred_check
        %p209 = pneg %p81
      $region18: #{sppelan_forward.1} parent=11 // pred_check_branch
        %211 = sbr.rel (%p209) target = $region20
      $region19: #{sppelan_forward.1} parent=11 // pred_region
        _
      $region20: #{sppelan_forward.1} parent=11 // pred_fallthru
        _
      // Predicated region
      $region21: #{sppelan_forward.1} parent=11 // pred_check
        %p212 = pneg %p102
      $region22: #{sppelan_forward.1} parent=11 // pred_check_branch
        %214 = sbr.rel (%p212) target = $region24
      $region23: #{sppelan_forward.1} parent=11 // pred_region
        _
      $region24: #{sppelan_forward.1} parent=11 // pred_fallthru
        _
      // Predicated region
      $region25: #{sppelan_forward.1} parent=11 // pred_check
        %p215 = pneg %p123
      $region26: #{sppelan_forward.1} parent=11 // pred_check_branch
        %217 = sbr.rel (%p215) target = $region28
      $region27: #{sppelan_forward.1} parent=11 // pred_region
        _
      $region28: #{sppelan_forward.1} parent=11 // pred_fallthru
        _
      // Predicated region
      $region29: #{sppelan_forward.1} parent=11 // pred_check
        %p218 = pneg %p144
      $region30: #{sppelan_forward.1} parent=11 // pred_check_branch
        %220 = sbr.rel (%p218) target = $region32
      $region31: #{sppelan_forward.1} parent=11 // pred_region
        _
      $region32: #{sppelan_forward.1} parent=11 // pred_fallthru
        _
      // Predicated region
      $region33: #{sppelan_forward.1} parent=11 // pred_check
        %p221 = pneg %p165
      $region34: #{sppelan_forward.1} parent=11 // pred_check_branch
        %223 = sbr.rel (%p221) target = $region36
      $region35: #{sppelan_forward.1} parent=11 // pred_region
        _
      $region36: #{sppelan_forward.1} parent=11 // pred_fallthru
        _
    $region12: #{sppelan_forward.1} parent=5 // pred_fallthru
      _
    %p224 = scmp.lt.s32.totalorder %s13, 2
    // Predicated region
    $region37: #{sppelan_forward.1} parent=5 // pred_check
      %p225 = pneg %p224
    $region38: #{sppelan_forward.1} parent=5 // pred_check_branch
      %227 = sbr.rel (%p225) target = $region40
    $region39: #{sppelan_forward.1} parent=5 // pred_region
      // Predicated region
      $region41: #{sppelan_forward.1} parent=39 // pred_check
        %p228 = pneg %p33
      $region42: #{sppelan_forward.1} parent=39 // pred_check_branch
        %230 = sbr.rel (%p228) target = $region44
      $region43: #{sppelan_forward.1} parent=39 // pred_region
        %p231 = scmp.lt.s32.totalorder %s13, 1
        %s232 = scalar_select %p231, %s13, 1
        %s233 = smul.addr %s232, 2
        %s234 = smul.addr %s233, 4
        %s235 = scalar_lea.vmem %s0, %s234
      $region44: #{sppelan_forward.1} parent=39 // pred_fallthru
        _
    $region40: #{sppelan_forward.1} parent=5 // pred_fallthru
      _
    %p236 = scmp.le.s32.totalorder 1, %s13
    %p237 = scmp.lt.s32.totalorder %s13, 3
    %p238 = pnand %p236, %p237
    %p239 = pneg %p238
    // Predicated region
    $region45: #{sppelan_forward.1} parent=5 // pred_check
      _
    $region46: #{sppelan_forward.1} parent=5 // pred_check_branch
      %241 = sbr.rel (%p238) target = $region48
    $region47: #{sppelan_forward.1} parent=5 // pred_region
      %s242 = ssub.s32 %s13, 1
      %p243 = scmp.lt.s32.totalorder %s18, 1
      %s244 = scalar_select %p243, %s18, 1
      %s245 = smul.addr %s244, 2
      %s246 = smul.addr %s245, 4
      %s247 = scalar_lea.vmem %s0, %s246
      %p248 = pneg %p39
      %p249 = pneg %p36
      %p250 = pneg %p60
      %p251 = pneg %p57
      %p252 = pneg %p81
      %p253 = pneg %p78
      %p254 = pneg %p102
      %p255 = pneg %p99
      %p256 = pneg %p123
      %p257 = pneg %p120
      %p258 = pneg %p144
      %p259 = pneg %p141
      %p260 = pneg %p165
      %p261 = pneg %p162
      %p262 = pneg %p191
      %p263 = pneg %p188
      %p264 = scmp.lt.s32.totalorder %s18, 1
      %s265 = scalar_select %p264, %s18, 1
      %s266 = smul.addr %s265, 2
      %s267 = smul.addr %s266, 8
      %s268 = scalar_lea.vmem %s7, %s267
      %p269 = scmp.lt.s32.totalorder %s18, 1
      %s270 = scalar_select %p269, %s18, 1
      %s271 = smul.addr %s270, 2
      %s272 = smul.addr %s271, 4
      %s273 = scalar_lea.vmem %s0, %s272
      %p274 = scmp.lt.s32.totalorder %s18, 1
      %s275 = scalar_select %p274, %s18, 1
      %s276 = smul.addr %s275, 2
      %s277 = smul.addr %s276, 8
      %s278 = scalar_lea.vmem %s7, %s277
      %vm280 = vcmask 31744
      %281 = vst.msk [vmem:[#allocation2] sm:$0xff] %vm280, -inf
      %282 = vst.msk [vmem:[#allocation2 + $0x8] sm:$0xff] %vm280, -inf
      %283 = vst.msk [vmem:[#allocation2 + $0x10] sm:$0xff] %vm280, -inf
      %284 = vst.msk [vmem:[#allocation2 + $0x18] sm:$0xff] %vm280, -inf
      %s285 = scalar_lea.vmem [#allocation2], 288
      %286 = vst.msk [vmem:[%s285] sm:$0xff] %vm280, -inf
      %287 = vst.msk [vmem:[%s285 + $0x8] sm:$0xff] %vm280, -inf
      %288 = vst.msk [vmem:[%s285 + $0x10] sm:$0xff] %vm280, -inf
      %289 = vst.msk [vmem:[%s285 + $0x18] sm:$0xff] %vm280, -inf
      %v290 = vlaneseq
      %v291 = vshrl.u32 %v290, 7
      %v292 = vadd.s32 %v291, 8
      %vm293 = vcmp.lt.s32.totalorder %v291, 15
      %vm294 = vcmp.lt.s32.totalorder %v292, 15
      %vm295 = vcmp.lt.s32.totalorder %v291, 14
      %vm296 = vcmp.lt.s32.totalorder %v292, 14
      %vm297 = vcmp.ge.s32.totalorder %v291, 1
      %vm298 = vcmp.ge.s32.totalorder %v292, 1
      %vm299 = vcmp.ge.s32.totalorder %v291, 2
      %vm300 = vcmp.ge.s32.totalorder %v292, 2
      %v301 = vld [vmem:[%s273] sm:$0xff]
      %v303 = vcombine.high %v301, %v301
      %v305 = vpack.c.bf16 %v301, %v301
      %v306 = vpack.c.bf16 %v303, %v303
      %v307 = vld [vmem:[%s1] sm:$0x3]
      %308 = vxpose.xlu0.c.b16.start [1/8] %v305, 128
      %309 = vxpose.xlu0.c.b16.cont [2/8] 0, 128
      %310 = vxpose.xlu0.c.b16.cont [3/8] 0, 128
      %311 = vxpose.xlu0.c.b16.cont [4/8] 0, 128
      %312 = vxpose.xlu0.c.b16.cont [5/8] 0, 128
      %313 = vxpose.xlu0.c.b16.cont [6/8] 0, 128
      %314 = vxpose.xlu0.c.b16.cont [7/8] 0, 128
      %315 = vxpose.xlu0.c.b16.end [8/8] 0, 128
      %v316 = vpop.trf.xlu0
      %v317 = vpop.trf.xlu0
      %v318 = vpop.trf.xlu0
      %v319 = vpop.trf.xlu0
      %v320 = vpop.trf.xlu0
      %v321 = vpop.trf.xlu0
      %v322 = vpop.trf.xlu0
      %v323 = vpop.trf.xlu0
      %324 = vxpose.xlu0.c.b16.start [1/8] %v306, 128
      %325 = vxpose.xlu0.c.b16.cont [2/8] 0, 128
      %326 = vxpose.xlu0.c.b16.cont [3/8] 0, 128
      %327 = vxpose.xlu0.c.b16.cont [4/8] 0, 128
      %328 = vxpose.xlu0.c.b16.cont [5/8] 0, 128
      %329 = vxpose.xlu0.c.b16.cont [6/8] 0, 128
      %330 = vxpose.xlu0.c.b16.cont [7/8] 0, 128
      %331 = vxpose.xlu0.c.b16.end [8/8] 0, 128
      %v332 = vpop.trf.xlu0
      %v333 = vpop.trf.xlu0
      %v334 = vpop.trf.xlu0
      %v335 = vpop.trf.xlu0
      %v336 = vpop.trf.xlu0
      %v337 = vpop.trf.xlu0
      %v338 = vpop.trf.xlu0
      %v339 = vpop.trf.xlu0
      %v341 = vsel %vm280, %v316, 0
      %v344 = vsel %vm280, %v317, 0
      %v347 = vsel %vm280, %v318, 0
      %v350 = vsel %vm280, %v319, 0
      %v353 = vsel %vm280, %v320, 0
      %v356 = vsel %vm280, %v321, 0
      %v359 = vsel %vm280, %v322, 0
      %v362 = vsel %vm280, %v323, 0
      %v365 = vsel %vm280, %v332, 0
      %v368 = vsel %vm280, %v333, 0
      %v371 = vsel %vm280, %v334, 0
      %v374 = vsel %vm280, %v335, 0
      %v377 = vsel %vm280, %v336, 0
      %v380 = vsel %vm280, %v337, 0
      %v383 = vsel %vm280, %v338, 0
      %v386 = vsel %vm280, %v339, 0
      %vm388 = vcmask 1041408
      %v390 = vsel %vm388, %v307, 0
      %392 = vmatprep.subr.bf16.mxu0 0
      %393 = vmatpush1.bf16.msra.mxu0 0
      %394 = vmatprep.subr.bf16.mxu0 0
      %395 = vmatpush1.bf16.msra.mxu0 0
      %396 = vmatprep.subr.bf16.mxu0 0
      %397 = vmatpush1.bf16.msra.mxu0 0
      %398 = vmatprep.subr.bf16.mxu0 0
      %399 = vmatpush1.bf16.msra.mxu0 0
      %400 = vmatprep.subr.bf16.mxu0 0
      %401 = vmatpush1.bf16.msra.mxu0 0
      %402 = vmatprep.subr.bf16.mxu0 0
      %403 = vmatpush1.bf16.msra.mxu0 0
      %404 = vmatprep.subr.bf16.mxu0 0
      %405 = vmatpush1.bf16.msra.mxu0 0
      %406 = vmatprep.subr.bf16.mxu0 0
      %407 = vmatpush1.bf16.msra.mxu0 %v390
      %408 = vmatprep.subr.bf16.mxu0 0
      %409 = vmatpush2.bf16.msra.mxu0 0
      %410 = vmatprep.subr.bf16.mxu0 0
      %411 = vmatpush2.bf16.msra.mxu0 0
      %412 = vmatprep.subr.bf16.mxu0 0
      %413 = vmatpush2.bf16.msra.mxu0 0
      %414 = vmatprep.subr.bf16.mxu0 0
      %415 = vmatpush2.bf16.msra.mxu0 0
      %416 = vmatprep.subr.bf16.mxu0 0
      %417 = vmatpush2.bf16.msra.mxu0 0
      %418 = vmatprep.subr.bf16.mxu0 0
      %419 = vmatpush2.bf16.msra.mxu0 0
      %420 = vmatprep.subr.bf16.mxu0 0
      %421 = vmatpush2.bf16.msra.mxu0 0
      %422 = vmatprep.subr.bf16.mxu0 0
      %423 = vmatpush2.bf16.msra.mxu0 0
      %424 = vmatprep.mubr.bf16.mxu0 0
      %425 = vmatmul.mubr.bf16.gmra.mxu0 %v341
      %v426 = vpop.f32.mrf.mxu0
      %v427 = vadd.f32 0.0, %v426
      %v428 = vpop.f32.mrf.mxu0
      %v429 = vpop.f32.mrf.mxu0
      %v430 = vadd.f32 0.0, %v429
      %v431 = vpop.f32.mrf.mxu0
      %432 = vmatprep.mubr.bf16.mxu0 0
      %433 = vmatmul.mubr.bf16.gmra.mxu0 %v344
      %v434 = vpop.f32.mrf.mxu0
      %v435 = vadd.f32 0.0, %v434
      %v436 = vpop.f32.mrf.mxu0
      %v437 = vpop.f32.mrf.mxu0
      %v438 = vadd.f32 0.0, %v437
      %v439 = vpop.f32.mrf.mxu0
      %440 = vmatprep.mubr.bf16.mxu0 0
      %441 = vmatmul.mubr.bf16.gmra.mxu0 %v347
      %v442 = vpop.f32.mrf.mxu0
      %v443 = vadd.f32 0.0, %v442
      %v444 = vpop.f32.mrf.mxu0
      %v445 = vpop.f32.mrf.mxu0
      %v446 = vadd.f32 0.0, %v445
      %v447 = vpop.f32.mrf.mxu0
      %448 = vmatprep.mubr.bf16.mxu0 0
      %449 = vmatmul.mubr.bf16.gmra.mxu0 %v350
      %v450 = vpop.f32.mrf.mxu0
      %v451 = vadd.f32 0.0, %v450
      %v452 = vpop.f32.mrf.mxu0
      %v453 = vpop.f32.mrf.mxu0
      %v454 = vadd.f32 0.0, %v453
      %v455 = vpop.f32.mrf.mxu0
      %456 = vmatprep.mubr.bf16.mxu0 0
      %457 = vmatmul.mubr.bf16.gmra.mxu0 %v353
      %v458 = vpop.f32.mrf.mxu0
      %v459 = vadd.f32 0.0, %v458
      %v460 = vpop.f32.mrf.mxu0
      %v461 = vpop.f32.mrf.mxu0
      %v462 = vadd.f32 0.0, %v461
      %v463 = vpop.f32.mrf.mxu0
      %464 = vmatprep.mubr.bf16.mxu0 0
      %465 = vmatmul.mubr.bf16.gmra.mxu0 %v356
      %v466 = vpop.f32.mrf.mxu0
      %v467 = vadd.f32 0.0, %v466
      %v468 = vpop.f32.mrf.mxu0
      %v469 = vpop.f32.mrf.mxu0
      %v470 = vadd.f32 0.0, %v469
      %v471 = vpop.f32.mrf.mxu0
      %472 = vmatprep.mubr.bf16.mxu0 0
      %473 = vmatmul.mubr.bf16.gmra.mxu0 %v359
      %v474 = vpop.f32.mrf.mxu0
      %v475 = vadd.f32 0.0, %v474
      %v476 = vpop.f32.mrf.mxu0
      %v477 = vpop.f32.mrf.mxu0
      %v478 = vadd.f32 0.0, %v477
      %v479 = vpop.f32.mrf.mxu0
      %480 = vmatprep.mubr.bf16.mxu0 0
      %481 = vmatmul.mubr.bf16.gmra.mxu0 %v362
      %v482 = vpop.f32.mrf.mxu0
      %v483 = vadd.f32 0.0, %v482
      %v484 = vpop.f32.mrf.mxu0
      %v485 = vpop.f32.mrf.mxu0
      %v486 = vadd.f32 0.0, %v485
      %v487 = vpop.f32.mrf.mxu0
      %488 = vmatprep.mubr.bf16.mxu0 0
      %489 = vmatmul.mubr.bf16.gmra.mxu0 %v365
      %v490 = vpop.f32.mrf.mxu0
      %v491 = vadd.f32 0.0, %v490
      %v492 = vpop.f32.mrf.mxu0
      %v493 = vpop.f32.mrf.mxu0
      %v494 = vadd.f32 0.0, %v493
      %v495 = vpop.f32.mrf.mxu0
      %496 = vmatprep.mubr.bf16.mxu0 0
      %497 = vmatmul.mubr.bf16.gmra.mxu0 %v368
      %v498 = vpop.f32.mrf.mxu0
      %v499 = vadd.f32 0.0, %v498
      %v500 = vpop.f32.mrf.mxu0
      %v501 = vpop.f32.mrf.mxu0
      %v502 = vadd.f32 0.0, %v501
      %v503 = vpop.f32.mrf.mxu0
      %504 = vmatprep.mubr.bf16.mxu0 0
      %505 = vmatmul.mubr.bf16.gmra.mxu0 %v371
      %v506 = vpop.f32.mrf.mxu0
      %v507 = vadd.f32 0.0, %v506
      %v508 = vpop.f32.mrf.mxu0
      %v509 = vpop.f32.mrf.mxu0
      %v510 = vadd.f32 0.0, %v509
      %v511 = vpop.f32.mrf.mxu0
      %512 = vmatprep.mubr.bf16.mxu0 0
      %513 = vmatmul.mubr.bf16.gmra.mxu0 %v374
      %v514 = vpop.f32.mrf.mxu0
      %v515 = vadd.f32 0.0, %v514
      %v516 = vpop.f32.mrf.mxu0
      %v517 = vpop.f32.mrf.mxu0
      %v518 = vadd.f32 0.0, %v517
      %v519 = vpop.f32.mrf.mxu0
      %520 = vmatprep.mubr.bf16.mxu0 0
      %521 = vmatmul.mubr.bf16.gmra.mxu0 %v377
      %v522 = vpop.f32.mrf.mxu0
      %v523 = vadd.f32 0.0, %v522
      %v524 = vpop.f32.mrf.mxu0
      %v525 = vpop.f32.mrf.mxu0
      %v526 = vadd.f32 0.0, %v525
      %v527 = vpop.f32.mrf.mxu0
      %528 = vmatprep.mubr.bf16.mxu0 0
      %529 = vmatmul.mubr.bf16.gmra.mxu0 %v380
      %v530 = vpop.f32.mrf.mxu0
      %v531 = vadd.f32 0.0, %v530
      %v532 = vpop.f32.mrf.mxu0
      %v533 = vpop.f32.mrf.mxu0
      %v534 = vadd.f32 0.0, %v533
      %v535 = vpop.f32.mrf.mxu0
      %536 = vmatprep.mubr.bf16.mxu0 0
      %537 = vmatmul.mubr.bf16.gmra.mxu0 %v383
      %v538 = vpop.f32.mrf.mxu0
      %v539 = vadd.f32 0.0, %v538
      %v540 = vpop.f32.mrf.mxu0
      %v541 = vpop.f32.mrf.mxu0
      %v542 = vadd.f32 0.0, %v541
      %v543 = vpop.f32.mrf.mxu0
      %544 = vmatprep.mubr.bf16.mxu0 0
      %545 = vmatmul.mubr.bf16.gmra.mxu0 %v386
      %v546 = vpop.f32.mrf.mxu0
      %v547 = vadd.f32 0.0, %v546
      %v548 = vpop.f32.mrf.mxu0
      %v549 = vpop.f32.mrf.mxu0
      %v550 = vadd.f32 0.0, %v549
      %v551 = vpop.f32.mrf.mxu0
      %552 = vdwg.mxu0
      %v553 = vld [vmem:[%s2] sm:$0x1]
      %v555 = vlaneseq
      %v556 = vshrl.u32 %v555, 7
      %v557 = vsub.s32 0, %v556
      %v558 = vrot.slane %v553, %v557
      %v560 = vmul.f32 %v427, %v558
      %v561 = vmul.f32 %v430, %v558
      %v562 = vmul.f32 %v435, %v558
      %v563 = vmul.f32 %v438, %v558
      %v564 = vmul.f32 %v443, %v558
      %v565 = vmul.f32 %v446, %v558
      %v566 = vmul.f32 %v451, %v558
      %v567 = vmul.f32 %v454, %v558
      %v568 = vmul.f32 %v459, %v558
      %v569 = vmul.f32 %v462, %v558
      %v570 = vmul.f32 %v467, %v558
      %v571 = vmul.f32 %v470, %v558
      %v572 = vmul.f32 %v475, %v558
      %v573 = vmul.f32 %v478, %v558
      %v574 = vmul.f32 %v483, %v558
      %v575 = vmul.f32 %v486, %v558
      %v576 = vmul.f32 %v491, %v558
      %v577 = vmul.f32 %v494, %v558
      %v578 = vmul.f32 %v499, %v558
      %v579 = vmul.f32 %v502, %v558
      %v580 = vmul.f32 %v507, %v558
      %v581 = vmul.f32 %v510, %v558
      %v582 = vmul.f32 %v515, %v558
      %v583 = vmul.f32 %v518, %v558
      %v584 = vmul.f32 %v523, %v558
      %v585 = vmul.f32 %v526, %v558
      %v586 = vmul.f32 %v531, %v558
      %v587 = vmul.f32 %v534, %v558
      %v588 = vmul.f32 %v539, %v558
      %v589 = vmul.f32 %v542, %v558
      %v590 = vmul.f32 %v547, %v558
      %v591 = vmul.f32 %v550, %v558
      %v592 = vld [vmem:[%s3] sm:$0x1]
      %v594 = vlaneseq
      %v595 = vshrl.u32 %v594, 7
      %v596 = vsub.s32 0, %v595
      %v597 = vrot.slane %v592, %v596
      %v599 = vadd.f32 %v560, %v597
      %v600 = vadd.f32 %v561, %v597
      %v601 = vadd.f32 %v562, %v597
      %v602 = vadd.f32 %v563, %v597
      %v603 = vadd.f32 %v564, %v597
      %v604 = vadd.f32 %v565, %v597
      %v605 = vadd.f32 %v566, %v597
      %v606 = vadd.f32 %v567, %v597
      %v607 = vadd.f32 %v568, %v597
      %v608 = vadd.f32 %v569, %v597
      %v609 = vadd.f32 %v570, %v597
      %v610 = vadd.f32 %v571, %v597
      %v611 = vadd.f32 %v572, %v597
      %v612 = vadd.f32 %v573, %v597
      %v613 = vadd.f32 %v574, %v597
      %v614 = vadd.f32 %v575, %v597
      %v615 = vadd.f32 %v576, %v597
      %v616 = vadd.f32 %v577, %v597
      %v617 = vadd.f32 %v578, %v597
      %v618 = vadd.f32 %v579, %v597
      %v619 = vadd.f32 %v580, %v597
      %v620 = vadd.f32 %v581, %v597
      %v621 = vadd.f32 %v582, %v597
      %v622 = vadd.f32 %v583, %v597
      %v623 = vadd.f32 %v584, %v597
      %v624 = vadd.f32 %v585, %v597
      %v625 = vadd.f32 %v586, %v597
      %v626 = vadd.f32 %v587, %v597
      %v627 = vadd.f32 %v588, %v597
      %v628 = vadd.f32 %v589, %v597
      %v629 = vadd.f32 %v590, %v597
      %v630 = vadd.f32 %v591, %v597
      %v631 = vxor.u32 %v599, 2147483648
      %v632 = vxor.u32 %v600, 2147483648
      %v633 = vxor.u32 %v601, 2147483648
      %v634 = vxor.u32 %v602, 2147483648
      %v635 = vxor.u32 %v603, 2147483648
      %v636 = vxor.u32 %v604, 2147483648
      %v637 = vxor.u32 %v605, 2147483648
      %v638 = vxor.u32 %v606, 2147483648
      %v639 = vxor.u32 %v607, 2147483648
      %v640 = vxor.u32 %v608, 2147483648
      %v641 = vxor.u32 %v609, 2147483648
      %v642 = vxor.u32 %v610, 2147483648
      %v643 = vxor.u32 %v611, 2147483648
      %v644 = vxor.u32 %v612, 2147483648
      %v645 = vxor.u32 %v613, 2147483648
      %v646 = vxor.u32 %v614, 2147483648
      %v647 = vxor.u32 %v615, 2147483648
      %v648 = vxor.u32 %v616, 2147483648
      %v649 = vxor.u32 %v617, 2147483648
      %v650 = vxor.u32 %v618, 2147483648
      %v651 = vxor.u32 %v619, 2147483648
      %v652 = vxor.u32 %v620, 2147483648
      %v653 = vxor.u32 %v621, 2147483648
      %v654 = vxor.u32 %v622, 2147483648
      %v655 = vxor.u32 %v623, 2147483648
      %v656 = vxor.u32 %v624, 2147483648
      %v657 = vxor.u32 %v625, 2147483648
      %v658 = vxor.u32 %v626, 2147483648
      %v659 = vxor.u32 %v627, 2147483648
      %v660 = vxor.u32 %v628, 2147483648
      %v661 = vxor.u32 %v629, 2147483648
      %v662 = vxor.u32 %v630, 2147483648
      %v663 = vmul.f32 %v631, 1.442695
      %v664 = vpow.pop %v663
      %v665 = vmul.f32 %v632, 1.442695
      %v666 = vpow.pop %v665
      %v667 = vmul.f32 %v633, 1.442695
      %v668 = vpow.pop %v667
      %v669 = vmul.f32 %v634, 1.442695
      %v670 = vpow.pop %v669
      %v671 = vmul.f32 %v635, 1.442695
      %v672 = vpow.pop %v671
      %v673 = vmul.f32 %v636, 1.442695
      %v674 = vpow.pop %v673
      %v675 = vmul.f32 %v637, 1.442695
      %v676 = vpow.pop %v675
      %v677 = vmul.f32 %v638, 1.442695
      %v678 = vpow.pop %v677
      %v679 = vmul.f32 %v639, 1.442695
      %v680 = vpow.pop %v679
      %v681 = vmul.f32 %v640, 1.442695
      %v682 = vpow.pop %v681
      %v683 = vmul.f32 %v641, 1.442695
      %v684 = vpow.pop %v683
      %v685 = vmul.f32 %v642, 1.442695
      %v686 = vpow.pop %v685
      %v687 = vmul.f32 %v643, 1.442695
      %v688 = vpow.pop %v687
      %v689 = vmul.f32 %v644, 1.442695
      %v690 = vpow.pop %v689
      %v691 = vmul.f32 %v645, 1.442695
      %v692 = vpow.pop %v691
      %v693 = vmul.f32 %v646, 1.442695
      %v694 = vpow.pop %v693
      %v695 = vmul.f32 %v647, 1.442695
      %v696 = vpow.pop %v695
      %v697 = vmul.f32 %v648, 1.442695
      %v698 = vpow.pop %v697
      %v699 = vmul.f32 %v649, 1.442695
      %v700 = vpow.pop %v699
      %v701 = vmul.f32 %v650, 1.442695
      %v702 = vpow.pop %v701
      %v703 = vmul.f32 %v651, 1.442695
      %v704 = vpow.pop %v703
      %v705 = vmul.f32 %v652, 1.442695
      %v706 = vpow.pop %v705
      %v707 = vmul.f32 %v653, 1.442695
      %v708 = vpow.pop %v707
      %v709 = vmul.f32 %v654, 1.442695
      %v710 = vpow.pop %v709
      %v711 = vmul.f32 %v655, 1.442695
      %v712 = vpow.pop %v711
      %v713 = vmul.f32 %v656, 1.442695
      %v714 = vpow.pop %v713
      %v715 = vmul.f32 %v657, 1.442695
      %v716 = vpow.pop %v715
      %v717 = vmul.f32 %v658, 1.442695
      %v718 = vpow.pop %v717
      %v719 = vmul.f32 %v659, 1.442695
      %v720 = vpow.pop %v719
      %v721 = vmul.f32 %v660, 1.442695
      %v722 = vpow.pop %v721
      %v723 = vmul.f32 %v661, 1.442695
      %v724 = vpow.pop %v723
      %v725 = vmul.f32 %v662, 1.442695
      %v726 = vpow.pop %v725
      %v727 = vadd.f32 %v664, 1.0
      %v728 = vadd.f32 %v666, 1.0
      %v729 = vadd.f32 %v668, 1.0
      %v730 = vadd.f32 %v670, 1.0
      %v731 = vadd.f32 %v672, 1.0
      %v732 = vadd.f32 %v674, 1.0
      %v733 = vadd.f32 %v676, 1.0
      %v734 = vadd.f32 %v678, 1.0
      %v735 = vadd.f32 %v680, 1.0
      %v736 = vadd.f32 %v682, 1.0
      %v737 = vadd.f32 %v684, 1.0
      %v738 = vadd.f32 %v686, 1.0
      %v739 = vadd.f32 %v688, 1.0
      %v740 = vadd.f32 %v690, 1.0
      %v741 = vadd.f32 %v692, 1.0
      %v742 = vadd.f32 %v694, 1.0
      %v743 = vadd.f32 %v696, 1.0
      %v744 = vadd.f32 %v698, 1.0
      %v745 = vadd.f32 %v700, 1.0
      %v746 = vadd.f32 %v702, 1.0
      %v747 = vadd.f32 %v704, 1.0
      %v748 = vadd.f32 %v706, 1.0
      %v749 = vadd.f32 %v708, 1.0
      %v750 = vadd.f32 %v710, 1.0
      %v751 = vadd.f32 %v712, 1.0
      %v752 = vadd.f32 %v714, 1.0
      %v753 = vadd.f32 %v716, 1.0
      %v754 = vadd.f32 %v718, 1.0
      %v755 = vadd.f32 %v720, 1.0
      %v756 = vadd.f32 %v722, 1.0
      %v757 = vadd.f32 %v724, 1.0
      %v758 = vadd.f32 %v726, 1.0
      %v759 = vrcp.pop %v727
      %v760 = vmul.f32 1.0, %v759
      %v761 = vrcp.pop %v728
      %v762 = vmul.f32 1.0, %v761
      %v763 = vrcp.pop %v729
      %v764 = vmul.f32 1.0, %v763
      %v765 = vrcp.pop %v730
      %v766 = vmul.f32 1.0, %v765
      %v767 = vrcp.pop %v731
      %v768 = vmul.f32 1.0, %v767
      %v769 = vrcp.pop %v732
      %v770 = vmul.f32 1.0, %v769
      %v771 = vrcp.pop %v733
      %v772 = vmul.f32 1.0, %v771
      %v773 = vrcp.pop %v734
      %v774 = vmul.f32 1.0, %v773
      %v775 = vrcp.pop %v735
      %v776 = vmul.f32 1.0, %v775
      %v777 = vrcp.pop %v736
      %v778 = vmul.f32 1.0, %v777
      %v779 = vrcp.pop %v737
      %v780 = vmul.f32 1.0, %v779
      %v781 = vrcp.pop %v738
      %v782 = vmul.f32 1.0, %v781
      %v783 = vrcp.pop %v739
      %v784 = vmul.f32 1.0, %v783
      %v785 = vrcp.pop %v740
      %v786 = vmul.f32 1.0, %v785
      %v787 = vrcp.pop %v741
      %v788 = vmul.f32 1.0, %v787
      %v789 = vrcp.pop %v742
      %v790 = vmul.f32 1.0, %v789
      %v791 = vrcp.pop %v743
      %v792 = vmul.f32 1.0, %v791
      %v793 = vrcp.pop %v744
      %v794 = vmul.f32 1.0, %v793
      %v795 = vrcp.pop %v745
      %v796 = vmul.f32 1.0, %v795
      %v797 = vrcp.pop %v746
      %v798 = vmul.f32 1.0, %v797
      %v799 = vrcp.pop %v747
      %v800 = vmul.f32 1.0, %v799
      %v801 = vrcp.pop %v748
      %v802 = vmul.f32 1.0, %v801
      %v803 = vrcp.pop %v749
      %v804 = vmul.f32 1.0, %v803
      %v805 = vrcp.pop %v750
      %v806 = vmul.f32 1.0, %v805
      %v807 = vrcp.pop %v751
      %v808 = vmul.f32 1.0, %v807
      %v809 = vrcp.pop %v752
      %v810 = vmul.f32 1.0, %v809
      %v811 = vrcp.pop %v753
      %v812 = vmul.f32 1.0, %v811
      %v813 = vrcp.pop %v754
      %v814 = vmul.f32 1.0, %v813
      %v815 = vrcp.pop %v755
      %v816 = vmul.f32 1.0, %v815
      %v817 = vrcp.pop %v756
      %v818 = vmul.f32 1.0, %v817
      %v819 = vrcp.pop %v757
      %v820 = vmul.f32 1.0, %v819
      %v821 = vrcp.pop %v758
      %v822 = vmul.f32 1.0, %v821
      %v823 = vmul.f32 %v599, %v760
      %v824 = vmul.f32 %v600, %v762
      %v825 = vmul.f32 %v601, %v764
      %v826 = vmul.f32 %v602, %v766
      %v827 = vmul.f32 %v603, %v768
      %v828 = vmul.f32 %v604, %v770
      %v829 = vmul.f32 %v605, %v772
      %v830 = vmul.f32 %v606, %v774
      %v831 = vmul.f32 %v607, %v776
      %v832 = vmul.f32 %v608, %v778
      %v833 = vmul.f32 %v609, %v780
      %v834 = vmul.f32 %v610, %v782
      %v835 = vmul.f32 %v611, %v784
      %v836 = vmul.f32 %v612, %v786
      %v837 = vmul.f32 %v613, %v788
      %v838 = vmul.f32 %v614, %v790
      %v839 = vmul.f32 %v615, %v792
      %v840 = vmul.f32 %v616, %v794
      %v841 = vmul.f32 %v617, %v796
      %v842 = vmul.f32 %v618, %v798
      %v843 = vmul.f32 %v619, %v800
      %v844 = vmul.f32 %v620, %v802
      %v845 = vmul.f32 %v621, %v804
      %v846 = vmul.f32 %v622, %v806
      %v847 = vmul.f32 %v623, %v808
      %v848 = vmul.f32 %v624, %v810
      %v849 = vmul.f32 %v625, %v812
      %v850 = vmul.f32 %v626, %v814
      %v851 = vmul.f32 %v627, %v816
      %v852 = vmul.f32 %v628, %v818
      %v853 = vmul.f32 %v629, %v820
      %v854 = vmul.f32 %v630, %v822
      %s855 = scalar_lea.vmem [#allocation2], 32
      %856 = vst.msk [vmem:[%s855] sm:$0xff] %vm280, %v823
      %857 = vst.msk [vmem:[%s855 + $0x8] sm:$0xff] %vm280, %v824
      %858 = vst.msk [vmem:[%s855 + $0x10] sm:$0xff] %vm280, %v825
      %859 = vst.msk [vmem:[%s855 + $0x18] sm:$0xff] %vm280, %v826
      %860 = vst.msk [vmem:[%s855 + $0x20] sm:$0xff] %vm280, %v827
      %861 = vst.msk [vmem:[%s855 + $0x28] sm:$0xff] %vm280, %v828
      %862 = vst.msk [vmem:[%s855 + $0x30] sm:$0xff] %vm280, %v829
      %863 = vst.msk [vmem:[%s855 + $0x38] sm:$0xff] %vm280, %v830
      %864 = vst.msk [vmem:[%s855 + $0x40] sm:$0xff] %vm280, %v831
      %865 = vst.msk [vmem:[%s855 + $0x48] sm:$0xff] %vm280, %v832
      %866 = vst.msk [vmem:[%s855 + $0x50] sm:$0xff] %vm280, %v833
      %867 = vst.msk [vmem:[%s855 + $0x58] sm:$0xff] %vm280, %v834
      %868 = vst.msk [vmem:[%s855 + $0x60] sm:$0xff] %vm280, %v835
      %869 = vst.msk [vmem:[%s855 + $0x68] sm:$0xff] %vm280, %v836
      %870 = vst.msk [vmem:[%s855 + $0x70] sm:$0xff] %vm280, %v837
      %871 = vst.msk [vmem:[%s855 + $0x78] sm:$0xff] %vm280, %v838
      %872 = vst.msk [vmem:[%s855 + $0x80] sm:$0xff] %vm280, %v839
      %873 = vst.msk [vmem:[%s855 + $0x88] sm:$0xff] %vm280, %v840
      %874 = vst.msk [vmem:[%s855 + $0x90] sm:$0xff] %vm280, %v841
      %875 = vst.msk [vmem:[%s855 + $0x98] sm:$0xff] %vm280, %v842
      %876 = vst.msk [vmem:[%s855 + $0xa0] sm:$0xff] %vm280, %v843
      %877 = vst.msk [vmem:[%s855 + $0xa8] sm:$0xff] %vm280, %v844
      %878 = vst.msk [vmem:[%s855 + $0xb0] sm:$0xff] %vm280, %v845
      %879 = vst.msk [vmem:[%s855 + $0xb8] sm:$0xff] %vm280, %v846
      %880 = vst.msk [vmem:[%s855 + $0xc0] sm:$0xff] %vm280, %v847
      %881 = vst.msk [vmem:[%s855 + $0xc8] sm:$0xff] %vm280, %v848
      %882 = vst.msk [vmem:[%s855 + $0xd0] sm:$0xff] %vm280, %v849
      %883 = vst.msk [vmem:[%s855 + $0xd8] sm:$0xff] %vm280, %v850
      %884 = vst.msk [vmem:[%s855 + $0xe0] sm:$0xff] %vm280, %v851
      %885 = vst.msk [vmem:[%s855 + $0xe8] sm:$0xff] %vm280, %v852
      %886 = vst.msk [vmem:[%s855 + $0xf0] sm:$0xff] %vm280, %v853
      %887 = vst.msk [vmem:[%s855 + $0xf8] sm:$0xff] %vm280, %v854
      %v888 = vld [vmem:[#allocation2] sm:$0xff]
      %v889 = vld [vmem:[#allocation2 + $0x8] sm:$0xff]
      %v890 = vld [vmem:[#allocation2 + $0x10] sm:$0xff]
      %v891 = vld [vmem:[#allocation2 + $0x18] sm:$0xff]
      %v892 = vld [vmem:[#allocation2 + $0x20] sm:$0xff]
      %v893 = vld [vmem:[#allocation2 + $0x28] sm:$0xff]
      %v894 = vld [vmem:[#allocation2 + $0x30] sm:$0xff]
      %v895 = vld [vmem:[#allocation2 + $0x38] sm:$0xff]
      %v896 = vld [vmem:[#allocation2 + $0x40] sm:$0xff]
      %v897 = vld [vmem:[#allocation2 + $0x48] sm:$0xff]
      %v898 = vld [vmem:[#allocation2 + $0x50] sm:$0xff]
      %v899 = vld [vmem:[#allocation2 + $0x58] sm:$0xff]
      %v900 = vld [vmem:[#allocation2 + $0x60] sm:$0xff]
      %v901 = vld [vmem:[#allocation2 + $0x68] sm:$0xff]
      %v902 = vld [vmem:[#allocation2 + $0x70] sm:$0xff]
      %v903 = vld [vmem:[#allocation2 + $0x78] sm:$0xff]
      %v904 = vld [vmem:[#allocation2 + $0x80] sm:$0xff]
      %v905 = vld [vmem:[#allocation2 + $0x88] sm:$0xff]
      %v906 = vld [vmem:[#allocation2 + $0x90] sm:$0xff]
      %v907 = vld [vmem:[#allocation2 + $0x98] sm:$0xff]
      %v908 = vld [vmem:[#allocation2 + $0xa0] sm:$0xff]
      %v909 = vld [vmem:[#allocation2 + $0xa8] sm:$0xff]
      %v910 = vld [vmem:[#allocation2 + $0xb0] sm:$0xff]
      %v911 = vld [vmem:[#allocation2 + $0xb8] sm:$0xff]
      %v912 = vld [vmem:[#allocation2 + $0xc0] sm:$0xff]
      %v913 = vld [vmem:[#allocation2 + $0xc8] sm:$0xff]
      %v914 = vld [vmem:[#allocation2 + $0xd0] sm:$0xff]
      %v915 = vld [vmem:[#allocation2 + $0xd8] sm:$0xff]
      %v916 = vld [vmem:[#allocation2 + $0xe0] sm:$0xff]
      %v917 = vld [vmem:[#allocation2 + $0xe8] sm:$0xff]
      %v918 = vld [vmem:[#allocation2 + $0xf0] sm:$0xff]
      %v919 = vld [vmem:[#allocation2 + $0xf8] sm:$0xff]
      %s920 = scalar_lea.vmem [#allocation2], 16
      %v921 = vld [vmem:[%s920] sm:$0xff]
      %v922 = vld [vmem:[%s920 + $0x8] sm:$0xff]
      %v923 = vld [vmem:[%s920 + $0x10] sm:$0xff]
      %v924 = vld [vmem:[%s920 + $0x18] sm:$0xff]
      %v925 = vld [vmem:[%s920 + $0x20] sm:$0xff]
      %v926 = vld [vmem:[%s920 + $0x28] sm:$0xff]
      %v927 = vld [vmem:[%s920 + $0x30] sm:$0xff]
      %v928 = vld [vmem:[%s920 + $0x38] sm:$0xff]
      %v929 = vld [vmem:[%s920 + $0x40] sm:$0xff]
      %v930 = vld [vmem:[%s920 + $0x48] sm:$0xff]
      %v931 = vld [vmem:[%s920 + $0x50] sm:$0xff]
      %v932 = vld [vmem:[%s920 + $0x58] sm:$0xff]
      %v933 = vld [vmem:[%s920 + $0x60] sm:$0xff]
      %v934 = vld [vmem:[%s920 + $0x68] sm:$0xff]
      %v935 = vld [vmem:[%s920 + $0x70] sm:$0xff]
      %v936 = vld [vmem:[%s920 + $0x78] sm:$0xff]
      %v937 = vld [vmem:[%s920 + $0x80] sm:$0xff]
      %v938 = vld [vmem:[%s920 + $0x88] sm:$0xff]
      %v939 = vld [vmem:[%s920 + $0x90] sm:$0xff]
      %v940 = vld [vmem:[%s920 + $0x98] sm:$0xff]
      %v941 = vld [vmem:[%s920 + $0xa0] sm:$0xff]
      %v942 = vld [vmem:[%s920 + $0xa8] sm:$0xff]
      %v943 = vld [vmem:[%s920 + $0xb0] sm:$0xff]
      %v944 = vld [vmem:[%s920 + $0xb8] sm:$0xff]
      %v945 = vld [vmem:[%s920 + $0xc0] sm:$0xff]
      %v946 = vld [vmem:[%s920 + $0xc8] sm:$0xff]
      %v947 = vld [vmem:[%s920 + $0xd0] sm:$0xff]
      %v948 = vld [vmem:[%s920 + $0xd8] sm:$0xff]
      %v949 = vld [vmem:[%s920 + $0xe0] sm:$0xff]
      %v950 = vld [vmem:[%s920 + $0xe8] sm:$0xff]
      %v951 = vld [vmem:[%s920 + $0xf0] sm:$0xff]
      %v952 = vld [vmem:[%s920 + $0xf8] sm:$0xff]
      %v953 = vmax.f32 %v888, %v921
      %v954 = vmax.f32 %v889, %v922
      %v955 = vmax.f32 %v890, %v923
      %v956 = vmax.f32 %v891, %v924
      %v957 = vmax.f32 %v892, %v925
      %v958 = vmax.f32 %v893, %v926
      %v959 = vmax.f32 %v894, %v927
      %v960 = vmax.f32 %v895, %v928
      %v961 = vmax.f32 %v896, %v929
      %v962 = vmax.f32 %v897, %v930
      %v963 = vmax.f32 %v898, %v931
      %v964 = vmax.f32 %v899, %v932
      %v965 = vmax.f32 %v900, %v933
      %v966 = vmax.f32 %v901, %v934
      %v967 = vmax.f32 %v902, %v935
      %v968 = vmax.f32 %v903, %v936
      %v969 = vmax.f32 %v904, %v937
      %v970 = vmax.f32 %v905, %v938
      %v971 = vmax.f32 %v906, %v939
      %v972 = vmax.f32 %v907, %v940
      %v973 = vmax.f32 %v908, %v941
      %v974 = vmax.f32 %v909, %v942
      %v975 = vmax.f32 %v910, %v943
      %v976 = vmax.f32 %v911, %v944
      %v977 = vmax.f32 %v912, %v945
      %v978 = vmax.f32 %v913, %v946
      %v979 = vmax.f32 %v914, %v947
      %v980 = vmax.f32 %v915, %v948
      %v981 = vmax.f32 %v916, %v949
      %v982 = vmax.f32 %v917, %v950
      %v983 = vmax.f32 %v918, %v951
      %v984 = vmax.f32 %v919, %v952
      %v985 = vld [vmem:[%s855] sm:$0xff]
      %v986 = vld [vmem:[%s855 + $0x8] sm:$0xff]
      %v987 = vld [vmem:[%s855 + $0x10] sm:$0xff]
      %v988 = vld [vmem:[%s855 + $0x18] sm:$0xff]
      %v989 = vld [vmem:[%s855 + $0x20] sm:$0xff]
      %v990 = vld [vmem:[%s855 + $0x28] sm:$0xff]
      %v991 = vld [vmem:[%s855 + $0x30] sm:$0xff]
      %v992 = vld [vmem:[%s855 + $0x38] sm:$0xff]
      %v993 = vld [vmem:[%s855 + $0x40] sm:$0xff]
      %v994 = vld [vmem:[%s855 + $0x48] sm:$0xff]
      %v995 = vld [vmem:[%s855 + $0x50] sm:$0xff]
      %v996 = vld [vmem:[%s855 + $0x58] sm:$0xff]
      %v997 = vld [vmem:[%s855 + $0x60] sm:$0xff]
      %v998 = vld [vmem:[%s855 + $0x68] sm:$0xff]
      %v999 = vld [vmem:[%s855 + $0x70] sm:$0xff]
      %v1000 = vld [vmem:[%s855 + $0x78] sm:$0xff]
      %v1001 = vld [vmem:[%s855 + $0x80] sm:$0xff]
      %v1002 = vld [vmem:[%s855 + $0x88] sm:$0xff]
      %v1003 = vld [vmem:[%s855 + $0x90] sm:$0xff]
      %v1004 = vld [vmem:[%s855 + $0x98] sm:$0xff]
      %v1005 = vld [vmem:[%s855 + $0xa0] sm:$0xff]
      %v1006 = vld [vmem:[%s855 + $0xa8] sm:$0xff]
      %v1007 = vld [vmem:[%s855 + $0xb0] sm:$0xff]
      %v1008 = vld [vmem:[%s855 + $0xb8] sm:$0xff]
      %v1009 = vld [vmem:[%s855 + $0xc0] sm:$0xff]
      %v1010 = vld [vmem:[%s855 + $0xc8] sm:$0xff]
      %v1011 = vld [vmem:[%s855 + $0xd0] sm:$0xff]
      %v1012 = vld [vmem:[%s855 + $0xd8] sm:$0xff]
      %v1013 = vld [vmem:[%s855 + $0xe0] sm:$0xff]
      %v1014 = vld [vmem:[%s855 + $0xe8] sm:$0xff]
      %v1015 = vld [vmem:[%s855 + $0xf0] sm:$0xff]
      %v1016 = vld [vmem:[%s855 + $0xf8] sm:$0xff]
      %v1017 = vmax.f32 %v953, %v985
      %v1018 = vmax.f32 %v954, %v986
      %v1019 = vmax.f32 %v955, %v987
      %v1020 = vmax.f32 %v956, %v988
      %v1021 = vmax.f32 %v957, %v989
      %v1022 = vmax.f32 %v958, %v990
      %v1023 = vmax.f32 %v959, %v991
      %v1024 = vmax.f32 %v960, %v992
      %v1025 = vmax.f32 %v961, %v993
      %v1026 = vmax.f32 %v962, %v994
      %v1027 = vmax.f32 %v963, %v995
      %v1028 = vmax.f32 %v964, %v996
      %v1029 = vmax.f32 %v965, %v997
      %v1030 = vmax.f32 %v966, %v998
      %v1031 = vmax.f32 %v967, %v999
      %v1032 = vmax.f32 %v968, %v1000
      %v1033 = vmax.f32 %v969, %v1001
      %v1034 = vmax.f32 %v970, %v1002
      %v1035 = vmax.f32 %v971, %v1003
      %v1036 = vmax.f32 %v972, %v1004
      %v1037 = vmax.f32 %v973, %v1005
      %v1038 = vmax.f32 %v974, %v1006
      %v1039 = vmax.f32 %v975, %v1007
      %v1040 = vmax.f32 %v976, %v1008
      %v1041 = vmax.f32 %v977, %v1009
      %v1042 = vmax.f32 %v978, %v1010
      %v1043 = vmax.f32 %v979, %v1011
      %v1044 = vmax.f32 %v980, %v1012
      %v1045 = vmax.f32 %v981, %v1013
      %v1046 = vmax.f32 %v982, %v1014
      %v1047 = vmax.f32 %v983, %v1015
      %v1048 = vmax.f32 %v984, %v1016
      %s1049 = scalar_lea.vmem [#allocation2], 48
      %v1050 = vld [vmem:[%s1049] sm:$0xff]
      %v1051 = vld [vmem:[%s1049 + $0x8] sm:$0xff]
      %v1052 = vld [vmem:[%s1049 + $0x10] sm:$0xff]
      %v1053 = vld [vmem:[%s1049 + $0x18] sm:$0xff]
      %v1054 = vld [vmem:[%s1049 + $0x20] sm:$0xff]
      %v1055 = vld [vmem:[%s1049 + $0x28] sm:$0xff]
      %v1056 = vld [vmem:[%s1049 + $0x30] sm:$0xff]
      %v1057 = vld [vmem:[%s1049 + $0x38] sm:$0xff]
      %v1058 = vld [vmem:[%s1049 + $0x40] sm:$0xff]
      %v1059 = vld [vmem:[%s1049 + $0x48] sm:$0xff]
      %v1060 = vld [vmem:[%s1049 + $0x50] sm:$0xff]
      %v1061 = vld [vmem:[%s1049 + $0x58] sm:$0xff]
      %v1062 = vld [vmem:[%s1049 + $0x60] sm:$0xff]
      %v1063 = vld [vmem:[%s1049 + $0x68] sm:$0xff]
      %v1064 = vld [vmem:[%s1049 + $0x70] sm:$0xff]
      %v1065 = vld [vmem:[%s1049 + $0x78] sm:$0xff]
      %v1066 = vld [vmem:[%s1049 + $0x80] sm:$0xff]
      %v1067 = vld [vmem:[%s1049 + $0x88] sm:$0xff]
      %v1068 = vld [vmem:[%s1049 + $0x90] sm:$0xff]
      %v1069 = vld [vmem:[%s1049 + $0x98] sm:$0xff]
      %v1070 = vld [vmem:[%s1049 + $0xa0] sm:$0xff]
      %v1071 = vld [vmem:[%s1049 + $0xa8] sm:$0xff]
      %v1072 = vld [vmem:[%s1049 + $0xb0] sm:$0xff]
      %v1073 = vld [vmem:[%s1049 + $0xb8] sm:$0xff]
      %v1074 = vld [vmem:[%s1049 + $0xc0] sm:$0xff]
      %v1075 = vld [vmem:[%s1049 + $0xc8] sm:$0xff]
      %v1076 = vld [vmem:[%s1049 + $0xd0] sm:$0xff]
      %v1077 = vld [vmem:[%s1049 + $0xd8] sm:$0xff]
      %v1078 = vld [vmem:[%s1049 + $0xe0] sm:$0xff]
      %v1079 = vld [vmem:[%s1049 + $0xe8] sm:$0xff]
      %v1080 = vld [vmem:[%s1049 + $0xf0] sm:$0xff]
      %v1081 = vld [vmem:[%s1049 + $0xf8] sm:$0xff]
      %v1082 = vmax.f32 %v1017, %v1050
      %v1083 = vmax.f32 %v1018, %v1051
      %v1084 = vmax.f32 %v1019, %v1052
      %v1085 = vmax.f32 %v1020, %v1053
      %v1086 = vmax.f32 %v1021, %v1054
      %v1087 = vmax.f32 %v1022, %v1055
      %v1088 = vmax.f32 %v1023, %v1056
      %v1089 = vmax.f32 %v1024, %v1057
      %v1090 = vmax.f32 %v1025, %v1058
      %v1091 = vmax.f32 %v1026, %v1059
      %v1092 = vmax.f32 %v1027, %v1060
      %v1093 = vmax.f32 %v1028, %v1061
      %v1094 = vmax.f32 %v1029, %v1062
      %v1095 = vmax.f32 %v1030, %v1063
      %v1096 = vmax.f32 %v1031, %v1064
      %v1097 = vmax.f32 %v1032, %v1065
      %v1098 = vmax.f32 %v1033, %v1066
      %v1099 = vmax.f32 %v1034, %v1067
      %v1100 = vmax.f32 %v1035, %v1068
      %v1101 = vmax.f32 %v1036, %v1069
      %v1102 = vmax.f32 %v1037, %v1070
      %v1103 = vmax.f32 %v1038, %v1071
      %v1104 = vmax.f32 %v1039, %v1072
      %v1105 = vmax.f32 %v1040, %v1073
      %v1106 = vmax.f32 %v1041, %v1074
      %v1107 = vmax.f32 %v1042, %v1075
      %v1108 = vmax.f32 %v1043, %v1076
      %v1109 = vmax.f32 %v1044, %v1077
      %v1110 = vmax.f32 %v1045, %v1078
      %v1111 = vmax.f32 %v1046, %v1079
      %v1112 = vmax.f32 %v1047, %v1080
      %v1113 = vmax.f32 %v1048, %v1081
      %s1114 = scalar_lea.vmem [#allocation2], 64
      %v1115 = vld [vmem:[%s1114] sm:$0xff]
      %v1116 = vld [vmem:[%s1114 + $0x8] sm:$0xff]
      %v1117 = vld [vmem:[%s1114 + $0x10] sm:$0xff]
      %v1118 = vld [vmem:[%s1114 + $0x18] sm:$0xff]
      %v1119 = vld [vmem:[%s1114 + $0x20] sm:$0xff]
      %v1120 = vld [vmem:[%s1114 + $0x28] sm:$0xff]
      %v1121 = vld [vmem:[%s1114 + $0x30] sm:$0xff]
      %v1122 = vld [vmem:[%s1114 + $0x38] sm:$0xff]
      %v1123 = vld [vmem:[%s1114 + $0x40] sm:$0xff]
      %v1124 = vld [vmem:[%s1114 + $0x48] sm:$0xff]
      %v1125 = vld [vmem:[%s1114 + $0x50] sm:$0xff]
      %v1126 = vld [vmem:[%s1114 + $0x58] sm:$0xff]
      %v1127 = vld [vmem:[%s1114 + $0x60] sm:$0xff]
      %v1128 = vld [vmem:[%s1114 + $0x68] sm:$0xff]
      %v1129 = vld [vmem:[%s1114 + $0x70] sm:$0xff]
      %v1130 = vld [vmem:[%s1114 + $0x78] sm:$0xff]
      %v1131 = vld [vmem:[%s1114 + $0x80] sm:$0xff]
      %v1132 = vld [vmem:[%s1114 + $0x88] sm:$0xff]
      %v1133 = vld [vmem:[%s1114 + $0x90] sm:$0xff]
      %v1134 = vld [vmem:[%s1114 + $0x98] sm:$0xff]
      %v1135 = vld [vmem:[%s1114 + $0xa0] sm:$0xff]
      %v1136 = vld [vmem:[%s1114 + $0xa8] sm:$0xff]
      %v1137 = vld [vmem:[%s1114 + $0xb0] sm:$0xff]
      %v1138 = vld [vmem:[%s1114 + $0xb8] sm:$0xff]
      %v1139 = vld [vmem:[%s1114 + $0xc0] sm:$0xff]
      %v1140 = vld [vmem:[%s1114 + $0xc8] sm:$0xff]
      %v1141 = vld [vmem:[%s1114 + $0xd0] sm:$0xff]
      %v1142 = vld [vmem:[%s1114 + $0xd8] sm:$0xff]
      %v1143 = vld [vmem:[%s1114 + $0xe0] sm:$0xff]
      %v1144 = vld [vmem:[%s1114 + $0xe8] sm:$0xff]
      %v1145 = vld [vmem:[%s1114 + $0xf0] sm:$0xff]
      %v1146 = vld [vmem:[%s1114 + $0xf8] sm:$0xff]
      %v1147 = vmax.f32 %v1082, %v1115
      %v1148 = vmax.f32 %v1083, %v1116
      %v1149 = vmax.f32 %v1084, %v1117
      %v1150 = vmax.f32 %v1085, %v1118
      %v1151 = vmax.f32 %v1086, %v1119
      %v1152 = vmax.f32 %v1087, %v1120
      %v1153 = vmax.f32 %v1088, %v1121
      %v1154 = vmax.f32 %v1089, %v1122
      %v1155 = vmax.f32 %v1090, %v1123
      %v1156 = vmax.f32 %v1091, %v1124
      %v1157 = vmax.f32 %v1092, %v1125
      %v1158 = vmax.f32 %v1093, %v1126
      %v1159 = vmax.f32 %v1094, %v1127
      %v1160 = vmax.f32 %v1095, %v1128
      %v1161 = vmax.f32 %v1096, %v1129
      %v1162 = vmax.f32 %v1097, %v1130
      %v1163 = vmax.f32 %v1098, %v1131
      %v1164 = vmax.f32 %v1099, %v1132
      %v1165 = vmax.f32 %v1100, %v1133
      %v1166 = vmax.f32 %v1101, %v1134
      %v1167 = vmax.f32 %v1102, %v1135
      %v1168 = vmax.f32 %v1103, %v1136
      %v1169 = vmax.f32 %v1104, %v1137
      %v1170 = vmax.f32 %v1105, %v1138
      %v1171 = vmax.f32 %v1106, %v1139
      %v1172 = vmax.f32 %v1107, %v1140
      %v1173 = vmax.f32 %v1108, %v1141
      %v1174 = vmax.f32 %v1109, %v1142
      %v1175 = vmax.f32 %v1110, %v1143
      %v1176 = vmax.f32 %v1111, %v1144
      %v1177 = vmax.f32 %v1112, %v1145
      %v1178 = vmax.f32 %v1113, %v1146
      %v1179 = vrot.slane %v1147, 1
      %v1180 = vrot.slane %v1149, 1
      %v1181 = vrot.slane %v1151, 1
      %v1182 = vrot.slane %v1153, 1
      %v1183 = vrot.slane %v1155, 1
      %v1184 = vrot.slane %v1157, 1
      %v1185 = vrot.slane %v1159, 1
      %v1186 = vrot.slane %v1161, 1
      %v1187 = vrot.slane %v1163, 1
      %v1188 = vrot.slane %v1165, 1
      %v1189 = vrot.slane %v1167, 1
      %v1190 = vrot.slane %v1169, 1
      %v1191 = vrot.slane %v1171, 1
      %v1192 = vrot.slane %v1173, 1
      %v1193 = vrot.slane %v1175, 1
      %v1194 = vrot.slane %v1177, 1
      %v1195 = vrot.slane %v1148, 1
      %v1196 = vrot.slane %v1150, 1
      %v1197 = vrot.slane %v1152, 1
      %v1198 = vrot.slane %v1154, 1
      %v1199 = vrot.slane %v1156, 1
      %v1200 = vrot.slane %v1158, 1
      %v1201 = vrot.slane %v1160, 1
      %v1202 = vrot.slane %v1162, 1
      %v1203 = vrot.slane %v1164, 1
      %v1204 = vrot.slane %v1166, 1
      %v1205 = vrot.slane %v1168, 1
      %v1206 = vrot.slane %v1170, 1
      %v1207 = vrot.slane %v1172, 1
      %v1208 = vrot.slane %v1174, 1
      %v1209 = vrot.slane %v1176, 1
      %v1210 = vrot.slane %v1178, 1
      %vm1211 = vcmp.lt.s32.totalorder %v291, 7
      %v1212 = vsel %vm1211, %v1179, %v1195
      %v1213 = vsel %vm1211, %v1180, %v1196
      %v1214 = vsel %vm1211, %v1181, %v1197
      %v1215 = vsel %vm1211, %v1182, %v1198
      %v1216 = vsel %vm1211, %v1183, %v1199
      %v1217 = vsel %vm1211, %v1184, %v1200
      %v1218 = vsel %vm1211, %v1185, %v1201
      %v1219 = vsel %vm1211, %v1186, %v1202
      %v1220 = vsel %vm1211, %v1187, %v1203
      %v1221 = vsel %vm1211, %v1188, %v1204
      %v1222 = vsel %vm1211, %v1189, %v1205
      %v1223 = vsel %vm1211, %v1190, %v1206
      %v1224 = vsel %vm1211, %v1191, %v1207
      %v1225 = vsel %vm1211, %v1192, %v1208
      %v1226 = vsel %vm1211, %v1193, %v1209
      %v1227 = vsel %vm1211, %v1194, %v1210
      %v1228 = vsel %vm1211, %v1195, %v1179
      %v1229 = vsel %vm1211, %v1196, %v1180
      %v1230 = vsel %vm1211, %v1197, %v1181
      %v1231 = vsel %vm1211, %v1198, %v1182
      %v1232 = vsel %vm1211, %v1199, %v1183
      %v1233 = vsel %vm1211, %v1200, %v1184
      %v1234 = vsel %vm1211, %v1201, %v1185
      %v1235 = vsel %vm1211, %v1202, %v1186
      %v1236 = vsel %vm1211, %v1203, %v1187
      %v1237 = vsel %vm1211, %v1204, %v1188
      %v1238 = vsel %vm1211, %v1205, %v1189
      %v1239 = vsel %vm1211, %v1206, %v1190
      %v1240 = vsel %vm1211, %v1207, %v1191
      %v1241 = vsel %vm1211, %v1208, %v1192
      %v1242 = vsel %vm1211, %v1209, %v1193
      %v1243 = vsel %vm1211, %v1210, %v1194
      %v1244 = vsel %vm293, 1, 0
      %v1245 = vsel %vm294, 1, 0
      %vm1246 = vcmp.eq.s32.totalorder %v1244, 1
      %vm1247 = vcmp.eq.s32.totalorder %v1245, 1
      %v1248 = vsel %vm1246, %v1212, -inf
      %v1249 = vsel %vm1247, %v1228, -inf
      %v1250 = vsel %vm1246, %v1213, -inf
      %v1251 = vsel %vm1247, %v1229, -inf
      %v1252 = vsel %vm1246, %v1214, -inf
      %v1253 = vsel %vm1247, %v1230, -inf
      %v1254 = vsel %vm1246, %v1215, -inf
      %v1255 = vsel %vm1247, %v1231, -inf
      %v1256 = vsel %vm1246, %v1216, -inf
      %v1257 = vsel %vm1247, %v1232, -inf
      %v1258 = vsel %vm1246, %v1217, -inf
      %v1259 = vsel %vm1247, %v1233, -inf
      %v1260 = vsel %vm1246, %v1218, -inf
      %v1261 = vsel %vm1247, %v1234, -inf
      %v1262 = vsel %vm1246, %v1219, -inf
      %v1263 = vsel %vm1247, %v1235, -inf
      %v1264 = vsel %vm1246, %v1220, -inf
      %v1265 = vsel %vm1247, %v1236, -inf
      %v1266 = vsel %vm1246, %v1221, -inf
      %v1267 = vsel %vm1247, %v1237, -inf
      %v1268 = vsel %vm1246, %v1222, -inf
      %v1269 = vsel %vm1247, %v1238, -inf
      %v1270 = vsel %vm1246, %v1223, -inf
      %v1271 = vsel %vm1247, %v1239, -inf
      %v1272 = vsel %vm1246, %v1224, -inf
      %v1273 = vsel %vm1247, %v1240, -inf
      %v1274 = vsel %vm1246, %v1225, -inf
      %v1275 = vsel %vm1247, %v1241, -inf
      %v1276 = vsel %vm1246, %v1226, -inf
      %v1277 = vsel %vm1247, %v1242, -inf
      %v1278 = vsel %vm1246, %v1227, -inf
      %v1279 = vsel %vm1247, %v1243, -inf
      %v1280 = vmax.f32 %v1147, %v1248
      %v1281 = vmax.f32 %v1148, %v1249
      %v1282 = vmax.f32 %v1149, %v1250
      %v1283 = vmax.f32 %v1150, %v1251
      %v1284 = vmax.f32 %v1151, %v1252
      %v1285 = vmax.f32 %v1152, %v1253
      %v1286 = vmax.f32 %v1153, %v1254
      %v1287 = vmax.f32 %v1154, %v1255
      %v1288 = vmax.f32 %v1155, %v1256
      %v1289 = vmax.f32 %v1156, %v1257
      %v1290 = vmax.f32 %v1157, %v1258
      %v1291 = vmax.f32 %v1158, %v1259
      %v1292 = vmax.f32 %v1159, %v1260
      %v1293 = vmax.f32 %v1160, %v1261
      %v1294 = vmax.f32 %v1161, %v1262
      %v1295 = vmax.f32 %v1162, %v1263
      %v1296 = vmax.f32 %v1163, %v1264
      %v1297 = vmax.f32 %v1164, %v1265
      %v1298 = vmax.f32 %v1165, %v1266
      %v1299 = vmax.f32 %v1166, %v1267
      %v1300 = vmax.f32 %v1167, %v1268
      %v1301 = vmax.f32 %v1168, %v1269
      %v1302 = vmax.f32 %v1169, %v1270
      %v1303 = vmax.f32 %v1170, %v1271
      %v1304 = vmax.f32 %v1171, %v1272
      %v1305 = vmax.f32 %v1172, %v1273
      %v1306 = vmax.f32 %v1173, %v1274
      %v1307 = vmax.f32 %v1174, %v1275
      %v1308 = vmax.f32 %v1175, %v1276
      %v1309 = vmax.f32 %v1176, %v1277
      %v1310 = vmax.f32 %v1177, %v1278
      %v1311 = vmax.f32 %v1178, %v1279
      %v1312 = vrot.slane %v1147, 2
      %v1313 = vrot.slane %v1149, 2
      %v1314 = vrot.slane %v1151, 2
      %v1315 = vrot.slane %v1153, 2
      %v1316 = vrot.slane %v1155, 2
      %v1317 = vrot.slane %v1157, 2
      %v1318 = vrot.slane %v1159, 2
      %v1319 = vrot.slane %v1161, 2
      %v1320 = vrot.slane %v1163, 2
      %v1321 = vrot.slane %v1165, 2
      %v1322 = vrot.slane %v1167, 2
      %v1323 = vrot.slane %v1169, 2
      %v1324 = vrot.slane %v1171, 2
      %v1325 = vrot.slane %v1173, 2
      %v1326 = vrot.slane %v1175, 2
      %v1327 = vrot.slane %v1177, 2
      %v1328 = vrot.slane %v1148, 2
      %v1329 = vrot.slane %v1150, 2
      %v1330 = vrot.slane %v1152, 2
      %v1331 = vrot.slane %v1154, 2
      %v1332 = vrot.slane %v1156, 2
      %v1333 = vrot.slane %v1158, 2
      %v1334 = vrot.slane %v1160, 2
      %v1335 = vrot.slane %v1162, 2
      %v1336 = vrot.slane %v1164, 2
      %v1337 = vrot.slane %v1166, 2
      %v1338 = vrot.slane %v1168, 2
      %v1339 = vrot.slane %v1170, 2
      %v1340 = vrot.slane %v1172, 2
      %v1341 = vrot.slane %v1174, 2
      %v1342 = vrot.slane %v1176, 2
      %v1343 = vrot.slane %v1178, 2
      %vm1344 = vcmp.lt.s32.totalorder %v291, 6
      %v1345 = vsel %vm1344, %v1312, %v1328
      %v1346 = vsel %vm1344, %v1313, %v1329
      %v1347 = vsel %vm1344, %v1314, %v1330
      %v1348 = vsel %vm1344, %v1315, %v1331
      %v1349 = vsel %vm1344, %v1316, %v1332
      %v1350 = vsel %vm1344, %v1317, %v1333
      %v1351 = vsel %vm1344, %v1318, %v1334
      %v1352 = vsel %vm1344, %v1319, %v1335
      %v1353 = vsel %vm1344, %v1320, %v1336
      %v1354 = vsel %vm1344, %v1321, %v1337
      %v1355 = vsel %vm1344, %v1322, %v1338
      %v1356 = vsel %vm1344, %v1323, %v1339
      %v1357 = vsel %vm1344, %v1324, %v1340
      %v1358 = vsel %vm1344, %v1325, %v1341
      %v1359 = vsel %vm1344, %v1326, %v1342
      %v1360 = vsel %vm1344, %v1327, %v1343
      %v1361 = vsel %vm1344, %v1328, %v1312
      %v1362 = vsel %vm1344, %v1329, %v1313
      %v1363 = vsel %vm1344, %v1330, %v1314
      %v1364 = vsel %vm1344, %v1331, %v1315
      %v1365 = vsel %vm1344, %v1332, %v1316
      %v1366 = vsel %vm1344, %v1333, %v1317
      %v1367 = vsel %vm1344, %v1334, %v1318
      %v1368 = vsel %vm1344, %v1335, %v1319
      %v1369 = vsel %vm1344, %v1336, %v1320
      %v1370 = vsel %vm1344, %v1337, %v1321
      %v1371 = vsel %vm1344, %v1338, %v1322
      %v1372 = vsel %vm1344, %v1339, %v1323
      %v1373 = vsel %vm1344, %v1340, %v1324
      %v1374 = vsel %vm1344, %v1341, %v1325
      %v1375 = vsel %vm1344, %v1342, %v1326
      %v1376 = vsel %vm1344, %v1343, %v1327
      %v1377 = vsel %vm295, 1, 0
      %v1378 = vsel %vm296, 1, 0
      %vm1379 = vcmp.eq.s32.totalorder %v1377, 1
      %vm1380 = vcmp.eq.s32.totalorder %v1378, 1
      %v1381 = vsel %vm1379, %v1345, -inf
      %v1382 = vsel %vm1380, %v1361, -inf
      %v1383 = vsel %vm1379, %v1346, -inf
      %v1384 = vsel %vm1380, %v1362, -inf
      %v1385 = vsel %vm1379, %v1347, -inf
      %v1386 = vsel %vm1380, %v1363, -inf
      %v1387 = vsel %vm1379, %v1348, -inf
      %v1388 = vsel %vm1380, %v1364, -inf
      %v1389 = vsel %vm1379, %v1349, -inf
      %v1390 = vsel %vm1380, %v1365, -inf
      %v1391 = vsel %vm1379, %v1350, -inf
      %v1392 = vsel %vm1380, %v1366, -inf
      %v1393 = vsel %vm1379, %v1351, -inf
      %v1394 = vsel %vm1380, %v1367, -inf
      %v1395 = vsel %vm1379, %v1352, -inf
      %v1396 = vsel %vm1380, %v1368, -inf
      %v1397 = vsel %vm1379, %v1353, -inf
      %v1398 = vsel %vm1380, %v1369, -inf
      %v1399 = vsel %vm1379, %v1354, -inf
      %v1400 = vsel %vm1380, %v1370, -inf
      %v1401 = vsel %vm1379, %v1355, -inf
      %v1402 = vsel %vm1380, %v1371, -inf
      %v1403 = vsel %vm1379, %v1356, -inf
      %v1404 = vsel %vm1380, %v1372, -inf
      %v1405 = vsel %vm1379, %v1357, -inf
      %v1406 = vsel %vm1380, %v1373, -inf
      %v1407 = vsel %vm1379, %v1358, -inf
      %v1408 = vsel %vm1380, %v1374, -inf
      %v1409 = vsel %vm1379, %v1359, -inf
      %v1410 = vsel %vm1380, %v1375, -inf
      %v1411 = vsel %vm1379, %v1360, -inf
      %v1412 = vsel %vm1380, %v1376, -inf
      %v1413 = vmax.f32 %v1280, %v1381
      %v1414 = vmax.f32 %v1281, %v1382
      %v1415 = vmax.f32 %v1282, %v1383
      %v1416 = vmax.f32 %v1283, %v1384
      %v1417 = vmax.f32 %v1284, %v1385
      %v1418 = vmax.f32 %v1285, %v1386
      %v1419 = vmax.f32 %v1286, %v1387
      %v1420 = vmax.f32 %v1287, %v1388
      %v1421 = vmax.f32 %v1288, %v1389
      %v1422 = vmax.f32 %v1289, %v1390
      %v1423 = vmax.f32 %v1290, %v1391
      %v1424 = vmax.f32 %v1291, %v1392
      %v1425 = vmax.f32 %v1292, %v1393
      %v1426 = vmax.f32 %v1293, %v1394
      %v1427 = vmax.f32 %v1294, %v1395
      %v1428 = vmax.f32 %v1295, %v1396
      %v1429 = vmax.f32 %v1296, %v1397
      %v1430 = vmax.f32 %v1297, %v1398
      %v1431 = vmax.f32 %v1298, %v1399
      %v1432 = vmax.f32 %v1299, %v1400
      %v1433 = vmax.f32 %v1300, %v1401
      %v1434 = vmax.f32 %v1301, %v1402
      %v1435 = vmax.f32 %v1302, %v1403
      %v1436 = vmax.f32 %v1303, %v1404
      %v1437 = vmax.f32 %v1304, %v1405
      %v1438 = vmax.f32 %v1305, %v1406
      %v1439 = vmax.f32 %v1306, %v1407
      %v1440 = vmax.f32 %v1307, %v1408
      %v1441 = vmax.f32 %v1308, %v1409
      %v1442 = vmax.f32 %v1309, %v1410
      %v1443 = vmax.f32 %v1310, %v1411
      %v1444 = vmax.f32 %v1311, %v1412
      %v1445 = vrot.slane %v1147, 7
      %v1446 = vrot.slane %v1149, 7
      %v1447 = vrot.slane %v1151, 7
      %v1448 = vrot.slane %v1153, 7
      %v1449 = vrot.slane %v1155, 7
      %v1450 = vrot.slane %v1157, 7
      %v1451 = vrot.slane %v1159, 7
      %v1452 = vrot.slane %v1161, 7
      %v1453 = vrot.slane %v1163, 7
      %v1454 = vrot.slane %v1165, 7
      %v1455 = vrot.slane %v1167, 7
      %v1456 = vrot.slane %v1169, 7
      %v1457 = vrot.slane %v1171, 7
      %v1458 = vrot.slane %v1173, 7
      %v1459 = vrot.slane %v1175, 7
      %v1460 = vrot.slane %v1177, 7
      %v1461 = vrot.slane %v1148, 7
      %v1462 = vrot.slane %v1150, 7
      %v1463 = vrot.slane %v1152, 7
      %v1464 = vrot.slane %v1154, 7
      %v1465 = vrot.slane %v1156, 7
      %v1466 = vrot.slane %v1158, 7
      %v1467 = vrot.slane %v1160, 7
      %v1468 = vrot.slane %v1162, 7
      %v1469 = vrot.slane %v1164, 7
      %v1470 = vrot.slane %v1166, 7
      %v1471 = vrot.slane %v1168, 7
      %v1472 = vrot.slane %v1170, 7
      %v1473 = vrot.slane %v1172, 7
      %v1474 = vrot.slane %v1174, 7
      %v1475 = vrot.slane %v1176, 7
      %v1476 = vrot.slane %v1178, 7
      %vm1477 = vcmp.lt.s32.totalorder %v291, 1
      %v1478 = vsel %vm1477, %v1445, %v1461
      %v1479 = vsel %vm1477, %v1446, %v1462
      %v1480 = vsel %vm1477, %v1447, %v1463
      %v1481 = vsel %vm1477, %v1448, %v1464
      %v1482 = vsel %vm1477, %v1449, %v1465
      %v1483 = vsel %vm1477, %v1450, %v1466
      %v1484 = vsel %vm1477, %v1451, %v1467
      %v1485 = vsel %vm1477, %v1452, %v1468
      %v1486 = vsel %vm1477, %v1453, %v1469
      %v1487 = vsel %vm1477, %v1454, %v1470
      %v1488 = vsel %vm1477, %v1455, %v1471
      %v1489 = vsel %vm1477, %v1456, %v1472
      %v1490 = vsel %vm1477, %v1457, %v1473
      %v1491 = vsel %vm1477, %v1458, %v1474
      %v1492 = vsel %vm1477, %v1459, %v1475
      %v1493 = vsel %vm1477, %v1460, %v1476
      %v1494 = vsel %vm1477, %v1461, %v1445
      %v1495 = vsel %vm1477, %v1462, %v1446
      %v1496 = vsel %vm1477, %v1463, %v1447
      %v1497 = vsel %vm1477, %v1464, %v1448
      %v1498 = vsel %vm1477, %v1465, %v1449
      %v1499 = vsel %vm1477, %v1466, %v1450
      %v1500 = vsel %vm1477, %v1467, %v1451
      %v1501 = vsel %vm1477, %v1468, %v1452
      %v1502 = vsel %vm1477, %v1469, %v1453
      %v1503 = vsel %vm1477, %v1470, %v1454
      %v1504 = vsel %vm1477, %v1471, %v1455
      %v1505 = vsel %vm1477, %v1472, %v1456
      %v1506 = vsel %vm1477, %v1473, %v1457
      %v1507 = vsel %vm1477, %v1474, %v1458
      %v1508 = vsel %vm1477, %v1475, %v1459
      %v1509 = vsel %vm1477, %v1476, %v1460
      %v1510 = vsel %vm297, 1, 0
      %v1511 = vsel %vm298, 1, 0
      %vm1512 = vcmp.eq.s32.totalorder %v1510, 1
      %vm1513 = vcmp.eq.s32.totalorder %v1511, 1
      %v1514 = vsel %vm1512, %v1494, -inf
      %v1515 = vsel %vm1513, %v1478, -inf
      %v1516 = vsel %vm1512, %v1495, -inf
      %v1517 = vsel %vm1513, %v1479, -inf
      %v1518 = vsel %vm1512, %v1496, -inf
      %v1519 = vsel %vm1513, %v1480, -inf
      %v1520 = vsel %vm1512, %v1497, -inf
      %v1521 = vsel %vm1513, %v1481, -inf
      %v1522 = vsel %vm1512, %v1498, -inf
      %v1523 = vsel %vm1513, %v1482, -inf
      %v1524 = vsel %vm1512, %v1499, -inf
      %v1525 = vsel %vm1513, %v1483, -inf
      %v1526 = vsel %vm1512, %v1500, -inf
      %v1527 = vsel %vm1513, %v1484, -inf
      %v1528 = vsel %vm1512, %v1501, -inf
      %v1529 = vsel %vm1513, %v1485, -inf
      %v1530 = vsel %vm1512, %v1502, -inf
      %v1531 = vsel %vm1513, %v1486, -inf
      %v1532 = vsel %vm1512, %v1503, -inf
      %v1533 = vsel %vm1513, %v1487, -inf
      %v1534 = vsel %vm1512, %v1504, -inf
      %v1535 = vsel %vm1513, %v1488, -inf
      %v1536 = vsel %vm1512, %v1505, -inf
      %v1537 = vsel %vm1513, %v1489, -inf
      %v1538 = vsel %vm1512, %v1506, -inf
      %v1539 = vsel %vm1513, %v1490, -inf
      %v1540 = vsel %vm1512, %v1507, -inf
      %v1541 = vsel %vm1513, %v1491, -inf
      %v1542 = vsel %vm1512, %v1508, -inf
      %v1543 = vsel %vm1513, %v1492, -inf
      %v1544 = vsel %vm1512, %v1509, -inf
      %v1545 = vsel %vm1513, %v1493, -inf
      %v1546 = vmax.f32 %v1413, %v1514
      %v1547 = vmax.f32 %v1414, %v1515
      %v1548 = vmax.f32 %v1415, %v1516
      %v1549 = vmax.f32 %v1416, %v1517
      %v1550 = vmax.f32 %v1417, %v1518
      %v1551 = vmax.f32 %v1418, %v1519
      %v1552 = vmax.f32 %v1419, %v1520
      %v1553 = vmax.f32 %v1420, %v1521
      %v1554 = vmax.f32 %v1421, %v1522
      %v1555 = vmax.f32 %v1422, %v1523
      %v1556 = vmax.f32 %v1423, %v1524
      %v1557 = vmax.f32 %v1424, %v1525
      %v1558 = vmax.f32 %v1425, %v1526
      %v1559 = vmax.f32 %v1426, %v1527
      %v1560 = vmax.f32 %v1427, %v1528
      %v1561 = vmax.f32 %v1428, %v1529
      %v1562 = vmax.f32 %v1429, %v1530
      %v1563 = vmax.f32 %v1430, %v1531
      %v1564 = vmax.f32 %v1431, %v1532
      %v1565 = vmax.f32 %v1432, %v1533
      %v1566 = vmax.f32 %v1433, %v1534
      %v1567 = vmax.f32 %v1434, %v1535
      %v1568 = vmax.f32 %v1435, %v1536
      %v1569 = vmax.f32 %v1436, %v1537
      %v1570 = vmax.f32 %v1437, %v1538
      %v1571 = vmax.f32 %v1438, %v1539
      %v1572 = vmax.f32 %v1439, %v1540
      %v1573 = vmax.f32 %v1440, %v1541
      %v1574 = vmax.f32 %v1441, %v1542
      %v1575 = vmax.f32 %v1442, %v1543
      %v1576 = vmax.f32 %v1443, %v1544
      %v1577 = vmax.f32 %v1444, %v1545
      %v1578 = vrot.slane %v1147, 6
      %v1579 = vrot.slane %v1149, 6
      %v1580 = vrot.slane %v1151, 6
      %v1581 = vrot.slane %v1153, 6
      %v1582 = vrot.slane %v1155, 6
      %v1583 = vrot.slane %v1157, 6
      %v1584 = vrot.slane %v1159, 6
      %v1585 = vrot.slane %v1161, 6
      %v1586 = vrot.slane %v1163, 6
      %v1587 = vrot.slane %v1165, 6
      %v1588 = vrot.slane %v1167, 6
      %v1589 = vrot.slane %v1169, 6
      %v1590 = vrot.slane %v1171, 6
      %v1591 = vrot.slane %v1173, 6
      %v1592 = vrot.slane %v1175, 6
      %v1593 = vrot.slane %v1177, 6
      %v1594 = vrot.slane %v1148, 6
      %v1595 = vrot.slane %v1150, 6
      %v1596 = vrot.slane %v1152, 6
      %v1597 = vrot.slane %v1154, 6
      %v1598 = vrot.slane %v1156, 6
      %v1599 = vrot.slane %v1158, 6
      %v1600 = vrot.slane %v1160, 6
      %v1601 = vrot.slane %v1162, 6
      %v1602 = vrot.slane %v1164, 6
      %v1603 = vrot.slane %v1166, 6
      %v1604 = vrot.slane %v1168, 6
      %v1605 = vrot.slane %v1170, 6
      %v1606 = vrot.slane %v1172, 6
      %v1607 = vrot.slane %v1174, 6
      %v1608 = vrot.slane %v1176, 6
      %v1609 = vrot.slane %v1178, 6
      %vm1610 = vcmp.lt.s32.totalorder %v291, 2
      %v1611 = vsel %vm1610, %v1578, %v1594
      %v1612 = vsel %vm1610, %v1579, %v1595
      %v1613 = vsel %vm1610, %v1580, %v1596
      %v1614 = vsel %vm1610, %v1581, %v1597
      %v1615 = vsel %vm1610, %v1582, %v1598
      %v1616 = vsel %vm1610, %v1583, %v1599
      %v1617 = vsel %vm1610, %v1584, %v1600
      %v1618 = vsel %vm1610, %v1585, %v1601
      %v1619 = vsel %vm1610, %v1586, %v1602
      %v1620 = vsel %vm1610, %v1587, %v1603
      %v1621 = vsel %vm1610, %v1588, %v1604
      %v1622 = vsel %vm1610, %v1589, %v1605
      %v1623 = vsel %vm1610, %v1590, %v1606
      %v1624 = vsel %vm1610, %v1591, %v1607
      %v1625 = vsel %vm1610, %v1592, %v1608
      %v1626 = vsel %vm1610, %v1593, %v1609
      %v1627 = vsel %vm1610, %v1594, %v1578
      %v1628 = vsel %vm1610, %v1595, %v1579
      %v1629 = vsel %vm1610, %v1596, %v1580
      %v1630 = vsel %vm1610, %v1597, %v1581
      %v1631 = vsel %vm1610, %v1598, %v1582
      %v1632 = vsel %vm1610, %v1599, %v1583
      %v1633 = vsel %vm1610, %v1600, %v1584
      %v1634 = vsel %vm1610, %v1601, %v1585
      %v1635 = vsel %vm1610, %v1602, %v1586
      %v1636 = vsel %vm1610, %v1603, %v1587
      %v1637 = vsel %vm1610, %v1604, %v1588
      %v1638 = vsel %vm1610, %v1605, %v1589
      %v1639 = vsel %vm1610, %v1606, %v1590
      %v1640 = vsel %vm1610, %v1607, %v1591
      %v1641 = vsel %vm1610, %v1608, %v1592
      %v1642 = vsel %vm1610, %v1609, %v1593
      %v1643 = vsel %vm299, 1, 0
      %v1644 = vsel %vm300, 1, 0
      %vm1645 = vcmp.eq.s32.totalorder %v1643, 1
      %vm1646 = vcmp.eq.s32.totalorder %v1644, 1
      %v1647 = vsel %vm1645, %v1627, -inf
      %v1648 = vsel %vm1646, %v1611, -inf
      %v1649 = vsel %vm1645, %v1628, -inf
      %v1650 = vsel %vm1646, %v1612, -inf
      %v1651 = vsel %vm1645, %v1629, -inf
      %v1652 = vsel %vm1646, %v1613, -inf
      %v1653 = vsel %vm1645, %v1630, -inf
      %v1654 = vsel %vm1646, %v1614, -inf
      %v1655 = vsel %vm1645, %v1631, -inf
      %v1656 = vsel %vm1646, %v1615, -inf
      %v1657 = vsel %vm1645, %v1632, -inf
      %v1658 = vsel %vm1646, %v1616, -inf
      %v1659 = vsel %vm1645, %v1633, -inf
      %v1660 = vsel %vm1646, %v1617, -inf
      %v1661 = vsel %vm1645, %v1634, -inf
      %v1662 = vsel %vm1646, %v1618, -inf
      %v1663 = vsel %vm1645, %v1635, -inf
      %v1664 = vsel %vm1646, %v1619, -inf
      %v1665 = vsel %vm1645, %v1636, -inf
      %v1666 = vsel %vm1646, %v1620, -inf
      %v1667 = vsel %vm1645, %v1637, -inf
      %v1668 = vsel %vm1646, %v1621, -inf
      %v1669 = vsel %vm1645, %v1638, -inf
      %v1670 = vsel %vm1646, %v1622, -inf
      %v1671 = vsel %vm1645, %v1639, -inf
      %v1672 = vsel %vm1646, %v1623, -inf
      %v1673 = vsel %vm1645, %v1640, -inf
      %v1674 = vsel %vm1646, %v1624, -inf
      %v1675 = vsel %vm1645, %v1641, -inf
      %v1676 = vsel %vm1646, %v1625, -inf
      %v1677 = vsel %vm1645, %v1642, -inf
      %v1678 = vsel %vm1646, %v1626, -inf
      %v1679 = vmax.f32 %v1546, %v1647
      %v1680 = vmax.f32 %v1547, %v1648
      %v1681 = vmax.f32 %v1548, %v1649
      %v1682 = vmax.f32 %v1549, %v1650
      %v1683 = vmax.f32 %v1550, %v1651
      %v1684 = vmax.f32 %v1551, %v1652
      %v1685 = vmax.f32 %v1552, %v1653
      %v1686 = vmax.f32 %v1553, %v1654
      %v1687 = vmax.f32 %v1554, %v1655
      %v1688 = vmax.f32 %v1555, %v1656
      %v1689 = vmax.f32 %v1556, %v1657
      %v1690 = vmax.f32 %v1557, %v1658
      %v1691 = vmax.f32 %v1558, %v1659
      %v1692 = vmax.f32 %v1559, %v1660
      %v1693 = vmax.f32 %v1560, %v1661
      %v1694 = vmax.f32 %v1561, %v1662
      %v1695 = vmax.f32 %v1562, %v1663
      %v1696 = vmax.f32 %v1563, %v1664
      %v1697 = vmax.f32 %v1564, %v1665
      %v1698 = vmax.f32 %v1565, %v1666
      %v1699 = vmax.f32 %v1566, %v1667
      %v1700 = vmax.f32 %v1567, %v1668
      %v1701 = vmax.f32 %v1568, %v1669
      %v1702 = vmax.f32 %v1569, %v1670
      %v1703 = vmax.f32 %v1570, %v1671
      %v1704 = vmax.f32 %v1571, %v1672
      %v1705 = vmax.f32 %v1572, %v1673
      %v1706 = vmax.f32 %v1573, %v1674
      %v1707 = vmax.f32 %v1574, %v1675
      %v1708 = vmax.f32 %v1575, %v1676
      %v1709 = vmax.f32 %v1576, %v1677
      %v1710 = vmax.f32 %v1577, %v1678
      %1711 = vst.msk [vmem:[%s855] sm:$0xff] %vm280, %v1679
      %1712 = vst.msk [vmem:[%s855 + $0x8] sm:$0xff] %vm280, %v1680
      %1713 = vst.msk [vmem:[%s855 + $0x10] sm:$0xff] %vm280, %v1681
      %1714 = vst.msk [vmem:[%s855 + $0x18] sm:$0xff] %vm280, %v1682
      %1715 = vst.msk [vmem:[%s855 + $0x20] sm:$0xff] %vm280, %v1683
      %1716 = vst.msk [vmem:[%s855 + $0x28] sm:$0xff] %vm280, %v1684
      %1717 = vst.msk [vmem:[%s855 + $0x30] sm:$0xff] %vm280, %v1685
      %1718 = vst.msk [vmem:[%s855 + $0x38] sm:$0xff] %vm280, %v1686
      %1719 = vst.msk [vmem:[%s855 + $0x40] sm:$0xff] %vm280, %v1687
      %1720 = vst.msk [vmem:[%s855 + $0x48] sm:$0xff] %vm280, %v1688
      %1721 = vst.msk [vmem:[%s855 + $0x50] sm:$0xff] %vm280, %v1689
      %1722 = vst.msk [vmem:[%s855 + $0x58] sm:$0xff] %vm280, %v1690
      %1723 = vst.msk [vmem:[%s855 + $0x60] sm:$0xff] %vm280, %v1691
      %1724 = vst.msk [vmem:[%s855 + $0x68] sm:$0xff] %vm280, %v1692
      %1725 = vst.msk [vmem:[%s855 + $0x70] sm:$0xff] %vm280, %v1693
      %1726 = vst.msk [vmem:[%s855 + $0x78] sm:$0xff] %vm280, %v1694
      %1727 = vst.msk [vmem:[%s855 + $0x80] sm:$0xff] %vm280, %v1695
      %1728 = vst.msk [vmem:[%s855 + $0x88] sm:$0xff] %vm280, %v1696
      %1729 = vst.msk [vmem:[%s855 + $0x90] sm:$0xff] %vm280, %v1697
      %1730 = vst.msk [vmem:[%s855 + $0x98] sm:$0xff] %vm280, %v1698
      %1731 = vst.msk [vmem:[%s855 + $0xa0] sm:$0xff] %vm280, %v1699
      %1732 = vst.msk [vmem:[%s855 + $0xa8] sm:$0xff] %vm280, %v1700
      %1733 = vst.msk [vmem:[%s855 + $0xb0] sm:$0xff] %vm280, %v1701
      %1734 = vst.msk [vmem:[%s855 + $0xb8] sm:$0xff] %vm280, %v1702
      %1735 = vst.msk [vmem:[%s855 + $0xc0] sm:$0xff] %vm280, %v1703
      %1736 = vst.msk [vmem:[%s855 + $0xc8] sm:$0xff] %vm280, %v1704
      %1737 = vst.msk [vmem:[%s855 + $0xd0] sm:$0xff] %vm280, %v1705
      %1738 = vst.msk [vmem:[%s855 + $0xd8] sm:$0xff] %vm280, %v1706
      %1739 = vst.msk [vmem:[%s855 + $0xe0] sm:$0xff] %vm280, %v1707
      %1740 = vst.msk [vmem:[%s855 + $0xe8] sm:$0xff] %vm280, %v1708
      %1741 = vst.msk [vmem:[%s855 + $0xf0] sm:$0xff] %vm280, %v1709
      %1742 = vst.msk [vmem:[%s855 + $0xf8] sm:$0xff] %vm280, %v1710
      %v1743 = vld [vmem:[#allocation2] sm:$0xff]
      %v1744 = vld [vmem:[#allocation2 + $0x8] sm:$0xff]
      %v1745 = vld [vmem:[#allocation2 + $0x10] sm:$0xff]
      %v1746 = vld [vmem:[#allocation2 + $0x18] sm:$0xff]
      %v1747 = vld [vmem:[#allocation2 + $0x20] sm:$0xff]
      %v1748 = vld [vmem:[#allocation2 + $0x28] sm:$0xff]
      %v1749 = vld [vmem:[#allocation2 + $0x30] sm:$0xff]
      %v1750 = vld [vmem:[#allocation2 + $0x38] sm:$0xff]
      %v1751 = vld [vmem:[#allocation2 + $0x40] sm:$0xff]
      %v1752 = vld [vmem:[#allocation2 + $0x48] sm:$0xff]
      %v1753 = vld [vmem:[#allocation2 + $0x50] sm:$0xff]
      %v1754 = vld [vmem:[#allocation2 + $0x58] sm:$0xff]
      %v1755 = vld [vmem:[#allocation2 + $0x60] sm:$0xff]
      %v1756 = vld [vmem:[#allocation2 + $0x68] sm:$0xff]
      %v1757 = vld [vmem:[#allocation2 + $0x70] sm:$0xff]
      %v1758 = vld [vmem:[#allocation2 + $0x78] sm:$0xff]
      %v1759 = vld [vmem:[#allocation2 + $0x80] sm:$0xff]
      %v1760 = vld [vmem:[#allocation2 + $0x88] sm:$0xff]
      %v1761 = vld [vmem:[#allocation2 + $0x90] sm:$0xff]
      %v1762 = vld [vmem:[#allocation2 + $0x98] sm:$0xff]
      %v1763 = vld [vmem:[#allocation2 + $0xa0] sm:$0xff]
      %v1764 = vld [vmem:[#allocation2 + $0xa8] sm:$0xff]
      %v1765 = vld [vmem:[#allocation2 + $0xb0] sm:$0xff]
      %v1766 = vld [vmem:[#allocation2 + $0xb8] sm:$0xff]
      %v1767 = vld [vmem:[#allocation2 + $0xc0] sm:$0xff]
      %v1768 = vld [vmem:[#allocation2 + $0xc8] sm:$0xff]
      %v1769 = vld [vmem:[#allocation2 + $0xd0] sm:$0xff]
      %v1770 = vld [vmem:[#allocation2 + $0xd8] sm:$0xff]
      %v1771 = vld [vmem:[#allocation2 + $0xe0] sm:$0xff]
      %v1772 = vld [vmem:[#allocation2 + $0xe8] sm:$0xff]
      %v1773 = vld [vmem:[#allocation2 + $0xf0] sm:$0xff]
      %v1774 = vld [vmem:[#allocation2 + $0xf8] sm:$0xff]
      %v1775 = vld [vmem:[%s920] sm:$0xff]
      %v1776 = vld [vmem:[%s920 + $0x8] sm:$0xff]
      %v1777 = vld [vmem:[%s920 + $0x10] sm:$0xff]
      %v1778 = vld [vmem:[%s920 + $0x18] sm:$0xff]
      %v1779 = vld [vmem:[%s920 + $0x20] sm:$0xff]
      %v1780 = vld [vmem:[%s920 + $0x28] sm:$0xff]
      %v1781 = vld [vmem:[%s920 + $0x30] sm:$0xff]
      %v1782 = vld [vmem:[%s920 + $0x38] sm:$0xff]
      %v1783 = vld [vmem:[%s920 + $0x40] sm:$0xff]
      %v1784 = vld [vmem:[%s920 + $0x48] sm:$0xff]
      %v1785 = vld [vmem:[%s920 + $0x50] sm:$0xff]
      %v1786 = vld [vmem:[%s920 + $0x58] sm:$0xff]
      %v1787 = vld [vmem:[%s920 + $0x60] sm:$0xff]
      %v1788 = vld [vmem:[%s920 + $0x68] sm:$0xff]
      %v1789 = vld [vmem:[%s920 + $0x70] sm:$0xff]
      %v1790 = vld [vmem:[%s920 + $0x78] sm:$0xff]
      %v1791 = vld [vmem:[%s920 + $0x80] sm:$0xff]
      %v1792 = vld [vmem:[%s920 + $0x88] sm:$0xff]
      %v1793 = vld [vmem:[%s920 + $0x90] sm:$0xff]
      %v1794 = vld [vmem:[%s920 + $0x98] sm:$0xff]
      %v1795 = vld [vmem:[%s920 + $0xa0] sm:$0xff]
      %v1796 = vld [vmem:[%s920 + $0xa8] sm:$0xff]
      %v1797 = vld [vmem:[%s920 + $0xb0] sm:$0xff]
      %v1798 = vld [vmem:[%s920 + $0xb8] sm:$0xff]
      %v1799 = vld [vmem:[%s920 + $0xc0] sm:$0xff]
      %v1800 = vld [vmem:[%s920 + $0xc8] sm:$0xff]
      %v1801 = vld [vmem:[%s920 + $0xd0] sm:$0xff]
      %v1802 = vld [vmem:[%s920 + $0xd8] sm:$0xff]
      %v1803 = vld [vmem:[%s920 + $0xe0] sm:$0xff]
      %v1804 = vld [vmem:[%s920 + $0xe8] sm:$0xff]
      %v1805 = vld [vmem:[%s920 + $0xf0] sm:$0xff]
      %v1806 = vld [vmem:[%s920 + $0xf8] sm:$0xff]
      %v1807 = vmax.f32 %v1743, %v1775
      %v1808 = vmax.f32 %v1744, %v1776
      %v1809 = vmax.f32 %v1745, %v1777
      %v1810 = vmax.f32 %v1746, %v1778
      %v1811 = vmax.f32 %v1747, %v1779
      %v1812 = vmax.f32 %v1748, %v1780
      %v1813 = vmax.f32 %v1749, %v1781
      %v1814 = vmax.f32 %v1750, %v1782
      %v1815 = vmax.f32 %v1751, %v1783
      %v1816 = vmax.f32 %v1752, %v1784
      %v1817 = vmax.f32 %v1753, %v1785
      %v1818 = vmax.f32 %v1754, %v1786
      %v1819 = vmax.f32 %v1755, %v1787
      %v1820 = vmax.f32 %v1756, %v1788
      %v1821 = vmax.f32 %v1757, %v1789
      %v1822 = vmax.f32 %v1758, %v1790
      %v1823 = vmax.f32 %v1759, %v1791
      %v1824 = vmax.f32 %v1760, %v1792
      %v1825 = vmax.f32 %v1761, %v1793
      %v1826 = vmax.f32 %v1762, %v1794
      %v1827 = vmax.f32 %v1763, %v1795
      %v1828 = vmax.f32 %v1764, %v1796
      %v1829 = vmax.f32 %v1765, %v1797
      %v1830 = vmax.f32 %v1766, %v1798
      %v1831 = vmax.f32 %v1767, %v1799
      %v1832 = vmax.f32 %v1768, %v1800
      %v1833 = vmax.f32 %v1769, %v1801
      %v1834 = vmax.f32 %v1770, %v1802
      %v1835 = vmax.f32 %v1771, %v1803
      %v1836 = vmax.f32 %v1772, %v1804
      %v1837 = vmax.f32 %v1773, %v1805
      %v1838 = vmax.f32 %v1774, %v1806
      %v1839 = vld [vmem:[%s855] sm:$0xff]
      %v1840 = vld [vmem:[%s855 + $0x8] sm:$0xff]
      %v1841 = vld [vmem:[%s855 + $0x10] sm:$0xff]
      %v1842 = vld [vmem:[%s855 + $0x18] sm:$0xff]
      %v1843 = vld [vmem:[%s855 + $0x20] sm:$0xff]
      %v1844 = vld [vmem:[%s855 + $0x28] sm:$0xff]
      %v1845 = vld [vmem:[%s855 + $0x30] sm:$0xff]
      %v1846 = vld [vmem:[%s855 + $0x38] sm:$0xff]
      %v1847 = vld [vmem:[%s855 + $0x40] sm:$0xff]
      %v1848 = vld [vmem:[%s855 + $0x48] sm:$0xff]
      %v1849 = vld [vmem:[%s855 + $0x50] sm:$0xff]
      %v1850 = vld [vmem:[%s855 + $0x58] sm:$0xff]
      %v1851 = vld [vmem:[%s855 + $0x60] sm:$0xff]
      %v1852 = vld [vmem:[%s855 + $0x68] sm:$0xff]
      %v1853 = vld [vmem:[%s855 + $0x70] sm:$0xff]
      %v1854 = vld [vmem:[%s855 + $0x78] sm:$0xff]
      %v1855 = vld [vmem:[%s855 + $0x80] sm:$0xff]
      %v1856 = vld [vmem:[%s855 + $0x88] sm:$0xff]
      %v1857 = vld [vmem:[%s855 + $0x90] sm:$0xff]
      %v1858 = vld [vmem:[%s855 + $0x98] sm:$0xff]
      %v1859 = vld [vmem:[%s855 + $0xa0] sm:$0xff]
      %v1860 = vld [vmem:[%s855 + $0xa8] sm:$0xff]
      %v1861 = vld [vmem:[%s855 + $0xb0] sm:$0xff]
      %v1862 = vld [vmem:[%s855 + $0xb8] sm:$0xff]
      %v1863 = vld [vmem:[%s855 + $0xc0] sm:$0xff]
      %v1864 = vld [vmem:[%s855 + $0xc8] sm:$0xff]
      %v1865 = vld [vmem:[%s855 + $0xd0] sm:$0xff]
      %v1866 = vld [vmem:[%s855 + $0xd8] sm:$0xff]
      %v1867 = vld [vmem:[%s855 + $0xe0] sm:$0xff]
      %v1868 = vld [vmem:[%s855 + $0xe8] sm:$0xff]
      %v1869 = vld [vmem:[%s855 + $0xf0] sm:$0xff]
      %v1870 = vld [vmem:[%s855 + $0xf8] sm:$0xff]
      %v1871 = vmax.f32 %v1807, %v1839
      %v1872 = vmax.f32 %v1808, %v1840
      %v1873 = vmax.f32 %v1809, %v1841
      %v1874 = vmax.f32 %v1810, %v1842
      %v1875 = vmax.f32 %v1811, %v1843
      %v1876 = vmax.f32 %v1812, %v1844
      %v1877 = vmax.f32 %v1813, %v1845
      %v1878 = vmax.f32 %v1814, %v1846
      %v1879 = vmax.f32 %v1815, %v1847
      %v1880 = vmax.f32 %v1816, %v1848
      %v1881 = vmax.f32 %v1817, %v1849
      %v1882 = vmax.f32 %v1818, %v1850
      %v1883 = vmax.f32 %v1819, %v1851
      %v1884 = vmax.f32 %v1820, %v1852
      %v1885 = vmax.f32 %v1821, %v1853
      %v1886 = vmax.f32 %v1822, %v1854
      %v1887 = vmax.f32 %v1823, %v1855
      %v1888 = vmax.f32 %v1824, %v1856
      %v1889 = vmax.f32 %v1825, %v1857
      %v1890 = vmax.f32 %v1826, %v1858
      %v1891 = vmax.f32 %v1827, %v1859
      %v1892 = vmax.f32 %v1828, %v1860
      %v1893 = vmax.f32 %v1829, %v1861
      %v1894 = vmax.f32 %v1830, %v1862
      %v1895 = vmax.f32 %v1831, %v1863
      %v1896 = vmax.f32 %v1832, %v1864
      %v1897 = vmax.f32 %v1833, %v1865
      %v1898 = vmax.f32 %v1834, %v1866
      %v1899 = vmax.f32 %v1835, %v1867
      %v1900 = vmax.f32 %v1836, %v1868
      %v1901 = vmax.f32 %v1837, %v1869
      %v1902 = vmax.f32 %v1838, %v1870
      %v1903 = vld [vmem:[%s1049] sm:$0xff]
      %v1904 = vld [vmem:[%s1049 + $0x8] sm:$0xff]
      %v1905 = vld [vmem:[%s1049 + $0x10] sm:$0xff]
      %v1906 = vld [vmem:[%s1049 + $0x18] sm:$0xff]
      %v1907 = vld [vmem:[%s1049 + $0x20] sm:$0xff]
      %v1908 = vld [vmem:[%s1049 + $0x28] sm:$0xff]
      %v1909 = vld [vmem:[%s1049 + $0x30] sm:$0xff]
      %v1910 = vld [vmem:[%s1049 + $0x38] sm:$0xff]
      %v1911 = vld [vmem:[%s1049 + $0x40] sm:$0xff]
      %v1912 = vld [vmem:[%s1049 + $0x48] sm:$0xff]
      %v1913 = vld [vmem:[%s1049 + $0x50] sm:$0xff]
      %v1914 = vld [vmem:[%s1049 + $0x58] sm:$0xff]
      %v1915 = vld [vmem:[%s1049 + $0x60] sm:$0xff]
      %v1916 = vld [vmem:[%s1049 + $0x68] sm:$0xff]
      %v1917 = vld [vmem:[%s1049 + $0x70] sm:$0xff]
      %v1918 = vld [vmem:[%s1049 + $0x78] sm:$0xff]
      %v1919 = vld [vmem:[%s1049 + $0x80] sm:$0xff]
      %v1920 = vld [vmem:[%s1049 + $0x88] sm:$0xff]
      %v1921 = vld [vmem:[%s1049 + $0x90] sm:$0xff]
      %v1922 = vld [vmem:[%s1049 + $0x98] sm:$0xff]
      %v1923 = vld [vmem:[%s1049 + $0xa0] sm:$0xff]
      %v1924 = vld [vmem:[%s1049 + $0xa8] sm:$0xff]
      %v1925 = vld [vmem:[%s1049 + $0xb0] sm:$0xff]
      %v1926 = vld [vmem:[%s1049 + $0xb8] sm:$0xff]
      %v1927 = vld [vmem:[%s1049 + $0xc0] sm:$0xff]
      %v1928 = vld [vmem:[%s1049 + $0xc8] sm:$0xff]
      %v1929 = vld [vmem:[%s1049 + $0xd0] sm:$0xff]
      %v1930 = vld [vmem:[%s1049 + $0xd8] sm:$0xff]
      %v1931 = vld [vmem:[%s1049 + $0xe0] sm:$0xff]
      %v1932 = vld [vmem:[%s1049 + $0xe8] sm:$0xff]
      %v1933 = vld [vmem:[%s1049 + $0xf0] sm:$0xff]
      %v1934 = vld [vmem:[%s1049 + $0xf8] sm:$0xff]
      %v1935 = vmax.f32 %v1871, %v1903
      %v1936 = vmax.f32 %v1872, %v1904
      %v1937 = vmax.f32 %v1873, %v1905
      %v1938 = vmax.f32 %v1874, %v1906
      %v1939 = vmax.f32 %v1875, %v1907
      %v1940 = vmax.f32 %v1876, %v1908
      %v1941 = vmax.f32 %v1877, %v1909
      %v1942 = vmax.f32 %v1878, %v1910
      %v1943 = vmax.f32 %v1879, %v1911
      %v1944 = vmax.f32 %v1880, %v1912
      %v1945 = vmax.f32 %v1881, %v1913
      %v1946 = vmax.f32 %v1882, %v1914
      %v1947 = vmax.f32 %v1883, %v1915
      %v1948 = vmax.f32 %v1884, %v1916
      %v1949 = vmax.f32 %v1885, %v1917
      %v1950 = vmax.f32 %v1886, %v1918
      %v1951 = vmax.f32 %v1887, %v1919
      %v1952 = vmax.f32 %v1888, %v1920
      %v1953 = vmax.f32 %v1889, %v1921
      %v1954 = vmax.f32 %v1890, %v1922
      %v1955 = vmax.f32 %v1891, %v1923
      %v1956 = vmax.f32 %v1892, %v1924
      %v1957 = vmax.f32 %v1893, %v1925
      %v1958 = vmax.f32 %v1894, %v1926
      %v1959 = vmax.f32 %v1895, %v1927
      %v1960 = vmax.f32 %v1896, %v1928
      %v1961 = vmax.f32 %v1897, %v1929
      %v1962 = vmax.f32 %v1898, %v1930
      %v1963 = vmax.f32 %v1899, %v1931
      %v1964 = vmax.f32 %v1900, %v1932
      %v1965 = vmax.f32 %v1901, %v1933
      %v1966 = vmax.f32 %v1902, %v1934
      %v1967 = vld [vmem:[%s1114] sm:$0xff]
      %v1968 = vld [vmem:[%s1114 + $0x8] sm:$0xff]
      %v1969 = vld [vmem:[%s1114 + $0x10] sm:$0xff]
      %v1970 = vld [vmem:[%s1114 + $0x18] sm:$0xff]
      %v1971 = vld [vmem:[%s1114 + $0x20] sm:$0xff]
      %v1972 = vld [vmem:[%s1114 + $0x28] sm:$0xff]
      %v1973 = vld [vmem:[%s1114 + $0x30] sm:$0xff]
      %v1974 = vld [vmem:[%s1114 + $0x38] sm:$0xff]
      %v1975 = vld [vmem:[%s1114 + $0x40] sm:$0xff]
      %v1976 = vld [vmem:[%s1114 + $0x48] sm:$0xff]
      %v1977 = vld [vmem:[%s1114 + $0x50] sm:$0xff]
      %v1978 = vld [vmem:[%s1114 + $0x58] sm:$0xff]
      %v1979 = vld [vmem:[%s1114 + $0x60] sm:$0xff]
      %v1980 = vld [vmem:[%s1114 + $0x68] sm:$0xff]
      %v1981 = vld [vmem:[%s1114 + $0x70] sm:$0xff]
      %v1982 = vld [vmem:[%s1114 + $0x78] sm:$0xff]
      %v1983 = vld [vmem:[%s1114 + $0x80] sm:$0xff]
      %v1984 = vld [vmem:[%s1114 + $0x88] sm:$0xff]
      %v1985 = vld [vmem:[%s1114 + $0x90] sm:$0xff]
      %v1986 = vld [vmem:[%s1114 + $0x98] sm:$0xff]
      %v1987 = vld [vmem:[%s1114 + $0xa0] sm:$0xff]
      %v1988 = vld [vmem:[%s1114 + $0xa8] sm:$0xff]
      %v1989 = vld [vmem:[%s1114 + $0xb0] sm:$0xff]
      %v1990 = vld [vmem:[%s1114 + $0xb8] sm:$0xff]
      %v1991 = vld [vmem:[%s1114 + $0xc0] sm:$0xff]
      %v1992 = vld [vmem:[%s1114 + $0xc8] sm:$0xff]
      %v1993 = vld [vmem:[%s1114 + $0xd0] sm:$0xff]
      %v1994 = vld [vmem:[%s1114 + $0xd8] sm:$0xff]
      %v1995 = vld [vmem:[%s1114 + $0xe0] sm:$0xff]
      %v1996 = vld [vmem:[%s1114 + $0xe8] sm:$0xff]
      %v1997 = vld [vmem:[%s1114 + $0xf0] sm:$0xff]
      %v1998 = vld [vmem:[%s1114 + $0xf8] sm:$0xff]
      %v1999 = vmax.f32 %v1935, %v1967
      %v2000 = vmax.f32 %v1936, %v1968
      %v2001 = vmax.f32 %v1937, %v1969
      %v2002 = vmax.f32 %v1938, %v1970
      %v2003 = vmax.f32 %v1939, %v1971
      %v2004 = vmax.f32 %v1940, %v1972
      %v2005 = vmax.f32 %v1941, %v1973
      %v2006 = vmax.f32 %v1942, %v1974
      %v2007 = vmax.f32 %v1943, %v1975
      %v2008 = vmax.f32 %v1944, %v1976
      %v2009 = vmax.f32 %v1945, %v1977
      %v2010 = vmax.f32 %v1946, %v1978
      %v2011 = vmax.f32 %v1947, %v1979
      %v2012 = vmax.f32 %v1948, %v1980
      %v2013 = vmax.f32 %v1949, %v1981
      %v2014 = vmax.f32 %v1950, %v1982
      %v2015 = vmax.f32 %v1951, %v1983
      %v2016 = vmax.f32 %v1952, %v1984
      %v2017 = vmax.f32 %v1953, %v1985
      %v2018 = vmax.f32 %v1954, %v1986
      %v2019 = vmax.f32 %v1955, %v1987
      %v2020 = vmax.f32 %v1956, %v1988
      %v2021 = vmax.f32 %v1957, %v1989
      %v2022 = vmax.f32 %v1958, %v1990
      %v2023 = vmax.f32 %v1959, %v1991
      %v2024 = vmax.f32 %v1960, %v1992
      %v2025 = vmax.f32 %v1961, %v1993
      %v2026 = vmax.f32 %v1962, %v1994
      %v2027 = vmax.f32 %v1963, %v1995
      %v2028 = vmax.f32 %v1964, %v1996
      %v2029 = vmax.f32 %v1965, %v1997
      %v2030 = vmax.f32 %v1966, %v1998
      %v2031 = vrot.slane %v1999, 1
      %v2032 = vrot.slane %v2001, 1
      %v2033 = vrot.slane %v2003, 1
      %v2034 = vrot.slane %v2005, 1
      %v2035 = vrot.slane %v2007, 1
      %v2036 = vrot.slane %v2009, 1
      %v2037 = vrot.slane %v2011, 1
      %v2038 = vrot.slane %v2013, 1
      %v2039 = vrot.slane %v2015, 1
      %v2040 = vrot.slane %v2017, 1
      %v2041 = vrot.slane %v2019, 1
      %v2042 = vrot.slane %v2021, 1
      %v2043 = vrot.slane %v2023, 1
      %v2044 = vrot.slane %v2025, 1
      %v2045 = vrot.slane %v2027, 1
      %v2046 = vrot.slane %v2029, 1
      %v2047 = vrot.slane %v2000, 1
      %v2048 = vrot.slane %v2002, 1
      %v2049 = vrot.slane %v2004, 1
      %v2050 = vrot.slane %v2006, 1
      %v2051 = vrot.slane %v2008, 1
      %v2052 = vrot.slane %v2010, 1
      %v2053 = vrot.slane %v2012, 1
      %v2054 = vrot.slane %v2014, 1
      %v2055 = vrot.slane %v2016, 1
      %v2056 = vrot.slane %v2018, 1
      %v2057 = vrot.slane %v2020, 1
      %v2058 = vrot.slane %v2022, 1
      %v2059 = vrot.slane %v2024, 1
      %v2060 = vrot.slane %v2026, 1
      %v2061 = vrot.slane %v2028, 1
      %v2062 = vrot.slane %v2030, 1
      %v2063 = vsel %vm1211, %v2031, %v2047
      %v2064 = vsel %vm1211, %v2032, %v2048
      %v2065 = vsel %vm1211, %v2033, %v2049
      %v2066 = vsel %vm1211, %v2034, %v2050
      %v2067 = vsel %vm1211, %v2035, %v2051
      %v2068 = vsel %vm1211, %v2036, %v2052
      %v2069 = vsel %vm1211, %v2037, %v2053
      %v2070 = vsel %vm1211, %v2038, %v2054
      %v2071 = vsel %vm1211, %v2039, %v2055
      %v2072 = vsel %vm1211, %v2040, %v2056
      %v2073 = vsel %vm1211, %v2041, %v2057
      %v2074 = vsel %vm1211, %v2042, %v2058
      %v2075 = vsel %vm1211, %v2043, %v2059
      %v2076 = vsel %vm1211, %v2044, %v2060
      %v2077 = vsel %vm1211, %v2045, %v2061
      %v2078 = vsel %vm1211, %v2046, %v2062
      %v2079 = vsel %vm1211, %v2047, %v2031
      %v2080 = vsel %vm1211, %v2048, %v2032
      %v2081 = vsel %vm1211, %v2049, %v2033
      %v2082 = vsel %vm1211, %v2050, %v2034
      %v2083 = vsel %vm1211, %v2051, %v2035
      %v2084 = vsel %vm1211, %v2052, %v2036
      %v2085 = vsel %vm1211, %v2053, %v2037
      %v2086 = vsel %vm1211, %v2054, %v2038
      %v2087 = vsel %vm1211, %v2055, %v2039
      %v2088 = vsel %vm1211, %v2056, %v2040
      %v2089 = vsel %vm1211, %v2057, %v2041
      %v2090 = vsel %vm1211, %v2058, %v2042
      %v2091 = vsel %vm1211, %v2059, %v2043
      %v2092 = vsel %vm1211, %v2060, %v2044
      %v2093 = vsel %vm1211, %v2061, %v2045
      %v2094 = vsel %vm1211, %v2062, %v2046
      %v2095 = vsel %vm1246, %v2063, -inf
      %v2096 = vsel %vm1247, %v2079, -inf
      %v2097 = vsel %vm1246, %v2064, -inf
      %v2098 = vsel %vm1247, %v2080, -inf
      %v2099 = vsel %vm1246, %v2065, -inf
      %v2100 = vsel %vm1247, %v2081, -inf
      %v2101 = vsel %vm1246, %v2066, -inf
      %v2102 = vsel %vm1247, %v2082, -inf
      %v2103 = vsel %vm1246, %v2067, -inf
      %v2104 = vsel %vm1247, %v2083, -inf
      %v2105 = vsel %vm1246, %v2068, -inf
      %v2106 = vsel %vm1247, %v2084, -inf
      %v2107 = vsel %vm1246, %v2069, -inf
      %v2108 = vsel %vm1247, %v2085, -inf
      %v2109 = vsel %vm1246, %v2070, -inf
      %v2110 = vsel %vm1247, %v2086, -inf
      %v2111 = vsel %vm1246, %v2071, -inf
      %v2112 = vsel %vm1247, %v2087, -inf
      %v2113 = vsel %vm1246, %v2072, -inf
      %v2114 = vsel %vm1247, %v2088, -inf
      %v2115 = vsel %vm1246, %v2073, -inf
      %v2116 = vsel %vm1247, %v2089, -inf
      %v2117 = vsel %vm1246, %v2074, -inf
      %v2118 = vsel %vm1247, %v2090, -inf
      %v2119 = vsel %vm1246, %v2075, -inf
      %v2120 = vsel %vm1247, %v2091, -inf
      %v2121 = vsel %vm1246, %v2076, -inf
      %v2122 = vsel %vm1247, %v2092, -inf
      %v2123 = vsel %vm1246, %v2077, -inf
      %v2124 = vsel %vm1247, %v2093, -inf
      %v2125 = vsel %vm1246, %v2078, -inf
      %v2126 = vsel %vm1247, %v2094, -inf
      %v2127 = vmax.f32 %v1999, %v2095
      %v2128 = vmax.f32 %v2000, %v2096
      %v2129 = vmax.f32 %v2001, %v2097
      %v2130 = vmax.f32 %v2002, %v2098
      %v2131 = vmax.f32 %v2003, %v2099
      %v2132 = vmax.f32 %v2004, %v2100
      %v2133 = vmax.f32 %v2005, %v2101
      %v2134 = vmax.f32 %v2006, %v2102
      %v2135 = vmax.f32 %v2007, %v2103
      %v2136 = vmax.f32 %v2008, %v2104
      %v2137 = vmax.f32 %v2009, %v2105
      %v2138 = vmax.f32 %v2010, %v2106
      %v2139 = vmax.f32 %v2011, %v2107
      %v2140 = vmax.f32 %v2012, %v2108
      %v2141 = vmax.f32 %v2013, %v2109
      %v2142 = vmax.f32 %v2014, %v2110
      %v2143 = vmax.f32 %v2015, %v2111
      %v2144 = vmax.f32 %v2016, %v2112
      %v2145 = vmax.f32 %v2017, %v2113
      %v2146 = vmax.f32 %v2018, %v2114
      %v2147 = vmax.f32 %v2019, %v2115
      %v2148 = vmax.f32 %v2020, %v2116
      %v2149 = vmax.f32 %v2021, %v2117
      %v2150 = vmax.f32 %v2022, %v2118
      %v2151 = vmax.f32 %v2023, %v2119
      %v2152 = vmax.f32 %v2024, %v2120
      %v2153 = vmax.f32 %v2025, %v2121
      %v2154 = vmax.f32 %v2026, %v2122
      %v2155 = vmax.f32 %v2027, %v2123
      %v2156 = vmax.f32 %v2028, %v2124
      %v2157 = vmax.f32 %v2029, %v2125
      %v2158 = vmax.f32 %v2030, %v2126
      %v2159 = vrot.slane %v1999, 2
      %v2160 = vrot.slane %v2001, 2
      %v2161 = vrot.slane %v2003, 2
      %v2162 = vrot.slane %v2005, 2
      %v2163 = vrot.slane %v2007, 2
      %v2164 = vrot.slane %v2009, 2
      %v2165 = vrot.slane %v2011, 2
      %v2166 = vrot.slane %v2013, 2
      %v2167 = vrot.slane %v2015, 2
      %v2168 = vrot.slane %v2017, 2
      %v2169 = vrot.slane %v2019, 2
      %v2170 = vrot.slane %v2021, 2
      %v2171 = vrot.slane %v2023, 2
      %v2172 = vrot.slane %v2025, 2
      %v2173 = vrot.slane %v2027, 2
      %v2174 = vrot.slane %v2029, 2
      %v2175 = vrot.slane %v2000, 2
      %v2176 = vrot.slane %v2002, 2
      %v2177 = vrot.slane %v2004, 2
      %v2178 = vrot.slane %v2006, 2
      %v2179 = vrot.slane %v2008, 2
      %v2180 = vrot.slane %v2010, 2
      %v2181 = vrot.slane %v2012, 2
      %v2182 = vrot.slane %v2014, 2
      %v2183 = vrot.slane %v2016, 2
      %v2184 = vrot.slane %v2018, 2
      %v2185 = vrot.slane %v2020, 2
      %v2186 = vrot.slane %v2022, 2
      %v2187 = vrot.slane %v2024, 2
      %v2188 = vrot.slane %v2026, 2
      %v2189 = vrot.slane %v2028, 2
      %v2190 = vrot.slane %v2030, 2
      %v2191 = vsel %vm1344, %v2159, %v2175
      %v2192 = vsel %vm1344, %v2160, %v2176
      %v2193 = vsel %vm1344, %v2161, %v2177
      %v2194 = vsel %vm1344, %v2162, %v2178
      %v2195 = vsel %vm1344, %v2163, %v2179
      %v2196 = vsel %vm1344, %v2164, %v2180
      %v2197 = vsel %vm1344, %v2165, %v2181
      %v2198 = vsel %vm1344, %v2166, %v2182
      %v2199 = vsel %vm1344, %v2167, %v2183
      %v2200 = vsel %vm1344, %v2168, %v2184
      %v2201 = vsel %vm1344, %v2169, %v2185
      %v2202 = vsel %vm1344, %v2170, %v2186
      %v2203 = vsel %vm1344, %v2171, %v2187
      %v2204 = vsel %vm1344, %v2172, %v2188
      %v2205 = vsel %vm1344, %v2173, %v2189
      %v2206 = vsel %vm1344, %v2174, %v2190
      %v2207 = vsel %vm1344, %v2175, %v2159
      %v2208 = vsel %vm1344, %v2176, %v2160
      %v2209 = vsel %vm1344, %v2177, %v2161
      %v2210 = vsel %vm1344, %v2178, %v2162
      %v2211 = vsel %vm1344, %v2179, %v2163
      %v2212 = vsel %vm1344, %v2180, %v2164
      %v2213 = vsel %vm1344, %v2181, %v2165
      %v2214 = vsel %vm1344, %v2182, %v2166
      %v2215 = vsel %vm1344, %v2183, %v2167
      %v2216 = vsel %vm1344, %v2184, %v2168
      %v2217 = vsel %vm1344, %v2185, %v2169
      %v2218 = vsel %vm1344, %v2186, %v2170
      %v2219 = vsel %vm1344, %v2187, %v2171
      %v2220 = vsel %vm1344, %v2188, %v2172
      %v2221 = vsel %vm1344, %v2189, %v2173
      %v2222 = vsel %vm1344, %v2190, %v2174
      %v2223 = vsel %vm1379, %v2191, -inf
      %v2224 = vsel %vm1380, %v2207, -inf
      %v2225 = vsel %vm1379, %v2192, -inf
      %v2226 = vsel %vm1380, %v2208, -inf
      %v2227 = vsel %vm1379, %v2193, -inf
      %v2228 = vsel %vm1380, %v2209, -inf
      %v2229 = vsel %vm1379, %v2194, -inf
      %v2230 = vsel %vm1380, %v2210, -inf
      %v2231 = vsel %vm1379, %v2195, -inf
      %v2232 = vsel %vm1380, %v2211, -inf
      %v2233 = vsel %vm1379, %v2196, -inf
      %v2234 = vsel %vm1380, %v2212, -inf
      %v2235 = vsel %vm1379, %v2197, -inf
      %v2236 = vsel %vm1380, %v2213, -inf
      %v2237 = vsel %vm1379, %v2198, -inf
      %v2238 = vsel %vm1380, %v2214, -inf
      %v2239 = vsel %vm1379, %v2199, -inf
      %v2240 = vsel %vm1380, %v2215, -inf
      %v2241 = vsel %vm1379, %v2200, -inf
      %v2242 = vsel %vm1380, %v2216, -inf
      %v2243 = vsel %vm1379, %v2201, -inf
      %v2244 = vsel %vm1380, %v2217, -inf
      %v2245 = vsel %vm1379, %v2202, -inf
      %v2246 = vsel %vm1380, %v2218, -inf
      %v2247 = vsel %vm1379, %v2203, -inf
      %v2248 = vsel %vm1380, %v2219, -inf
      %v2249 = vsel %vm1379, %v2204, -inf
      %v2250 = vsel %vm1380, %v2220, -inf
      %v2251 = vsel %vm1379, %v2205, -inf
      %v2252 = vsel %vm1380, %v2221, -inf
      %v2253 = vsel %vm1379, %v2206, -inf
      %v2254 = vsel %vm1380, %v2222, -inf
      %v2255 = vmax.f32 %v2127, %v2223
      %v2256 = vmax.f32 %v2128, %v2224
      %v2257 = vmax.f32 %v2129, %v2225
      %v2258 = vmax.f32 %v2130, %v2226
      %v2259 = vmax.f32 %v2131, %v2227
      %v2260 = vmax.f32 %v2132, %v2228
      %v2261 = vmax.f32 %v2133, %v2229
      %v2262 = vmax.f32 %v2134, %v2230
      %v2263 = vmax.f32 %v2135, %v2231
      %v2264 = vmax.f32 %v2136, %v2232
      %v2265 = vmax.f32 %v2137, %v2233
      %v2266 = vmax.f32 %v2138, %v2234
      %v2267 = vmax.f32 %v2139, %v2235
      %v2268 = vmax.f32 %v2140, %v2236
      %v2269 = vmax.f32 %v2141, %v2237
      %v2270 = vmax.f32 %v2142, %v2238
      %v2271 = vmax.f32 %v2143, %v2239
      %v2272 = vmax.f32 %v2144, %v2240
      %v2273 = vmax.f32 %v2145, %v2241
      %v2274 = vmax.f32 %v2146, %v2242
      %v2275 = vmax.f32 %v2147, %v2243
      %v2276 = vmax.f32 %v2148, %v2244
      %v2277 = vmax.f32 %v2149, %v2245
      %v2278 = vmax.f32 %v2150, %v2246
      %v2279 = vmax.f32 %v2151, %v2247
      %v2280 = vmax.f32 %v2152, %v2248
      %v2281 = vmax.f32 %v2153, %v2249
      %v2282 = vmax.f32 %v2154, %v2250
      %v2283 = vmax.f32 %v2155, %v2251
      %v2284 = vmax.f32 %v2156, %v2252
      %v2285 = vmax.f32 %v2157, %v2253
      %v2286 = vmax.f32 %v2158, %v2254
      %v2287 = vrot.slane %v1999, 7
      %v2288 = vrot.slane %v2001, 7
      %v2289 = vrot.slane %v2003, 7
      %v2290 = vrot.slane %v2005, 7
      %v2291 = vrot.slane %v2007, 7
      %v2292 = vrot.slane %v2009, 7
      %v2293 = vrot.slane %v2011, 7
      %v2294 = vrot.slane %v2013, 7
      %v2295 = vrot.slane %v2015, 7
      %v2296 = vrot.slane %v2017, 7
      %v2297 = vrot.slane %v2019, 7
      %v2298 = vrot.slane %v2021, 7
      %v2299 = vrot.slane %v2023, 7
      %v2300 = vrot.slane %v2025, 7
      %v2301 = vrot.slane %v2027, 7
      %v2302 = vrot.slane %v2029, 7
      %v2303 = vrot.slane %v2000, 7
      %v2304 = vrot.slane %v2002, 7
      %v2305 = vrot.slane %v2004, 7
      %v2306 = vrot.slane %v2006, 7
      %v2307 = vrot.slane %v2008, 7
      %v2308 = vrot.slane %v2010, 7
      %v2309 = vrot.slane %v2012, 7
      %v2310 = vrot.slane %v2014, 7
      %v2311 = vrot.slane %v2016, 7
      %v2312 = vrot.slane %v2018, 7
      %v2313 = vrot.slane %v2020, 7
      %v2314 = vrot.slane %v2022, 7
      %v2315 = vrot.slane %v2024, 7
      %v2316 = vrot.slane %v2026, 7
      %v2317 = vrot.slane %v2028, 7
      %v2318 = vrot.slane %v2030, 7
      %v2319 = vsel %vm1477, %v2287, %v2303
      %v2320 = vsel %vm1477, %v2288, %v2304
      %v2321 = vsel %vm1477, %v2289, %v2305
      %v2322 = vsel %vm1477, %v2290, %v2306
      %v2323 = vsel %vm1477, %v2291, %v2307
      %v2324 = vsel %vm1477, %v2292, %v2308
      %v2325 = vsel %vm1477, %v2293, %v2309
      %v2326 = vsel %vm1477, %v2294, %v2310
      %v2327 = vsel %vm1477, %v2295, %v2311
      %v2328 = vsel %vm1477, %v2296, %v2312
      %v2329 = vsel %vm1477, %v2297, %v2313
      %v2330 = vsel %vm1477, %v2298, %v2314
      %v2331 = vsel %vm1477, %v2299, %v2315
      %v2332 = vsel %vm1477, %v2300, %v2316
      %v2333 = vsel %vm1477, %v2301, %v2317
      %v2334 = vsel %vm1477, %v2302, %v2318
      %v2335 = vsel %vm1477, %v2303, %v2287
      %v2336 = vsel %vm1477, %v2304, %v2288
      %v2337 = vsel %vm1477, %v2305, %v2289
      %v2338 = vsel %vm1477, %v2306, %v2290
      %v2339 = vsel %vm1477, %v2307, %v2291
      %v2340 = vsel %vm1477, %v2308, %v2292
      %v2341 = vsel %vm1477, %v2309, %v2293
      %v2342 = vsel %vm1477, %v2310, %v2294
      %v2343 = vsel %vm1477, %v2311, %v2295
      %v2344 = vsel %vm1477, %v2312, %v2296
      %v2345 = vsel %vm1477, %v2313, %v2297
      %v2346 = vsel %vm1477, %v2314, %v2298
      %v2347 = vsel %vm1477, %v2315, %v2299
      %v2348 = vsel %vm1477, %v2316, %v2300
      %v2349 = vsel %vm1477, %v2317, %v2301
      %v2350 = vsel %vm1477, %v2318, %v2302
      %v2351 = vsel %vm1512, %v2335, -inf
      %v2352 = vsel %vm1513, %v2319, -inf
      %v2353 = vsel %vm1512, %v2336, -inf
      %v2354 = vsel %vm1513, %v2320, -inf
      %v2355 = vsel %vm1512, %v2337, -inf
      %v2356 = vsel %vm1513, %v2321, -inf
      %v2357 = vsel %vm1512, %v2338, -inf
      %v2358 = vsel %vm1513, %v2322, -inf
      %v2359 = vsel %vm1512, %v2339, -inf
      %v2360 = vsel %vm1513, %v2323, -inf
      %v2361 = vsel %vm1512, %v2340, -inf
      %v2362 = vsel %vm1513, %v2324, -inf
      %v2363 = vsel %vm1512, %v2341, -inf
      %v2364 = vsel %vm1513, %v2325, -inf
      %v2365 = vsel %vm1512, %v2342, -inf
      %v2366 = vsel %vm1513, %v2326, -inf
      %v2367 = vsel %vm1512, %v2343, -inf
      %v2368 = vsel %vm1513, %v2327, -inf
      %v2369 = vsel %vm1512, %v2344, -inf
      %v2370 = vsel %vm1513, %v2328, -inf
      %v2371 = vsel %vm1512, %v2345, -inf
      %v2372 = vsel %vm1513, %v2329, -inf
      %v2373 = vsel %vm1512, %v2346, -inf
      %v2374 = vsel %vm1513, %v2330, -inf
      %v2375 = vsel %vm1512, %v2347, -inf
      %v2376 = vsel %vm1513, %v2331, -inf
      %v2377 = vsel %vm1512, %v2348, -inf
      %v2378 = vsel %vm1513, %v2332, -inf
      %v2379 = vsel %vm1512, %v2349, -inf
      %v2380 = vsel %vm1513, %v2333, -inf
      %v2381 = vsel %vm1512, %v2350, -inf
      %v2382 = vsel %vm1513, %v2334, -inf
      %v2383 = vmax.f32 %v2255, %v2351
      %v2384 = vmax.f32 %v2256, %v2352
      %v2385 = vmax.f32 %v2257, %v2353
      %v2386 = vmax.f32 %v2258, %v2354
      %v2387 = vmax.f32 %v2259, %v2355
      %v2388 = vmax.f32 %v2260, %v2356
      %v2389 = vmax.f32 %v2261, %v2357
      %v2390 = vmax.f32 %v2262, %v2358
      %v2391 = vmax.f32 %v2263, %v2359
      %v2392 = vmax.f32 %v2264, %v2360
      %v2393 = vmax.f32 %v2265, %v2361
      %v2394 = vmax.f32 %v2266, %v2362
      %v2395 = vmax.f32 %v2267, %v2363
      %v2396 = vmax.f32 %v2268, %v2364
      %v2397 = vmax.f32 %v2269, %v2365
      %v2398 = vmax.f32 %v2270, %v2366
      %v2399 = vmax.f32 %v2271, %v2367
      %v2400 = vmax.f32 %v2272, %v2368
      %v2401 = vmax.f32 %v2273, %v2369
      %v2402 = vmax.f32 %v2274, %v2370
      %v2403 = vmax.f32 %v2275, %v2371
      %v2404 = vmax.f32 %v2276, %v2372
      %v2405 = vmax.f32 %v2277, %v2373
      %v2406 = vmax.f32 %v2278, %v2374
      %v2407 = vmax.f32 %v2279, %v2375
      %v2408 = vmax.f32 %v2280, %v2376
      %v2409 = vmax.f32 %v2281, %v2377
      %v2410 = vmax.f32 %v2282, %v2378
      %v2411 = vmax.f32 %v2283, %v2379
      %v2412 = vmax.f32 %v2284, %v2380
      %v2413 = vmax.f32 %v2285, %v2381
      %v2414 = vmax.f32 %v2286, %v2382
      %v2415 = vrot.slane %v1999, 6
      %v2416 = vrot.slane %v2001, 6
      %v2417 = vrot.slane %v2003, 6
      %v2418 = vrot.slane %v2005, 6
      %v2419 = vrot.slane %v2007, 6
      %v2420 = vrot.slane %v2009, 6
      %v2421 = vrot.slane %v2011, 6
      %v2422 = vrot.slane %v2013, 6
      %v2423 = vrot.slane %v2015, 6
      %v2424 = vrot.slane %v2017, 6
      %v2425 = vrot.slane %v2019, 6
      %v2426 = vrot.slane %v2021, 6
      %v2427 = vrot.slane %v2023, 6
      %v2428 = vrot.slane %v2025, 6
      %v2429 = vrot.slane %v2027, 6
      %v2430 = vrot.slane %v2029, 6
      %v2431 = vrot.slane %v2000, 6
      %v2432 = vrot.slane %v2002, 6
      %v2433 = vrot.slane %v2004, 6
      %v2434 = vrot.slane %v2006, 6
      %v2435 = vrot.slane %v2008, 6
      %v2436 = vrot.slane %v2010, 6
      %v2437 = vrot.slane %v2012, 6
      %v2438 = vrot.slane %v2014, 6
      %v2439 = vrot.slane %v2016, 6
      %v2440 = vrot.slane %v2018, 6
      %v2441 = vrot.slane %v2020, 6
      %v2442 = vrot.slane %v2022, 6
      %v2443 = vrot.slane %v2024, 6
      %v2444 = vrot.slane %v2026, 6
      %v2445 = vrot.slane %v2028, 6
      %v2446 = vrot.slane %v2030, 6
      %v2447 = vsel %vm1610, %v2415, %v2431
      %v2448 = vsel %vm1610, %v2416, %v2432
      %v2449 = vsel %vm1610, %v2417, %v2433
      %v2450 = vsel %vm1610, %v2418, %v2434
      %v2451 = vsel %vm1610, %v2419, %v2435
      %v2452 = vsel %vm1610, %v2420, %v2436
      %v2453 = vsel %vm1610, %v2421, %v2437
      %v2454 = vsel %vm1610, %v2422, %v2438
      %v2455 = vsel %vm1610, %v2423, %v2439
      %v2456 = vsel %vm1610, %v2424, %v2440
      %v2457 = vsel %vm1610, %v2425, %v2441
      %v2458 = vsel %vm1610, %v2426, %v2442
      %v2459 = vsel %vm1610, %v2427, %v2443
      %v2460 = vsel %vm1610, %v2428, %v2444
      %v2461 = vsel %vm1610, %v2429, %v2445
      %v2462 = vsel %vm1610, %v2430, %v2446
      %v2463 = vsel %vm1610, %v2431, %v2415
      %v2464 = vsel %vm1610, %v2432, %v2416
      %v2465 = vsel %vm1610, %v2433, %v2417
      %v2466 = vsel %vm1610, %v2434, %v2418
      %v2467 = vsel %vm1610, %v2435, %v2419
      %v2468 = vsel %vm1610, %v2436, %v2420
      %v2469 = vsel %vm1610, %v2437, %v2421
      %v2470 = vsel %vm1610, %v2438, %v2422
      %v2471 = vsel %vm1610, %v2439, %v2423
      %v2472 = vsel %vm1610, %v2440, %v2424
      %v2473 = vsel %vm1610, %v2441, %v2425
      %v2474 = vsel %vm1610, %v2442, %v2426
      %v2475 = vsel %vm1610, %v2443, %v2427
      %v2476 = vsel %vm1610, %v2444, %v2428
      %v2477 = vsel %vm1610, %v2445, %v2429
      %v2478 = vsel %vm1610, %v2446, %v2430
      %v2479 = vsel %vm1645, %v2463, -inf
      %v2480 = vsel %vm1646, %v2447, -inf
      %v2481 = vsel %vm1645, %v2464, -inf
      %v2482 = vsel %vm1646, %v2448, -inf
      %v2483 = vsel %vm1645, %v2465, -inf
      %v2484 = vsel %vm1646, %v2449, -inf
      %v2485 = vsel %vm1645, %v2466, -inf
      %v2486 = vsel %vm1646, %v2450, -inf
      %v2487 = vsel %vm1645, %v2467, -inf
      %v2488 = vsel %vm1646, %v2451, -inf
      %v2489 = vsel %vm1645, %v2468, -inf
      %v2490 = vsel %vm1646, %v2452, -inf
      %v2491 = vsel %vm1645, %v2469, -inf
      %v2492 = vsel %vm1646, %v2453, -inf
      %v2493 = vsel %vm1645, %v2470, -inf
      %v2494 = vsel %vm1646, %v2454, -inf
      %v2495 = vsel %vm1645, %v2471, -inf
      %v2496 = vsel %vm1646, %v2455, -inf
      %v2497 = vsel %vm1645, %v2472, -inf
      %v2498 = vsel %vm1646, %v2456, -inf
      %v2499 = vsel %vm1645, %v2473, -inf
      %v2500 = vsel %vm1646, %v2457, -inf
      %v2501 = vsel %vm1645, %v2474, -inf
      %v2502 = vsel %vm1646, %v2458, -inf
      %v2503 = vsel %vm1645, %v2475, -inf
      %v2504 = vsel %vm1646, %v2459, -inf
      %v2505 = vsel %vm1645, %v2476, -inf
      %v2506 = vsel %vm1646, %v2460, -inf
      %v2507 = vsel %vm1645, %v2477, -inf
      %v2508 = vsel %vm1646, %v2461, -inf
      %v2509 = vsel %vm1645, %v2478, -inf
      %v2510 = vsel %vm1646, %v2462, -inf
      %v2511 = vmax.f32 %v2383, %v2479
      %v2512 = vmax.f32 %v2384, %v2480
      %v2513 = vmax.f32 %v2385, %v2481
      %v2514 = vmax.f32 %v2386, %v2482
      %v2515 = vmax.f32 %v2387, %v2483
      %v2516 = vmax.f32 %v2388, %v2484
      %v2517 = vmax.f32 %v2389, %v2485
      %v2518 = vmax.f32 %v2390, %v2486
      %v2519 = vmax.f32 %v2391, %v2487
      %v2520 = vmax.f32 %v2392, %v2488
      %v2521 = vmax.f32 %v2393, %v2489
      %v2522 = vmax.f32 %v2394, %v2490
      %v2523 = vmax.f32 %v2395, %v2491
      %v2524 = vmax.f32 %v2396, %v2492
      %v2525 = vmax.f32 %v2397, %v2493
      %v2526 = vmax.f32 %v2398, %v2494
      %v2527 = vmax.f32 %v2399, %v2495
      %v2528 = vmax.f32 %v2400, %v2496
      %v2529 = vmax.f32 %v2401, %v2497
      %v2530 = vmax.f32 %v2402, %v2498
      %v2531 = vmax.f32 %v2403, %v2499
      %v2532 = vmax.f32 %v2404, %v2500
      %v2533 = vmax.f32 %v2405, %v2501
      %v2534 = vmax.f32 %v2406, %v2502
      %v2535 = vmax.f32 %v2407, %v2503
      %v2536 = vmax.f32 %v2408, %v2504
      %v2537 = vmax.f32 %v2409, %v2505
      %v2538 = vmax.f32 %v2410, %v2506
      %v2539 = vmax.f32 %v2411, %v2507
      %v2540 = vmax.f32 %v2412, %v2508
      %v2541 = vmax.f32 %v2413, %v2509
      %v2542 = vmax.f32 %v2414, %v2510
      %2543 = vst.msk [vmem:[%s855] sm:$0xff] %vm280, %v2511
      %2544 = vst.msk [vmem:[%s855 + $0x8] sm:$0xff] %vm280, %v2512
      %2545 = vst.msk [vmem:[%s855 + $0x10] sm:$0xff] %vm280, %v2513
      %2546 = vst.msk [vmem:[%s855 + $0x18] sm:$0xff] %vm280, %v2514
      %2547 = vst.msk [vmem:[%s855 + $0x20] sm:$0xff] %vm280, %v2515
      %2548 = vst.msk [vmem:[%s855 + $0x28] sm:$0xff] %vm280, %v2516
      %2549 = vst.msk [vmem:[%s855 + $0x30] sm:$0xff] %vm280, %v2517
      %2550 = vst.msk [vmem:[%s855 + $0x38] sm:$0xff] %vm280, %v2518
      %2551 = vst.msk [vmem:[%s855 + $0x40] sm:$0xff] %vm280, %v2519
      %2552 = vst.msk [vmem:[%s855 + $0x48] sm:$0xff] %vm280, %v2520
      %2553 = vst.msk [vmem:[%s855 + $0x50] sm:$0xff] %vm280, %v2521
      %2554 = vst.msk [vmem:[%s855 + $0x58] sm:$0xff] %vm280, %v2522
      %2555 = vst.msk [vmem:[%s855 + $0x60] sm:$0xff] %vm280, %v2523
      %2556 = vst.msk [vmem:[%s855 + $0x68] sm:$0xff] %vm280, %v2524
      %2557 = vst.msk [vmem:[%s855 + $0x70] sm:$0xff] %vm280, %v2525
      %2558 = vst.msk [vmem:[%s855 + $0x78] sm:$0xff] %vm280, %v2526
      %2559 = vst.msk [vmem:[%s855 + $0x80] sm:$0xff] %vm280, %v2527
      %2560 = vst.msk [vmem:[%s855 + $0x88] sm:$0xff] %vm280, %v2528
      %2561 = vst.msk [vmem:[%s855 + $0x90] sm:$0xff] %vm280, %v2529
      %2562 = vst.msk [vmem:[%s855 + $0x98] sm:$0xff] %vm280, %v2530
      %2563 = vst.msk [vmem:[%s855 + $0xa0] sm:$0xff] %vm280, %v2531
      %2564 = vst.msk [vmem:[%s855 + $0xa8] sm:$0xff] %vm280, %v2532
      %2565 = vst.msk [vmem:[%s855 + $0xb0] sm:$0xff] %vm280, %v2533
      %2566 = vst.msk [vmem:[%s855 + $0xb8] sm:$0xff] %vm280, %v2534
      %2567 = vst.msk [vmem:[%s855 + $0xc0] sm:$0xff] %vm280, %v2535
      %2568 = vst.msk [vmem:[%s855 + $0xc8] sm:$0xff] %vm280, %v2536
      %2569 = vst.msk [vmem:[%s855 + $0xd0] sm:$0xff] %vm280, %v2537
      %2570 = vst.msk [vmem:[%s855 + $0xd8] sm:$0xff] %vm280, %v2538
      %2571 = vst.msk [vmem:[%s855 + $0xe0] sm:$0xff] %vm280, %v2539
      %2572 = vst.msk [vmem:[%s855 + $0xe8] sm:$0xff] %vm280, %v2540
      %2573 = vst.msk [vmem:[%s855 + $0xf0] sm:$0xff] %vm280, %v2541
      %2574 = vst.msk [vmem:[%s855 + $0xf8] sm:$0xff] %vm280, %v2542
      %v2575 = vld [vmem:[#allocation2] sm:$0xff]
      %v2576 = vld [vmem:[#allocation2 + $0x8] sm:$0xff]
      %v2577 = vld [vmem:[#allocation2 + $0x10] sm:$0xff]
      %v2578 = vld [vmem:[#allocation2 + $0x18] sm:$0xff]
      %v2579 = vld [vmem:[#allocation2 + $0x20] sm:$0xff]
      %v2580 = vld [vmem:[#allocation2 + $0x28] sm:$0xff]
      %v2581 = vld [vmem:[#allocation2 + $0x30] sm:$0xff]
      %v2582 = vld [vmem:[#allocation2 + $0x38] sm:$0xff]
      %v2583 = vld [vmem:[#allocation2 + $0x40] sm:$0xff]
      %v2584 = vld [vmem:[#allocation2 + $0x48] sm:$0xff]
      %v2585 = vld [vmem:[#allocation2 + $0x50] sm:$0xff]
      %v2586 = vld [vmem:[#allocation2 + $0x58] sm:$0xff]
      %v2587 = vld [vmem:[#allocation2 + $0x60] sm:$0xff]
      %v2588 = vld [vmem:[#allocation2 + $0x68] sm:$0xff]
      %v2589 = vld [vmem:[#allocation2 + $0x70] sm:$0xff]
      %v2590 = vld [vmem:[#allocation2 + $0x78] sm:$0xff]
      %v2591 = vld [vmem:[#allocation2 + $0x80] sm:$0xff]
      %v2592 = vld [vmem:[#allocation2 + $0x88] sm:$0xff]
      %v2593 = vld [vmem:[#allocation2 + $0x90] sm:$0xff]
      %v2594 = vld [vmem:[#allocation2 + $0x98] sm:$0xff]
      %v2595 = vld [vmem:[#allocation2 + $0xa0] sm:$0xff]
      %v2596 = vld [vmem:[#allocation2 + $0xa8] sm:$0xff]
      %v2597 = vld [vmem:[#allocation2 + $0xb0] sm:$0xff]
      %v2598 = vld [vmem:[#allocation2 + $0xb8] sm:$0xff]
      %v2599 = vld [vmem:[#allocation2 + $0xc0] sm:$0xff]
      %v2600 = vld [vmem:[#allocation2 + $0xc8] sm:$0xff]
      %v2601 = vld [vmem:[#allocation2 + $0xd0] sm:$0xff]
      %v2602 = vld [vmem:[#allocation2 + $0xd8] sm:$0xff]
      %v2603 = vld [vmem:[#allocation2 + $0xe0] sm:$0xff]
      %v2604 = vld [vmem:[#allocation2 + $0xe8] sm:$0xff]
      %v2605 = vld [vmem:[#allocation2 + $0xf0] sm:$0xff]
      %v2606 = vld [vmem:[#allocation2 + $0xf8] sm:$0xff]
      %v2607 = vld [vmem:[%s920] sm:$0xff]
      %v2608 = vld [vmem:[%s920 + $0x8] sm:$0xff]
      %v2609 = vld [vmem:[%s920 + $0x10] sm:$0xff]
      %v2610 = vld [vmem:[%s920 + $0x18] sm:$0xff]
      %v2611 = vld [vmem:[%s920 + $0x20] sm:$0xff]
      %v2612 = vld [vmem:[%s920 + $0x28] sm:$0xff]
      %v2613 = vld [vmem:[%s920 + $0x30] sm:$0xff]
      %v2614 = vld [vmem:[%s920 + $0x38] sm:$0xff]
      %v2615 = vld [vmem:[%s920 + $0x40] sm:$0xff]
      %v2616 = vld [vmem:[%s920 + $0x48] sm:$0xff]
      %v2617 = vld [vmem:[%s920 + $0x50] sm:$0xff]
      %v2618 = vld [vmem:[%s920 + $0x58] sm:$0xff]
      %v2619 = vld [vmem:[%s920 + $0x60] sm:$0xff]
      %v2620 = vld [vmem:[%s920 + $0x68] sm:$0xff]
      %v2621 = vld [vmem:[%s920 + $0x70] sm:$0xff]
      %v2622 = vld [vmem:[%s920 + $0x78] sm:$0xff]
      %v2623 = vld [vmem:[%s920 + $0x80] sm:$0xff]
      %v2624 = vld [vmem:[%s920 + $0x88] sm:$0xff]
      %v2625 = vld [vmem:[%s920 + $0x90] sm:$0xff]
      %v2626 = vld [vmem:[%s920 + $0x98] sm:$0xff]
      %v2627 = vld [vmem:[%s920 + $0xa0] sm:$0xff]
      %v2628 = vld [vmem:[%s920 + $0xa8] sm:$0xff]
      %v2629 = vld [vmem:[%s920 + $0xb0] sm:$0xff]
      %v2630 = vld [vmem:[%s920 + $0xb8] sm:$0xff]
      %v2631 = vld [vmem:[%s920 + $0xc0] sm:$0xff]
      %v2632 = vld [vmem:[%s920 + $0xc8] sm:$0xff]
      %v2633 = vld [vmem:[%s920 + $0xd0] sm:$0xff]
      %v2634 = vld [vmem:[%s920 + $0xd8] sm:$0xff]
      %v2635 = vld [vmem:[%s920 + $0xe0] sm:$0xff]
      %v2636 = vld [vmem:[%s920 + $0xe8] sm:$0xff]
      %v2637 = vld [vmem:[%s920 + $0xf0] sm:$0xff]
      %v2638 = vld [vmem:[%s920 + $0xf8] sm:$0xff]
      %v2639 = vmax.f32 %v2575, %v2607
      %v2640 = vmax.f32 %v2576, %v2608
      %v2641 = vmax.f32 %v2577, %v2609
      %v2642 = vmax.f32 %v2578, %v2610
      %v2643 = vmax.f32 %v2579, %v2611
      %v2644 = vmax.f32 %v2580, %v2612
      %v2645 = vmax.f32 %v2581, %v2613
      %v2646 = vmax.f32 %v2582, %v2614
      %v2647 = vmax.f32 %v2583, %v2615
      %v2648 = vmax.f32 %v2584, %v2616
      %v2649 = vmax.f32 %v2585, %v2617
      %v2650 = vmax.f32 %v2586, %v2618
      %v2651 = vmax.f32 %v2587, %v2619
      %v2652 = vmax.f32 %v2588, %v2620
      %v2653 = vmax.f32 %v2589, %v2621
      %v2654 = vmax.f32 %v2590, %v2622
      %v2655 = vmax.f32 %v2591, %v2623
      %v2656 = vmax.f32 %v2592, %v2624
      %v2657 = vmax.f32 %v2593, %v2625
      %v2658 = vmax.f32 %v2594, %v2626
      %v2659 = vmax.f32 %v2595, %v2627
      %v2660 = vmax.f32 %v2596, %v2628
      %v2661 = vmax.f32 %v2597, %v2629
      %v2662 = vmax.f32 %v2598, %v2630
      %v2663 = vmax.f32 %v2599, %v2631
      %v2664 = vmax.f32 %v2600, %v2632
      %v2665 = vmax.f32 %v2601, %v2633
      %v2666 = vmax.f32 %v2602, %v2634
      %v2667 = vmax.f32 %v2603, %v2635
      %v2668 = vmax.f32 %v2604, %v2636
      %v2669 = vmax.f32 %v2605, %v2637
      %v2670 = vmax.f32 %v2606, %v2638
      %v2671 = vld [vmem:[%s855] sm:$0xff]
      %v2672 = vld [vmem:[%s855 + $0x8] sm:$0xff]
      %v2673 = vld [vmem:[%s855 + $0x10] sm:$0xff]
      %v2674 = vld [vmem:[%s855 + $0x18] sm:$0xff]
      %v2675 = vld [vmem:[%s855 + $0x20] sm:$0xff]
      %v2676 = vld [vmem:[%s855 + $0x28] sm:$0xff]
      %v2677 = vld [vmem:[%s855 + $0x30] sm:$0xff]
      %v2678 = vld [vmem:[%s855 + $0x38] sm:$0xff]
      %v2679 = vld [vmem:[%s855 + $0x40] sm:$0xff]
      %v2680 = vld [vmem:[%s855 + $0x48] sm:$0xff]
      %v2681 = vld [vmem:[%s855 + $0x50] sm:$0xff]
      %v2682 = vld [vmem:[%s855 + $0x58] sm:$0xff]
      %v2683 = vld [vmem:[%s855 + $0x60] sm:$0xff]
      %v2684 = vld [vmem:[%s855 + $0x68] sm:$0xff]
      %v2685 = vld [vmem:[%s855 + $0x70] sm:$0xff]
      %v2686 = vld [vmem:[%s855 + $0x78] sm:$0xff]
      %v2687 = vld [vmem:[%s855 + $0x80] sm:$0xff]
      %v2688 = vld [vmem:[%s855 + $0x88] sm:$0xff]
      %v2689 = vld [vmem:[%s855 + $0x90] sm:$0xff]
      %v2690 = vld [vmem:[%s855 + $0x98] sm:$0xff]
      %v2691 = vld [vmem:[%s855 + $0xa0] sm:$0xff]
      %v2692 = vld [vmem:[%s855 + $0xa8] sm:$0xff]
      %v2693 = vld [vmem:[%s855 + $0xb0] sm:$0xff]
      %v2694 = vld [vmem:[%s855 + $0xb8] sm:$0xff]
      %v2695 = vld [vmem:[%s855 + $0xc0] sm:$0xff]
      %v2696 = vld [vmem:[%s855 + $0xc8] sm:$0xff]
      %v2697 = vld [vmem:[%s855 + $0xd0] sm:$0xff]
      %v2698 = vld [vmem:[%s855 + $0xd8] sm:$0xff]
      %v2699 = vld [vmem:[%s855 + $0xe0] sm:$0xff]
      %v2700 = vld [vmem:[%s855 + $0xe8] sm:$0xff]
      %v2701 = vld [vmem:[%s855 + $0xf0] sm:$0xff]
      %v2702 = vld [vmem:[%s855 + $0xf8] sm:$0xff]
      %v2703 = vmax.f32 %v2639, %v2671
      %v2704 = vmax.f32 %v2640, %v2672
      %v2705 = vmax.f32 %v2641, %v2673
      %v2706 = vmax.f32 %v2642, %v2674
      %v2707 = vmax.f32 %v2643, %v2675
      %v2708 = vmax.f32 %v2644, %v2676
      %v2709 = vmax.f32 %v2645, %v2677
      %v2710 = vmax.f32 %v2646, %v2678
      %v2711 = vmax.f32 %v2647, %v2679
      %v2712 = vmax.f32 %v2648, %v2680
      %v2713 = vmax.f32 %v2649, %v2681
      %v2714 = vmax.f32 %v2650, %v2682
      %v2715 = vmax.f32 %v2651, %v2683
      %v2716 = vmax.f32 %v2652, %v2684
      %v2717 = vmax.f32 %v2653, %v2685
      %v2718 = vmax.f32 %v2654, %v2686
      %v2719 = vmax.f32 %v2655, %v2687
      %v2720 = vmax.f32 %v2656, %v2688
      %v2721 = vmax.f32 %v2657, %v2689
      %v2722 = vmax.f32 %v2658, %v2690
      %v2723 = vmax.f32 %v2659, %v2691
      %v2724 = vmax.f32 %v2660, %v2692
      %v2725 = vmax.f32 %v2661, %v2693
      %v2726 = vmax.f32 %v2662, %v2694
      %v2727 = vmax.f32 %v2663, %v2695
      %v2728 = vmax.f32 %v2664, %v2696
      %v2729 = vmax.f32 %v2665, %v2697
      %v2730 = vmax.f32 %v2666, %v2698
      %v2731 = vmax.f32 %v2667, %v2699
      %v2732 = vmax.f32 %v2668, %v2700
      %v2733 = vmax.f32 %v2669, %v2701
      %v2734 = vmax.f32 %v2670, %v2702
      %v2735 = vld [vmem:[%s1049] sm:$0xff]
      %v2736 = vld [vmem:[%s1049 + $0x8] sm:$0xff]
      %v2737 = vld [vmem:[%s1049 + $0x10] sm:$0xff]
      %v2738 = vld [vmem:[%s1049 + $0x18] sm:$0xff]
      %v2739 = vld [vmem:[%s1049 + $0x20] sm:$0xff]
      %v2740 = vld [vmem:[%s1049 + $0x28] sm:$0xff]
      %v2741 = vld [vmem:[%s1049 + $0x30] sm:$0xff]
      %v2742 = vld [vmem:[%s1049 + $0x38] sm:$0xff]
      %v2743 = vld [vmem:[%s1049 + $0x40] sm:$0xff]
      %v2744 = vld [vmem:[%s1049 + $0x48] sm:$0xff]
      %v2745 = vld [vmem:[%s1049 + $0x50] sm:$0xff]
      %v2746 = vld [vmem:[%s1049 + $0x58] sm:$0xff]
      %v2747 = vld [vmem:[%s1049 + $0x60] sm:$0xff]
      %v2748 = vld [vmem:[%s1049 + $0x68] sm:$0xff]
      %v2749 = vld [vmem:[%s1049 + $0x70] sm:$0xff]
      %v2750 = vld [vmem:[%s1049 + $0x78] sm:$0xff]
      %v2751 = vld [vmem:[%s1049 + $0x80] sm:$0xff]
      %v2752 = vld [vmem:[%s1049 + $0x88] sm:$0xff]
      %v2753 = vld [vmem:[%s1049 + $0x90] sm:$0xff]
      %v2754 = vld [vmem:[%s1049 + $0x98] sm:$0xff]
      %v2755 = vld [vmem:[%s1049 + $0xa0] sm:$0xff]
      %v2756 = vld [vmem:[%s1049 + $0xa8] sm:$0xff]
      %v2757 = vld [vmem:[%s1049 + $0xb0] sm:$0xff]
      %v2758 = vld [vmem:[%s1049 + $0xb8] sm:$0xff]
      %v2759 = vld [vmem:[%s1049 + $0xc0] sm:$0xff]
      %v2760 = vld [vmem:[%s1049 + $0xc8] sm:$0xff]
      %v2761 = vld [vmem:[%s1049 + $0xd0] sm:$0xff]
      %v2762 = vld [vmem:[%s1049 + $0xd8] sm:$0xff]
      %v2763 = vld [vmem:[%s1049 + $0xe0] sm:$0xff]
      %v2764 = vld [vmem:[%s1049 + $0xe8] sm:$0xff]
      %v2765 = vld [vmem:[%s1049 + $0xf0] sm:$0xff]
      %v2766 = vld [vmem:[%s1049 + $0xf8] sm:$0xff]
      %v2767 = vmax.f32 %v2703, %v2735
      %v2768 = vmax.f32 %v2704, %v2736
      %v2769 = vmax.f32 %v2705, %v2737
      %v2770 = vmax.f32 %v2706, %v2738
      %v2771 = vmax.f32 %v2707, %v2739
      %v2772 = vmax.f32 %v2708, %v2740
      %v2773 = vmax.f32 %v2709, %v2741
      %v2774 = vmax.f32 %v2710, %v2742
      %v2775 = vmax.f32 %v2711, %v2743
      %v2776 = vmax.f32 %v2712, %v2744
      %v2777 = vmax.f32 %v2713, %v2745
      %v2778 = vmax.f32 %v2714, %v2746
      %v2779 = vmax.f32 %v2715, %v2747
      %v2780 = vmax.f32 %v2716, %v2748
      %v2781 = vmax.f32 %v2717, %v2749
      %v2782 = vmax.f32 %v2718, %v2750
      %v2783 = vmax.f32 %v2719, %v2751
      %v2784 = vmax.f32 %v2720, %v2752
      %v2785 = vmax.f32 %v2721, %v2753
      %v2786 = vmax.f32 %v2722, %v2754
      %v2787 = vmax.f32 %v2723, %v2755
      %v2788 = vmax.f32 %v2724, %v2756
      %v2789 = vmax.f32 %v2725, %v2757
      %v2790 = vmax.f32 %v2726, %v2758
      %v2791 = vmax.f32 %v2727, %v2759
      %v2792 = vmax.f32 %v2728, %v2760
      %v2793 = vmax.f32 %v2729, %v2761
      %v2794 = vmax.f32 %v2730, %v2762
      %v2795 = vmax.f32 %v2731, %v2763
      %v2796 = vmax.f32 %v2732, %v2764
      %v2797 = vmax.f32 %v2733, %v2765
      %v2798 = vmax.f32 %v2734, %v2766
      %v2799 = vld [vmem:[%s1114] sm:$0xff]
      %v2800 = vld [vmem:[%s1114 + $0x8] sm:$0xff]
      %v2801 = vld [vmem:[%s1114 + $0x10] sm:$0xff]
      %v2802 = vld [vmem:[%s1114 + $0x18] sm:$0xff]
      %v2803 = vld [vmem:[%s1114 + $0x20] sm:$0xff]
      %v2804 = vld [vmem:[%s1114 + $0x28] sm:$0xff]
      %v2805 = vld [vmem:[%s1114 + $0x30] sm:$0xff]
      %v2806 = vld [vmem:[%s1114 + $0x38] sm:$0xff]
      %v2807 = vld [vmem:[%s1114 + $0x40] sm:$0xff]
      %v2808 = vld [vmem:[%s1114 + $0x48] sm:$0xff]
      %v2809 = vld [vmem:[%s1114 + $0x50] sm:$0xff]
      %v2810 = vld [vmem:[%s1114 + $0x58] sm:$0xff]
      %v2811 = vld [vmem:[%s1114 + $0x60] sm:$0xff]
      %v2812 = vld [vmem:[%s1114 + $0x68] sm:$0xff]
      %v2813 = vld [vmem:[%s1114 + $0x70] sm:$0xff]
      %v2814 = vld [vmem:[%s1114 + $0x78] sm:$0xff]
      %v2815 = vld [vmem:[%s1114 + $0x80] sm:$0xff]
      %v2816 = vld [vmem:[%s1114 + $0x88] sm:$0xff]
      %v2817 = vld [vmem:[%s1114 + $0x90] sm:$0xff]
      %v2818 = vld [vmem:[%s1114 + $0x98] sm:$0xff]
      %v2819 = vld [vmem:[%s1114 + $0xa0] sm:$0xff]
      %v2820 = vld [vmem:[%s1114 + $0xa8] sm:$0xff]
      %v2821 = vld [vmem:[%s1114 + $0xb0] sm:$0xff]
      %v2822 = vld [vmem:[%s1114 + $0xb8] sm:$0xff]
      %v2823 = vld [vmem:[%s1114 + $0xc0] sm:$0xff]
      %v2824 = vld [vmem:[%s1114 + $0xc8] sm:$0xff]
      %v2825 = vld [vmem:[%s1114 + $0xd0] sm:$0xff]
      %v2826 = vld [vmem:[%s1114 + $0xd8] sm:$0xff]
      %v2827 = vld [vmem:[%s1114 + $0xe0] sm:$0xff]
      %v2828 = vld [vmem:[%s1114 + $0xe8] sm:$0xff]
      %v2829 = vld [vmem:[%s1114 + $0xf0] sm:$0xff]
      %v2830 = vld [vmem:[%s1114 + $0xf8] sm:$0xff]
      %v2831 = vmax.f32 %v2767, %v2799
      %v2832 = vmax.f32 %v2768, %v2800
      %v2833 = vmax.f32 %v2769, %v2801
      %v2834 = vmax.f32 %v2770, %v2802
      %v2835 = vmax.f32 %v2771, %v2803
      %v2836 = vmax.f32 %v2772, %v2804
      %v2837 = vmax.f32 %v2773, %v2805
      %v2838 = vmax.f32 %v2774, %v2806
      %v2839 = vmax.f32 %v2775, %v2807
      %v2840 = vmax.f32 %v2776, %v2808
      %v2841 = vmax.f32 %v2777, %v2809
      %v2842 = vmax.f32 %v2778, %v2810
      %v2843 = vmax.f32 %v2779, %v2811
      %v2844 = vmax.f32 %v2780, %v2812
      %v2845 = vmax.f32 %v2781, %v2813
      %v2846 = vmax.f32 %v2782, %v2814
      %v2847 = vmax.f32 %v2783, %v2815
      %v2848 = vmax.f32 %v2784, %v2816
      %v2849 = vmax.f32 %v2785, %v2817
      %v2850 = vmax.f32 %v2786, %v2818
      %v2851 = vmax.f32 %v2787, %v2819
      %v2852 = vmax.f32 %v2788, %v2820
      %v2853 = vmax.f32 %v2789, %v2821
      %v2854 = vmax.f32 %v2790, %v2822
      %v2855 = vmax.f32 %v2791, %v2823
      %v2856 = vmax.f32 %v2792, %v2824
      %v2857 = vmax.f32 %v2793, %v2825
      %v2858 = vmax.f32 %v2794, %v2826
      %v2859 = vmax.f32 %v2795, %v2827
      %v2860 = vmax.f32 %v2796, %v2828
      %v2861 = vmax.f32 %v2797, %v2829
      %v2862 = vmax.f32 %v2798, %v2830
      %v2863 = vrot.slane %v2831, 1
      %v2864 = vrot.slane %v2833, 1
      %v2865 = vrot.slane %v2835, 1
      %v2866 = vrot.slane %v2837, 1
      %v2867 = vrot.slane %v2839, 1
      %v2868 = vrot.slane %v2841, 1
      %v2869 = vrot.slane %v2843, 1
      %v2870 = vrot.slane %v2845, 1
      %v2871 = vrot.slane %v2847, 1
      %v2872 = vrot.slane %v2849, 1
      %v2873 = vrot.slane %v2851, 1
      %v2874 = vrot.slane %v2853, 1
      %v2875 = vrot.slane %v2855, 1
      %v2876 = vrot.slane %v2857, 1
      %v2877 = vrot.slane %v2859, 1
      %v2878 = vrot.slane %v2861, 1
      %v2879 = vrot.slane %v2832, 1
      %v2880 = vrot.slane %v2834, 1
      %v2881 = vrot.slane %v2836, 1
      %v2882 = vrot.slane %v2838, 1
      %v2883 = vrot.slane %v2840, 1
      %v2884 = vrot.slane %v2842, 1
      %v2885 = vrot.slane %v2844, 1
      %v2886 = vrot.slane %v2846, 1
      %v2887 = vrot.slane %v2848, 1
      %v2888 = vrot.slane %v2850, 1
      %v2889 = vrot.slane %v2852, 1
      %v2890 = vrot.slane %v2854, 1
      %v2891 = vrot.slane %v2856, 1
      %v2892 = vrot.slane %v2858, 1
      %v2893 = vrot.slane %v2860, 1
      %v2894 = vrot.slane %v2862, 1
      %v2895 = vsel %vm1211, %v2863, %v2879
      %v2896 = vsel %vm1211, %v2864, %v2880
      %v2897 = vsel %vm1211, %v2865, %v2881
      %v2898 = vsel %vm1211, %v2866, %v2882
      %v2899 = vsel %vm1211, %v2867, %v2883
      %v2900 = vsel %vm1211, %v2868, %v2884
      %v2901 = vsel %vm1211, %v2869, %v2885
      %v2902 = vsel %vm1211, %v2870, %v2886
      %v2903 = vsel %vm1211, %v2871, %v2887
      %v2904 = vsel %vm1211, %v2872, %v2888
      %v2905 = vsel %vm1211, %v2873, %v2889
      %v2906 = vsel %vm1211, %v2874, %v2890
      %v2907 = vsel %vm1211, %v2875, %v2891
      %v2908 = vsel %vm1211, %v2876, %v2892
      %v2909 = vsel %vm1211, %v2877, %v2893
      %v2910 = vsel %vm1211, %v2878, %v2894
      %v2911 = vsel %vm1211, %v2879, %v2863
      %v2912 = vsel %vm1211, %v2880, %v2864
      %v2913 = vsel %vm1211, %v2881, %v2865
      %v2914 = vsel %vm1211, %v2882, %v2866
      %v2915 = vsel %vm1211, %v2883, %v2867
      %v2916 = vsel %vm1211, %v2884, %v2868
      %v2917 = vsel %vm1211, %v2885, %v2869
      %v2918 = vsel %vm1211, %v2886, %v2870
      %v2919 = vsel %vm1211, %v2887, %v2871
      %v2920 = vsel %vm1211, %v2888, %v2872
      %v2921 = vsel %vm1211, %v2889, %v2873
      %v2922 = vsel %vm1211, %v2890, %v2874
      %v2923 = vsel %vm1211, %v2891, %v2875
      %v2924 = vsel %vm1211, %v2892, %v2876
      %v2925 = vsel %vm1211, %v2893, %v2877
      %v2926 = vsel %vm1211, %v2894, %v2878
      %v2927 = vsel %vm1246, %v2895, -inf
      %v2928 = vsel %vm1247, %v2911, -inf
      %v2929 = vsel %vm1246, %v2896, -inf
      %v2930 = vsel %vm1247, %v2912, -inf
      %v2931 = vsel %vm1246, %v2897, -inf
      %v2932 = vsel %vm1247, %v2913, -inf
      %v2933 = vsel %vm1246, %v2898, -inf
      %v2934 = vsel %vm1247, %v2914, -inf
      %v2935 = vsel %vm1246, %v2899, -inf
      %v2936 = vsel %vm1247, %v2915, -inf
      %v2937 = vsel %vm1246, %v2900, -inf
      %v2938 = vsel %vm1247, %v2916, -inf
      %v2939 = vsel %vm1246, %v2901, -inf
      %v2940 = vsel %vm1247, %v2917, -inf
      %v2941 = vsel %vm1246, %v2902, -inf
      %v2942 = vsel %vm1247, %v2918, -inf
      %v2943 = vsel %vm1246, %v2903, -inf
      %v2944 = vsel %vm1247, %v2919, -inf
      %v2945 = vsel %vm1246, %v2904, -inf
      %v2946 = vsel %vm1247, %v2920, -inf
      %v2947 = vsel %vm1246, %v2905, -inf
      %v2948 = vsel %vm1247, %v2921, -inf
      %v2949 = vsel %vm1246, %v2906, -inf
      %v2950 = vsel %vm1247, %v2922, -inf
      %v2951 = vsel %vm1246, %v2907, -inf
      %v2952 = vsel %vm1247, %v2923, -inf
      %v2953 = vsel %vm1246, %v2908, -inf
      %v2954 = vsel %vm1247, %v2924, -inf
      %v2955 = vsel %vm1246, %v2909, -inf
      %v2956 = vsel %vm1247, %v2925, -inf
      %v2957 = vsel %vm1246, %v2910, -inf
      %v2958 = vsel %vm1247, %v2926, -inf
      %v2959 = vmax.f32 %v2831, %v2927
      %v2960 = vmax.f32 %v2832, %v2928
      %v2961 = vmax.f32 %v2833, %v2929
      %v2962 = vmax.f32 %v2834, %v2930
      %v2963 = vmax.f32 %v2835, %v2931
      %v2964 = vmax.f32 %v2836, %v2932
      %v2965 = vmax.f32 %v2837, %v2933
      %v2966 = vmax.f32 %v2838, %v2934
      %v2967 = vmax.f32 %v2839, %v2935
      %v2968 = vmax.f32 %v2840, %v2936
      %v2969 = vmax.f32 %v2841, %v2937
      %v2970 = vmax.f32 %v2842, %v2938
      %v2971 = vmax.f32 %v2843, %v2939
      %v2972 = vmax.f32 %v2844, %v2940
      %v2973 = vmax.f32 %v2845, %v2941
      %v2974 = vmax.f32 %v2846, %v2942
      %v2975 = vmax.f32 %v2847, %v2943
      %v2976 = vmax.f32 %v2848, %v2944
      %v2977 = vmax.f32 %v2849, %v2945
      %v2978 = vmax.f32 %v2850, %v2946
      %v2979 = vmax.f32 %v2851, %v2947
      %v2980 = vmax.f32 %v2852, %v2948
      %v2981 = vmax.f32 %v2853, %v2949
      %v2982 = vmax.f32 %v2854, %v2950
      %v2983 = vmax.f32 %v2855, %v2951
      %v2984 = vmax.f32 %v2856, %v2952
      %v2985 = vmax.f32 %v2857, %v2953
      %v2986 = vmax.f32 %v2858, %v2954
      %v2987 = vmax.f32 %v2859, %v2955
      %v2988 = vmax.f32 %v2860, %v2956
      %v2989 = vmax.f32 %v2861, %v2957
      %v2990 = vmax.f32 %v2862, %v2958
      %v2991 = vrot.slane %v2831, 2
      %v2992 = vrot.slane %v2833, 2
      %v2993 = vrot.slane %v2835, 2
      %v2994 = vrot.slane %v2837, 2
      %v2995 = vrot.slane %v2839, 2
      %v2996 = vrot.slane %v2841, 2
      %v2997 = vrot.slane %v2843, 2
      %v2998 = vrot.slane %v2845, 2
      %v2999 = vrot.slane %v2847, 2
      %v3000 = vrot.slane %v2849, 2
      %v3001 = vrot.slane %v2851, 2
      %v3002 = vrot.slane %v2853, 2
      %v3003 = vrot.slane %v2855, 2
      %v3004 = vrot.slane %v2857, 2
      %v3005 = vrot.slane %v2859, 2
      %v3006 = vrot.slane %v2861, 2
      %v3007 = vrot.slane %v2832, 2
      %v3008 = vrot.slane %v2834, 2
      %v3009 = vrot.slane %v2836, 2
      %v3010 = vrot.slane %v2838, 2
      %v3011 = vrot.slane %v2840, 2
      %v3012 = vrot.slane %v2842, 2
      %v3013 = vrot.slane %v2844, 2
      %v3014 = vrot.slane %v2846, 2
      %v3015 = vrot.slane %v2848, 2
      %v3016 = vrot.slane %v2850, 2
      %v3017 = vrot.slane %v2852, 2
      %v3018 = vrot.slane %v2854, 2
      %v3019 = vrot.slane %v2856, 2
      %v3020 = vrot.slane %v2858, 2
      %v3021 = vrot.slane %v2860, 2
      %v3022 = vrot.slane %v2862, 2
      %v3023 = vsel %vm1344, %v2991, %v3007
      %v3024 = vsel %vm1344, %v2992, %v3008
      %v3025 = vsel %vm1344, %v2993, %v3009
      %v3026 = vsel %vm1344, %v2994, %v3010
      %v3027 = vsel %vm1344, %v2995, %v3011
      %v3028 = vsel %vm1344, %v2996, %v3012
      %v3029 = vsel %vm1344, %v2997, %v3013
      %v3030 = vsel %vm1344, %v2998, %v3014
      %v3031 = vsel %vm1344, %v2999, %v3015
      %v3032 = vsel %vm1344, %v3000, %v3016
      %v3033 = vsel %vm1344, %v3001, %v3017
      %v3034 = vsel %vm1344, %v3002, %v3018
      %v3035 = vsel %vm1344, %v3003, %v3019
      %v3036 = vsel %vm1344, %v3004, %v3020
      %v3037 = vsel %vm1344, %v3005, %v3021
      %v3038 = vsel %vm1344, %v3006, %v3022
      %v3039 = vsel %vm1344, %v3007, %v2991
      %v3040 = vsel %vm1344, %v3008, %v2992
      %v3041 = vsel %vm1344, %v3009, %v2993
      %v3042 = vsel %vm1344, %v3010, %v2994
      %v3043 = vsel %vm1344, %v3011, %v2995
      %v3044 = vsel %vm1344, %v3012, %v2996
      %v3045 = vsel %vm1344, %v3013, %v2997
      %v3046 = vsel %vm1344, %v3014, %v2998
      %v3047 = vsel %vm1344, %v3015, %v2999
      %v3048 = vsel %vm1344, %v3016, %v3000
      %v3049 = vsel %vm1344, %v3017, %v3001
      %v3050 = vsel %vm1344, %v3018, %v3002
      %v3051 = vsel %vm1344, %v3019, %v3003
      %v3052 = vsel %vm1344, %v3020, %v3004
      %v3053 = vsel %vm1344, %v3021, %v3005
      %v3054 = vsel %vm1344, %v3022, %v3006
      %v3055 = vsel %vm1379, %v3023, -inf
      %v3056 = vsel %vm1380, %v3039, -inf
      %v3057 = vsel %vm1379, %v3024, -inf
      %v3058 = vsel %vm1380, %v3040, -inf
      %v3059 = vsel %vm1379, %v3025, -inf
      %v3060 = vsel %vm1380, %v3041, -inf
      %v3061 = vsel %vm1379, %v3026, -inf
      %v3062 = vsel %vm1380, %v3042, -inf
      %v3063 = vsel %vm1379, %v3027, -inf
      %v3064 = vsel %vm1380, %v3043, -inf
      %v3065 = vsel %vm1379, %v3028, -inf
      %v3066 = vsel %vm1380, %v3044, -inf
      %v3067 = vsel %vm1379, %v3029, -inf
      %v3068 = vsel %vm1380, %v3045, -inf
      %v3069 = vsel %vm1379, %v3030, -inf
      %v3070 = vsel %vm1380, %v3046, -inf
      %v3071 = vsel %vm1379, %v3031, -inf
      %v3072 = vsel %vm1380, %v3047, -inf
      %v3073 = vsel %vm1379, %v3032, -inf
      %v3074 = vsel %vm1380, %v3048, -inf
      %v3075 = vsel %vm1379, %v3033, -inf
      %v3076 = vsel %vm1380, %v3049, -inf
      %v3077 = vsel %vm1379, %v3034, -inf
      %v3078 = vsel %vm1380, %v3050, -inf
      %v3079 = vsel %vm1379, %v3035, -inf
      %v3080 = vsel %vm1380, %v3051, -inf
      %v3081 = vsel %vm1379, %v3036, -inf
      %v3082 = vsel %vm1380, %v3052, -inf
      %v3083 = vsel %vm1379, %v3037, -inf
      %v3084 = vsel %vm1380, %v3053, -inf
      %v3085 = vsel %vm1379, %v3038, -inf
      %v3086 = vsel %vm1380, %v3054, -inf
      %v3087 = vmax.f32 %v2959, %v3055
      %v3088 = vmax.f32 %v2960, %v3056
      %v3089 = vmax.f32 %v2961, %v3057
      %v3090 = vmax.f32 %v2962, %v3058
      %v3091 = vmax.f32 %v2963, %v3059
      %v3092 = vmax.f32 %v2964, %v3060
      %v3093 = vmax.f32 %v2965, %v3061
      %v3094 = vmax.f32 %v2966, %v3062
      %v3095 = vmax.f32 %v2967, %v3063
      %v3096 = vmax.f32 %v2968, %v3064
      %v3097 = vmax.f32 %v2969, %v3065
      %v3098 = vmax.f32 %v2970, %v3066
      %v3099 = vmax.f32 %v2971, %v3067
      %v3100 = vmax.f32 %v2972, %v3068
      %v3101 = vmax.f32 %v2973, %v3069
      %v3102 = vmax.f32 %v2974, %v3070
      %v3103 = vmax.f32 %v2975, %v3071
      %v3104 = vmax.f32 %v2976, %v3072
      %v3105 = vmax.f32 %v2977, %v3073
      %v3106 = vmax.f32 %v2978, %v3074
      %v3107 = vmax.f32 %v2979, %v3075
      %v3108 = vmax.f32 %v2980, %v3076
      %v3109 = vmax.f32 %v2981, %v3077
      %v3110 = vmax.f32 %v2982, %v3078
      %v3111 = vmax.f32 %v2983, %v3079
      %v3112 = vmax.f32 %v2984, %v3080
      %v3113 = vmax.f32 %v2985, %v3081
      %v3114 = vmax.f32 %v2986, %v3082
      %v3115 = vmax.f32 %v2987, %v3083
      %v3116 = vmax.f32 %v2988, %v3084
      %v3117 = vmax.f32 %v2989, %v3085
      %v3118 = vmax.f32 %v2990, %v3086
      %v3119 = vrot.slane %v2831, 7
      %v3120 = vrot.slane %v2833, 7
      %v3121 = vrot.slane %v2835, 7
      %v3122 = vrot.slane %v2837, 7
      %v3123 = vrot.slane %v2839, 7
      %v3124 = vrot.slane %v2841, 7
      %v3125 = vrot.slane %v2843, 7
      %v3126 = vrot.slane %v2845, 7
      %v3127 = vrot.slane %v2847, 7
      %v3128 = vrot.slane %v2849, 7
      %v3129 = vrot.slane %v2851, 7
      %v3130 = vrot.slane %v2853, 7
      %v3131 = vrot.slane %v2855, 7
      %v3132 = vrot.slane %v2857, 7
      %v3133 = vrot.slane %v2859, 7
      %v3134 = vrot.slane %v2861, 7
      %v3135 = vrot.slane %v2832, 7
      %v3136 = vrot.slane %v2834, 7
      %v3137 = vrot.slane %v2836, 7
      %v3138 = vrot.slane %v2838, 7
      %v3139 = vrot.slane %v2840, 7
      %v3140 = vrot.slane %v2842, 7
      %v3141 = vrot.slane %v2844, 7
      %v3142 = vrot.slane %v2846, 7
      %v3143 = vrot.slane %v2848, 7
      %v3144 = vrot.slane %v2850, 7
      %v3145 = vrot.slane %v2852, 7
      %v3146 = vrot.slane %v2854, 7
      %v3147 = vrot.slane %v2856, 7
      %v3148 = vrot.slane %v2858, 7
      %v3149 = vrot.slane %v2860, 7
      %v3150 = vrot.slane %v2862, 7
      %v3151 = vsel %vm1477, %v3119, %v3135
      %v3152 = vsel %vm1477, %v3120, %v3136
      %v3153 = vsel %vm1477, %v3121, %v3137
      %v3154 = vsel %vm1477, %v3122, %v3138
      %v3155 = vsel %vm1477, %v3123, %v3139
      %v3156 = vsel %vm1477, %v3124, %v3140
      %v3157 = vsel %vm1477, %v3125, %v3141
      %v3158 = vsel %vm1477, %v3126, %v3142
      %v3159 = vsel %vm1477, %v3127, %v3143
      %v3160 = vsel %vm1477, %v3128, %v3144
      %v3161 = vsel %vm1477, %v3129, %v3145
      %v3162 = vsel %vm1477, %v3130, %v3146
      %v3163 = vsel %vm1477, %v3131, %v3147
      %v3164 = vsel %vm1477, %v3132, %v3148
      %v3165 = vsel %vm1477, %v3133, %v3149
      %v3166 = vsel %vm1477, %v3134, %v3150
      %v3167 = vsel %vm1477, %v3135, %v3119
      %v3168 = vsel %vm1477, %v3136, %v3120
      %v3169 = vsel %vm1477, %v3137, %v3121
      %v3170 = vsel %vm1477, %v3138, %v3122
      %v3171 = vsel %vm1477, %v3139, %v3123
      %v3172 = vsel %vm1477, %v3140, %v3124
      %v3173 = vsel %vm1477, %v3141, %v3125
      %v3174 = vsel %vm1477, %v3142, %v3126
      %v3175 = vsel %vm1477, %v3143, %v3127
      %v3176 = vsel %vm1477, %v3144, %v3128
      %v3177 = vsel %vm1477, %v3145, %v3129
      %v3178 = vsel %vm1477, %v3146, %v3130
      %v3179 = vsel %vm1477, %v3147, %v3131
      %v3180 = vsel %vm1477, %v3148, %v3132
      %v3181 = vsel %vm1477, %v3149, %v3133
      %v3182 = vsel %vm1477, %v3150, %v3134
      %v3183 = vsel %vm1512, %v3167, -inf
      %v3184 = vsel %vm1513, %v3151, -inf
      %v3185 = vsel %vm1512, %v3168, -inf
      %v3186 = vsel %vm1513, %v3152, -inf
      %v3187 = vsel %vm1512, %v3169, -inf
      %v3188 = vsel %vm1513, %v3153, -inf
      %v3189 = vsel %vm1512, %v3170, -inf
      %v3190 = vsel %vm1513, %v3154, -inf
      %v3191 = vsel %vm1512, %v3171, -inf
      %v3192 = vsel %vm1513, %v3155, -inf
      %v3193 = vsel %vm1512, %v3172, -inf
      %v3194 = vsel %vm1513, %v3156, -inf
      %v3195 = vsel %vm1512, %v3173, -inf
      %v3196 = vsel %vm1513, %v3157, -inf
      %v3197 = vsel %vm1512, %v3174, -inf
      %v3198 = vsel %vm1513, %v3158, -inf
      %v3199 = vsel %vm1512, %v3175, -inf
      %v3200 = vsel %vm1513, %v3159, -inf
      %v3201 = vsel %vm1512, %v3176, -inf
      %v3202 = vsel %vm1513, %v3160, -inf
      %v3203 = vsel %vm1512, %v3177, -inf
      %v3204 = vsel %vm1513, %v3161, -inf
      %v3205 = vsel %vm1512, %v3178, -inf
      %v3206 = vsel %vm1513, %v3162, -inf
      %v3207 = vsel %vm1512, %v3179, -inf
      %v3208 = vsel %vm1513, %v3163, -inf
      %v3209 = vsel %vm1512, %v3180, -inf
      %v3210 = vsel %vm1513, %v3164, -inf
      %v3211 = vsel %vm1512, %v3181, -inf
      %v3212 = vsel %vm1513, %v3165, -inf
      %v3213 = vsel %vm1512, %v3182, -inf
      %v3214 = vsel %vm1513, %v3166, -inf
      %v3215 = vmax.f32 %v3087, %v3183
      %v3216 = vmax.f32 %v3088, %v3184
      %v3217 = vmax.f32 %v3089, %v3185
      %v3218 = vmax.f32 %v3090, %v3186
      %v3219 = vmax.f32 %v3091, %v3187
      %v3220 = vmax.f32 %v3092, %v3188
      %v3221 = vmax.f32 %v3093, %v3189
      %v3222 = vmax.f32 %v3094, %v3190
      %v3223 = vmax.f32 %v3095, %v3191
      %v3224 = vmax.f32 %v3096, %v3192
      %v3225 = vmax.f32 %v3097, %v3193
      %v3226 = vmax.f32 %v3098, %v3194
      %v3227 = vmax.f32 %v3099, %v3195
      %v3228 = vmax.f32 %v3100, %v3196
      %v3229 = vmax.f32 %v3101, %v3197
      %v3230 = vmax.f32 %v3102, %v3198
      %v3231 = vmax.f32 %v3103, %v3199
      %v3232 = vmax.f32 %v3104, %v3200
      %v3233 = vmax.f32 %v3105, %v3201
      %v3234 = vmax.f32 %v3106, %v3202
      %v3235 = vmax.f32 %v3107, %v3203
      %v3236 = vmax.f32 %v3108, %v3204
      %v3237 = vmax.f32 %v3109, %v3205
      %v3238 = vmax.f32 %v3110, %v3206
      %v3239 = vmax.f32 %v3111, %v3207
      %v3240 = vmax.f32 %v3112, %v3208
      %v3241 = vmax.f32 %v3113, %v3209
      %v3242 = vmax.f32 %v3114, %v3210
      %v3243 = vmax.f32 %v3115, %v3211
      %v3244 = vmax.f32 %v3116, %v3212
      %v3245 = vmax.f32 %v3117, %v3213
      %v3246 = vmax.f32 %v3118, %v3214
      %v3247 = vrot.slane %v2831, 6
      %v3248 = vrot.slane %v2833, 6
      %v3249 = vrot.slane %v2835, 6
      %v3250 = vrot.slane %v2837, 6
      %v3251 = vrot.slane %v2839, 6
      %v3252 = vrot.slane %v2841, 6
      %v3253 = vrot.slane %v2843, 6
      %v3254 = vrot.slane %v2845, 6
      %v3255 = vrot.slane %v2847, 6
      %v3256 = vrot.slane %v2849, 6
      %v3257 = vrot.slane %v2851, 6
      %v3258 = vrot.slane %v2853, 6
      %v3259 = vrot.slane %v2855, 6
      %v3260 = vrot.slane %v2857, 6
      %v3261 = vrot.slane %v2859, 6
      %v3262 = vrot.slane %v2861, 6
      %v3263 = vrot.slane %v2832, 6
      %v3264 = vrot.slane %v2834, 6
      %v3265 = vrot.slane %v2836, 6
      %v3266 = vrot.slane %v2838, 6
      %v3267 = vrot.slane %v2840, 6
      %v3268 = vrot.slane %v2842, 6
      %v3269 = vrot.slane %v2844, 6
      %v3270 = vrot.slane %v2846, 6
      %v3271 = vrot.slane %v2848, 6
      %v3272 = vrot.slane %v2850, 6
      %v3273 = vrot.slane %v2852, 6
      %v3274 = vrot.slane %v2854, 6
      %v3275 = vrot.slane %v2856, 6
      %v3276 = vrot.slane %v2858, 6
      %v3277 = vrot.slane %v2860, 6
      %v3278 = vrot.slane %v2862, 6
      %v3279 = vsel %vm1610, %v3247, %v3263
      %v3280 = vsel %vm1610, %v3248, %v3264
      %v3281 = vsel %vm1610, %v3249, %v3265
      %v3282 = vsel %vm1610, %v3250, %v3266
      %v3283 = vsel %vm1610, %v3251, %v3267
      %v3284 = vsel %vm1610, %v3252, %v3268
      %v3285 = vsel %vm1610, %v3253, %v3269
      %v3286 = vsel %vm1610, %v3254, %v3270
      %v3287 = vsel %vm1610, %v3255, %v3271
      %v3288 = vsel %vm1610, %v3256, %v3272
      %v3289 = vsel %vm1610, %v3257, %v3273
      %v3290 = vsel %vm1610, %v3258, %v3274
      %v3291 = vsel %vm1610, %v3259, %v3275
      %v3292 = vsel %vm1610, %v3260, %v3276
      %v3293 = vsel %vm1610, %v3261, %v3277
      %v3294 = vsel %vm1610, %v3262, %v3278
      %v3295 = vsel %vm1610, %v3263, %v3247
      %v3296 = vsel %vm1610, %v3264, %v3248
      %v3297 = vsel %vm1610, %v3265, %v3249
      %v3298 = vsel %vm1610, %v3266, %v3250
      %v3299 = vsel %vm1610, %v3267, %v3251
      %v3300 = vsel %vm1610, %v3268, %v3252
      %v3301 = vsel %vm1610, %v3269, %v3253
      %v3302 = vsel %vm1610, %v3270, %v3254
      %v3303 = vsel %vm1610, %v3271, %v3255
      %v3304 = vsel %vm1610, %v3272, %v3256
      %v3305 = vsel %vm1610, %v3273, %v3257
      %v3306 = vsel %vm1610, %v3274, %v3258
      %v3307 = vsel %vm1610, %v3275, %v3259
      %v3308 = vsel %vm1610, %v3276, %v3260
      %v3309 = vsel %vm1610, %v3277, %v3261
      %v3310 = vsel %vm1610, %v3278, %v3262
      %v3311 = vsel %vm1645, %v3295, -inf
      %v3312 = vsel %vm1646, %v3279, -inf
      %v3313 = vsel %vm1645, %v3296, -inf
      %v3314 = vsel %vm1646, %v3280, -inf
      %v3315 = vsel %vm1645, %v3297, -inf
      %v3316 = vsel %vm1646, %v3281, -inf
      %v3317 = vsel %vm1645, %v3298, -inf
      %v3318 = vsel %vm1646, %v3282, -inf
      %v3319 = vsel %vm1645, %v3299, -inf
      %v3320 = vsel %vm1646, %v3283, -inf
      %v3321 = vsel %vm1645, %v3300, -inf
      %v3322 = vsel %vm1646, %v3284, -inf
      %v3323 = vsel %vm1645, %v3301, -inf
      %v3324 = vsel %vm1646, %v3285, -inf
      %v3325 = vsel %vm1645, %v3302, -inf
      %v3326 = vsel %vm1646, %v3286, -inf
      %v3327 = vsel %vm1645, %v3303, -inf
      %v3328 = vsel %vm1646, %v3287, -inf
      %v3329 = vsel %vm1645, %v3304, -inf
      %v3330 = vsel %vm1646, %v3288, -inf
      %v3331 = vsel %vm1645, %v3305, -inf
      %v3332 = vsel %vm1646, %v3289, -inf
      %v3333 = vsel %vm1645, %v3306, -inf
      %v3334 = vsel %vm1646, %v3290, -inf
      %v3335 = vsel %vm1645, %v3307, -inf
      %v3336 = vsel %vm1646, %v3291, -inf
      %v3337 = vsel %vm1645, %v3308, -inf
      %v3338 = vsel %vm1646, %v3292, -inf
      %v3339 = vsel %vm1645, %v3309, -inf
      %v3340 = vsel %vm1646, %v3293, -inf
      %v3341 = vsel %vm1645, %v3310, -inf
      %v3342 = vsel %vm1646, %v3294, -inf
      %v3343 = vmax.f32 %v3215, %v3311
      %v3344 = vmax.f32 %v3216, %v3312
      %v3345 = vmax.f32 %v3217, %v3313
      %v3346 = vmax.f32 %v3218, %v3314
      %v3347 = vmax.f32 %v3219, %v3315
      %v3348 = vmax.f32 %v3220, %v3316
      %v3349 = vmax.f32 %v3221, %v3317
      %v3350 = vmax.f32 %v3222, %v3318
      %v3351 = vmax.f32 %v3223, %v3319
      %v3352 = vmax.f32 %v3224, %v3320
      %v3353 = vmax.f32 %v3225, %v3321
      %v3354 = vmax.f32 %v3226, %v3322
      %v3355 = vmax.f32 %v3227, %v3323
      %v3356 = vmax.f32 %v3228, %v3324
      %v3357 = vmax.f32 %v3229, %v3325
      %v3358 = vmax.f32 %v3230, %v3326
      %v3359 = vmax.f32 %v3231, %v3327
      %v3360 = vmax.f32 %v3232, %v3328
      %v3361 = vmax.f32 %v3233, %v3329
      %v3362 = vmax.f32 %v3234, %v3330
      %v3363 = vmax.f32 %v3235, %v3331
      %v3364 = vmax.f32 %v3236, %v3332
      %v3365 = vmax.f32 %v3237, %v3333
      %v3366 = vmax.f32 %v3238, %v3334
      %v3367 = vmax.f32 %v3239, %v3335
      %v3368 = vmax.f32 %v3240, %v3336
      %v3369 = vmax.f32 %v3241, %v3337
      %v3370 = vmax.f32 %v3242, %v3338
      %v3371 = vmax.f32 %v3243, %v3339
      %v3372 = vmax.f32 %v3244, %v3340
      %v3373 = vmax.f32 %v3245, %v3341
      %v3374 = vmax.f32 %v3246, %v3342
      %3407 = vrot.lane.b32.xlu0 %v1679, 4
      %v3408 = vpop.permute.xlu0 %3407
      %3409 = vrot.lane.b32.xlu0 %v1680, 4
      %v3410 = vpop.permute.xlu0 %3409
      %3411 = vrot.lane.b32.xlu0 %v1681, 4
      %v3412 = vpop.permute.xlu0 %3411
      %3413 = vrot.lane.b32.xlu0 %v1682, 4
      %v3414 = vpop.permute.xlu0 %3413
      %3415 = vrot.lane.b32.xlu0 %v1683, 4
      %v3416 = vpop.permute.xlu0 %3415
      %3417 = vrot.lane.b32.xlu0 %v1684, 4
      %v3418 = vpop.permute.xlu0 %3417
      %3419 = vrot.lane.b32.xlu0 %v1685, 4
      %v3420 = vpop.permute.xlu0 %3419
      %3421 = vrot.lane.b32.xlu0 %v1686, 4
      %v3422 = vpop.permute.xlu0 %3421
      %3423 = vrot.lane.b32.xlu0 %v1687, 4
      %v3424 = vpop.permute.xlu0 %3423
      %3425 = vrot.lane.b32.xlu0 %v1688, 4
      %v3426 = vpop.permute.xlu0 %3425
      %3427 = vrot.lane.b32.xlu0 %v1689, 4
      %v3428 = vpop.permute.xlu0 %3427
      %3429 = vrot.lane.b32.xlu0 %v1690, 4
      %v3430 = vpop.permute.xlu0 %3429
      %3431 = vrot.lane.b32.xlu0 %v1691, 4
      %v3432 = vpop.permute.xlu0 %3431
      %3433 = vrot.lane.b32.xlu0 %v1692, 4
      %v3434 = vpop.permute.xlu0 %3433
      %3435 = vrot.lane.b32.xlu0 %v1693, 4
      %v3436 = vpop.permute.xlu0 %3435
      %3437 = vrot.lane.b32.xlu0 %v1694, 4
      %v3438 = vpop.permute.xlu0 %3437
      %3439 = vrot.lane.b32.xlu0 %v1695, 4
      %v3440 = vpop.permute.xlu0 %3439
      %3441 = vrot.lane.b32.xlu0 %v1696, 4
      %v3442 = vpop.permute.xlu0 %3441
      %3443 = vrot.lane.b32.xlu0 %v1697, 4
      %v3444 = vpop.permute.xlu0 %3443
      %3445 = vrot.lane.b32.xlu0 %v1698, 4
      %v3446 = vpop.permute.xlu0 %3445
      %3447 = vrot.lane.b32.xlu0 %v1699, 4
      %v3448 = vpop.permute.xlu0 %3447
      %3449 = vrot.lane.b32.xlu0 %v1700, 4
      %v3450 = vpop.permute.xlu0 %3449
      %3451 = vrot.lane.b32.xlu0 %v1701, 4
      %v3452 = vpop.permute.xlu0 %3451
      %3453 = vrot.lane.b32.xlu0 %v1702, 4
      %v3454 = vpop.permute.xlu0 %3453
      %3455 = vrot.lane.b32.xlu0 %v1703, 4
      %v3456 = vpop.permute.xlu0 %3455
      %3457 = vrot.lane.b32.xlu0 %v1704, 4
      %v3458 = vpop.permute.xlu0 %3457
      %3459 = vrot.lane.b32.xlu0 %v1705, 4
      %v3460 = vpop.permute.xlu0 %3459
      %3461 = vrot.lane.b32.xlu0 %v1706, 4
      %v3462 = vpop.permute.xlu0 %3461
      %3463 = vrot.lane.b32.xlu0 %v1707, 4
      %v3464 = vpop.permute.xlu0 %3463
      %3465 = vrot.lane.b32.xlu0 %v1708, 4
      %v3466 = vpop.permute.xlu0 %3465
      %3467 = vrot.lane.b32.xlu0 %v1709, 4
      %v3468 = vpop.permute.xlu0 %3467
      %3469 = vrot.lane.b32.xlu0 %v1710, 4
      %v3470 = vpop.permute.xlu0 %3469
      %3535 = vrot.lane.b32.xlu0 %v2511, 8
      %v3536 = vpop.permute.xlu0 %3535
      %3537 = vrot.lane.b32.xlu0 %v2512, 8
      %v3538 = vpop.permute.xlu0 %3537
      %3539 = vrot.lane.b32.xlu0 %v2513, 8
      %v3540 = vpop.permute.xlu0 %3539
      %3541 = vrot.lane.b32.xlu0 %v2514, 8
      %v3542 = vpop.permute.xlu0 %3541
      %3543 = vrot.lane.b32.xlu0 %v2515, 8
      %v3544 = vpop.permute.xlu0 %3543
      %3545 = vrot.lane.b32.xlu0 %v2516, 8
      %v3546 = vpop.permute.xlu0 %3545
      %3547 = vrot.lane.b32.xlu0 %v2517, 8
      %v3548 = vpop.permute.xlu0 %3547
      %3549 = vrot.lane.b32.xlu0 %v2518, 8
      %v3550 = vpop.permute.xlu0 %3549
      %3551 = vrot.lane.b32.xlu0 %v2519, 8
      %v3552 = vpop.permute.xlu0 %3551
      %3553 = vrot.lane.b32.xlu0 %v2520, 8
      %v3554 = vpop.permute.xlu0 %3553
      %3555 = vrot.lane.b32.xlu0 %v2521, 8
      %v3556 = vpop.permute.xlu0 %3555
      %3557 = vrot.lane.b32.xlu0 %v2522, 8
      %v3558 = vpop.permute.xlu0 %3557
      %3559 = vrot.lane.b32.xlu0 %v2523, 8
      %v3560 = vpop.permute.xlu0 %3559
      %3561 = vrot.lane.b32.xlu0 %v2524, 8
      %v3562 = vpop.permute.xlu0 %3561
      %3563 = vrot.lane.b32.xlu0 %v2525, 8
      %v3564 = vpop.permute.xlu0 %3563
      %3565 = vrot.lane.b32.xlu0 %v2526, 8
      %v3566 = vpop.permute.xlu0 %3565
      %3567 = vrot.lane.b32.xlu0 %v2527, 8
      %v3568 = vpop.permute.xlu0 %3567
      %3569 = vrot.lane.b32.xlu0 %v2528, 8
      %v3570 = vpop.permute.xlu0 %3569
      %3571 = vrot.lane.b32.xlu0 %v2529, 8
      %v3572 = vpop.permute.xlu0 %3571
      %3573 = vrot.lane.b32.xlu0 %v2530, 8
      %v3574 = vpop.permute.xlu0 %3573
      %3575 = vrot.lane.b32.xlu0 %v2531, 8
      %v3576 = vpop.permute.xlu0 %3575
      %3577 = vrot.lane.b32.xlu0 %v2532, 8
      %v3578 = vpop.permute.xlu0 %3577
      %3579 = vrot.lane.b32.xlu0 %v2533, 8
      %v3580 = vpop.permute.xlu0 %3579
      %3581 = vrot.lane.b32.xlu0 %v2534, 8
      %v3582 = vpop.permute.xlu0 %3581
      %3583 = vrot.lane.b32.xlu0 %v2535, 8
      %v3584 = vpop.permute.xlu0 %3583
      %3585 = vrot.lane.b32.xlu0 %v2536, 8
      %v3586 = vpop.permute.xlu0 %3585
      %3587 = vrot.lane.b32.xlu0 %v2537, 8
      %v3588 = vpop.permute.xlu0 %3587
      %3589 = vrot.lane.b32.xlu0 %v2538, 8
      %v3590 = vpop.permute.xlu0 %3589
      %3591 = vrot.lane.b32.xlu0 %v2539, 8
      %v3592 = vpop.permute.xlu0 %3591
      %3593 = vrot.lane.b32.xlu0 %v2540, 8
      %v3594 = vpop.permute.xlu0 %3593
      %3595 = vrot.lane.b32.xlu0 %v2541, 8
      %v3596 = vpop.permute.xlu0 %3595
      %3597 = vrot.lane.b32.xlu0 %v2542, 8
      %v3598 = vpop.permute.xlu0 %3597
      %3663 = vrot.lane.b32.xlu0 %v3343, 12
      %v3664 = vpop.permute.xlu0 %3663
      %3665 = vrot.lane.b32.xlu0 %v3344, 12
      %v3666 = vpop.permute.xlu0 %3665
      %3667 = vrot.lane.b32.xlu0 %v3345, 12
      %v3668 = vpop.permute.xlu0 %3667
      %3669 = vrot.lane.b32.xlu0 %v3346, 12
      %v3670 = vpop.permute.xlu0 %3669
      %3671 = vrot.lane.b32.xlu0 %v3347, 12
      %v3672 = vpop.permute.xlu0 %3671
      %3673 = vrot.lane.b32.xlu0 %v3348, 12
      %v3674 = vpop.permute.xlu0 %3673
      %3675 = vrot.lane.b32.xlu0 %v3349, 12
      %v3676 = vpop.permute.xlu0 %3675
      %3677 = vrot.lane.b32.xlu0 %v3350, 12
      %v3678 = vpop.permute.xlu0 %3677
      %3679 = vrot.lane.b32.xlu0 %v3351, 12
      %v3680 = vpop.permute.xlu0 %3679
      %3681 = vrot.lane.b32.xlu0 %v3352, 12
      %v3682 = vpop.permute.xlu0 %3681
      %3683 = vrot.lane.b32.xlu0 %v3353, 12
      %v3684 = vpop.permute.xlu0 %3683
      %3685 = vrot.lane.b32.xlu0 %v3354, 12
      %v3686 = vpop.permute.xlu0 %3685
      %3687 = vrot.lane.b32.xlu0 %v3355, 12
      %v3688 = vpop.permute.xlu0 %3687
      %3689 = vrot.lane.b32.xlu0 %v3356, 12
      %v3690 = vpop.permute.xlu0 %3689
      %3691 = vrot.lane.b32.xlu0 %v3357, 12
      %v3692 = vpop.permute.xlu0 %3691
      %3693 = vrot.lane.b32.xlu0 %v3358, 12
      %v3694 = vpop.permute.xlu0 %3693
      %3695 = vrot.lane.b32.xlu0 %v3359, 12
      %v3696 = vpop.permute.xlu0 %3695
      %3697 = vrot.lane.b32.xlu0 %v3360, 12
      %v3698 = vpop.permute.xlu0 %3697
      %3699 = vrot.lane.b32.xlu0 %v3361, 12
      %v3700 = vpop.permute.xlu0 %3699
      %3701 = vrot.lane.b32.xlu0 %v3362, 12
      %v3702 = vpop.permute.xlu0 %3701
      %3703 = vrot.lane.b32.xlu0 %v3363, 12
      %v3704 = vpop.permute.xlu0 %3703
      %3705 = vrot.lane.b32.xlu0 %v3364, 12
      %v3706 = vpop.permute.xlu0 %3705
      %3707 = vrot.lane.b32.xlu0 %v3365, 12
      %v3708 = vpop.permute.xlu0 %3707
      %3709 = vrot.lane.b32.xlu0 %v3366, 12
      %v3710 = vpop.permute.xlu0 %3709
      %3711 = vrot.lane.b32.xlu0 %v3367, 12
      %v3712 = vpop.permute.xlu0 %3711
      %3713 = vrot.lane.b32.xlu0 %v3368, 12
      %v3714 = vpop.permute.xlu0 %3713
      %3715 = vrot.lane.b32.xlu0 %v3369, 12
      %v3716 = vpop.permute.xlu0 %3715
      %3717 = vrot.lane.b32.xlu0 %v3370, 12
      %v3718 = vpop.permute.xlu0 %3717
      %3719 = vrot.lane.b32.xlu0 %v3371, 12
      %v3720 = vpop.permute.xlu0 %3719
      %3721 = vrot.lane.b32.xlu0 %v3372, 12
      %v3722 = vpop.permute.xlu0 %3721
      %3723 = vrot.lane.b32.xlu0 %v3373, 12
      %v3724 = vpop.permute.xlu0 %3723
      %3725 = vrot.lane.b32.xlu0 %v3374, 12
      %v3726 = vpop.permute.xlu0 %3725
      %v3759 = vsel %vm280, %v823, %v3408
      %v3760 = vsel %vm280, %v824, %v3410
      %v3761 = vsel %vm280, %v825, %v3412
      %v3762 = vsel %vm280, %v826, %v3414
      %v3763 = vsel %vm280, %v827, %v3416
      %v3764 = vsel %vm280, %v828, %v3418
      %v3765 = vsel %vm280, %v829, %v3420
      %v3766 = vsel %vm280, %v830, %v3422
      %v3767 = vsel %vm280, %v831, %v3424
      %v3768 = vsel %vm280, %v832, %v3426
      %v3769 = vsel %vm280, %v833, %v3428
      %v3770 = vsel %vm280, %v834, %v3430
      %v3771 = vsel %vm280, %v835, %v3432
      %v3772 = vsel %vm280, %v836, %v3434
      %v3773 = vsel %vm280, %v837, %v3436
      %v3774 = vsel %vm280, %v838, %v3438
      %v3775 = vsel %vm280, %v839, %v3440
      %v3776 = vsel %vm280, %v840, %v3442
      %v3777 = vsel %vm280, %v841, %v3444
      %v3778 = vsel %vm280, %v842, %v3446
      %v3779 = vsel %vm280, %v843, %v3448
      %v3780 = vsel %vm280, %v844, %v3450
      %v3781 = vsel %vm280, %v845, %v3452
      %v3782 = vsel %vm280, %v846, %v3454
      %v3783 = vsel %vm280, %v847, %v3456
      %v3784 = vsel %vm280, %v848, %v3458
      %v3785 = vsel %vm280, %v849, %v3460
      %v3786 = vsel %vm280, %v850, %v3462
      %v3787 = vsel %vm280, %v851, %v3464
      %v3788 = vsel %vm280, %v852, %v3466
      %v3789 = vsel %vm280, %v853, %v3468
      %v3790 = vsel %vm280, %v854, %v3470
      %vm3791 = vcmask 64512
      %v3792 = vsel %vm3791, %v3759, %v3536
      %v3793 = vsel %vm3791, %v3760, %v3538
      %v3794 = vsel %vm3791, %v3761, %v3540
      %v3795 = vsel %vm3791, %v3762, %v3542
      %v3796 = vsel %vm3791, %v3763, %v3544
      %v3797 = vsel %vm3791, %v3764, %v3546
      %v3798 = vsel %vm3791, %v3765, %v3548
      %v3799 = vsel %vm3791, %v3766, %v3550
      %v3800 = vsel %vm3791, %v3767, %v3552
      %v3801 = vsel %vm3791, %v3768, %v3554
      %v3802 = vsel %vm3791, %v3769, %v3556
      %v3803 = vsel %vm3791, %v3770, %v3558
      %v3804 = vsel %vm3791, %v3771, %v3560
      %v3805 = vsel %vm3791, %v3772, %v3562
      %v3806 = vsel %vm3791, %v3773, %v3564
      %v3807 = vsel %vm3791, %v3774, %v3566
      %v3808 = vsel %vm3791, %v3775, %v3568
      %v3809 = vsel %vm3791, %v3776, %v3570
      %v3810 = vsel %vm3791, %v3777, %v3572
      %v3811 = vsel %vm3791, %v3778, %v3574
      %v3812 = vsel %vm3791, %v3779, %v3576
      %v3813 = vsel %vm3791, %v3780, %v3578
      %v3814 = vsel %vm3791, %v3781, %v3580
      %v3815 = vsel %vm3791, %v3782, %v3582
      %v3816 = vsel %vm3791, %v3783, %v3584
      %v3817 = vsel %vm3791, %v3784, %v3586
      %v3818 = vsel %vm3791, %v3785, %v3588
      %v3819 = vsel %vm3791, %v3786, %v3590
      %v3820 = vsel %vm3791, %v3787, %v3592
      %v3821 = vsel %vm3791, %v3788, %v3594
      %v3822 = vsel %vm3791, %v3789, %v3596
      %v3823 = vsel %vm3791, %v3790, %v3598
      %vm3824 = vcmask 97280
      %v3825 = vsel %vm3824, %v3792, %v3664
      %v3826 = vsel %vm3824, %v3793, %v3666
      %v3827 = vsel %vm3824, %v3794, %v3668
      %v3828 = vsel %vm3824, %v3795, %v3670
      %v3829 = vsel %vm3824, %v3796, %v3672
      %v3830 = vsel %vm3824, %v3797, %v3674
      %v3831 = vsel %vm3824, %v3798, %v3676
      %v3832 = vsel %vm3824, %v3799, %v3678
      %v3833 = vsel %vm3824, %v3800, %v3680
      %v3834 = vsel %vm3824, %v3801, %v3682
      %v3835 = vsel %vm3824, %v3802, %v3684
      %v3836 = vsel %vm3824, %v3803, %v3686
      %v3837 = vsel %vm3824, %v3804, %v3688
      %v3838 = vsel %vm3824, %v3805, %v3690
      %v3839 = vsel %vm3824, %v3806, %v3692
      %v3840 = vsel %vm3824, %v3807, %v3694
      %v3841 = vsel %vm3824, %v3808, %v3696
      %v3842 = vsel %vm3824, %v3809, %v3698
      %v3843 = vsel %vm3824, %v3810, %v3700
      %v3844 = vsel %vm3824, %v3811, %v3702
      %v3845 = vsel %vm3824, %v3812, %v3704
      %v3846 = vsel %vm3824, %v3813, %v3706
      %v3847 = vsel %vm3824, %v3814, %v3708
      %v3848 = vsel %vm3824, %v3815, %v3710
      %v3849 = vsel %vm3824, %v3816, %v3712
      %v3850 = vsel %vm3824, %v3817, %v3714
      %v3851 = vsel %vm3824, %v3818, %v3716
      %v3852 = vsel %vm3824, %v3819, %v3718
      %v3853 = vsel %vm3824, %v3820, %v3720
      %v3854 = vsel %vm3824, %v3821, %v3722
      %v3855 = vsel %vm3824, %v3822, %v3724
      %v3856 = vsel %vm3824, %v3823, %v3726
      %v3857 = vpack.c.bf16 %v3826, %v3825
      %v3858 = vpack.c.bf16 %v3828, %v3827
      %v3859 = vpack.c.bf16 %v3830, %v3829
      %v3860 = vpack.c.bf16 %v3832, %v3831
      %v3861 = vpack.c.bf16 %v3834, %v3833
      %v3862 = vpack.c.bf16 %v3836, %v3835
      %v3863 = vpack.c.bf16 %v3838, %v3837
      %v3864 = vpack.c.bf16 %v3840, %v3839
      %v3865 = vpack.c.bf16 %v3842, %v3841
      %v3866 = vpack.c.bf16 %v3844, %v3843
      %v3867 = vpack.c.bf16 %v3846, %v3845
      %v3868 = vpack.c.bf16 %v3848, %v3847
      %v3869 = vpack.c.bf16 %v3850, %v3849
      %v3870 = vpack.c.bf16 %v3852, %v3851
      %v3871 = vpack.c.bf16 %v3854, %v3853
      %v3872 = vpack.c.bf16 %v3856, %v3855
      %v3873 = vld [vmem:[%s4] sm:$0xf]
      %v3874 = vld [vmem:[%s4 + $0x4] sm:$0xf]
      %v3877 = vunpack.c.l.b16 %v3873
      %v3878 = vunpack.c.l.b16 %v3874
      %v3879 = vpack.c.b16 %v3878, %v3877
      %vm3881 = vcmask 130048
      %v3883 = vsel %vm3881, %v3857, 0
      %v3886 = vsel %vm3881, %v3858, 0
      %v3889 = vsel %vm3881, %v3859, 0
      %v3892 = vsel %vm3881, %v3860, 0
      %v3895 = vsel %vm3881, %v3861, 0
      %v3898 = vsel %vm3881, %v3862, 0
      %v3901 = vsel %vm3881, %v3863, 0
      %v3904 = vsel %vm3881, %v3864, 0
      %v3907 = vsel %vm3881, %v3865, 0
      %v3910 = vsel %vm3881, %v3866, 0
      %v3913 = vsel %vm3881, %v3867, 0
      %v3916 = vsel %vm3881, %v3868, 0
      %v3919 = vsel %vm3881, %v3869, 0
      %v3922 = vsel %vm3881, %v3870, 0
      %v3925 = vsel %vm3881, %v3871, 0
      %v3928 = vsel %vm3881, %v3872, 0
      %3930 = vmatprep.subr.bf16.mxu0 0
      %3931 = vmatpush1.bf16.msra.mxu0 0
      %3932 = vmatprep.subr.bf16.mxu0 0
      %3933 = vmatpush1.bf16.msra.mxu0 0
      %3934 = vmatprep.subr.bf16.mxu0 0
      %3935 = vmatpush1.bf16.msra.mxu0 0
      %3936 = vmatprep.subr.bf16.mxu0 0
      %3937 = vmatpush1.bf16.msra.mxu0 0
      %3938 = vmatprep.subr.bf16.mxu0 0
      %3939 = vmatpush1.bf16.msra.mxu0 0
      %3940 = vmatprep.subr.bf16.mxu0 0
      %3941 = vmatpush1.bf16.msra.mxu0 0
      %3942 = vmatprep.subr.bf16.mxu0 0
      %3943 = vmatpush1.bf16.msra.mxu0 0
      %3944 = vmatprep.subr.bf16.mxu0 0
      %3945 = vmatpush1.bf16.msra.mxu0 %v3879
      %3946 = vmatprep.subr.bf16.mxu0 0
      %3947 = vmatpush2.bf16.msra.mxu0 0
      %3948 = vmatprep.subr.bf16.mxu0 0
      %3949 = vmatpush2.bf16.msra.mxu0 0
      %3950 = vmatprep.subr.bf16.mxu0 0
      %3951 = vmatpush2.bf16.msra.mxu0 0
      %3952 = vmatprep.subr.bf16.mxu0 0
      %3953 = vmatpush2.bf16.msra.mxu0 0
      %3954 = vmatprep.subr.bf16.mxu0 0
      %3955 = vmatpush2.bf16.msra.mxu0 0
      %3956 = vmatprep.subr.bf16.mxu0 0
      %3957 = vmatpush2.bf16.msra.mxu0 0
      %3958 = vmatprep.subr.bf16.mxu0 0
      %3959 = vmatpush2.bf16.msra.mxu0 0
      %3960 = vmatprep.subr.bf16.mxu0 0
      %3961 = vmatpush2.bf16.msra.mxu0 0
      %3962 = vmatprep.mubr.bf16.mxu0 0
      %3963 = vmatmul.mubr.bf16.gmra.mxu0 %v3883
      %v3964 = vpop.f32.mrf.mxu0
      %v3965 = vadd.f32 0.0, %v3964
      %v3966 = vpop.f32.mrf.mxu0
      %v3967 = vpop.f32.mrf.mxu0
      %v3968 = vadd.f32 0.0, %v3967
      %v3969 = vpop.f32.mrf.mxu0
      %3970 = vmatprep.mubr.bf16.mxu0 0
      %3971 = vmatmul.mubr.bf16.gmra.mxu0 %v3886
      %v3972 = vpop.f32.mrf.mxu0
      %v3973 = vadd.f32 0.0, %v3972
      %v3974 = vpop.f32.mrf.mxu0
      %v3975 = vpop.f32.mrf.mxu0
      %v3976 = vadd.f32 0.0, %v3975
      %v3977 = vpop.f32.mrf.mxu0
      %3978 = vmatprep.mubr.bf16.mxu0 0
      %3979 = vmatmul.mubr.bf16.gmra.mxu0 %v3889
      %v3980 = vpop.f32.mrf.mxu0
      %v3981 = vadd.f32 0.0, %v3980
      %v3982 = vpop.f32.mrf.mxu0
      %v3983 = vpop.f32.mrf.mxu0
      %v3984 = vadd.f32 0.0, %v3983
      %v3985 = vpop.f32.mrf.mxu0
      %3986 = vmatprep.mubr.bf16.mxu0 0
      %3987 = vmatmul.mubr.bf16.gmra.mxu0 %v3892
      %v3988 = vpop.f32.mrf.mxu0
      %v3989 = vadd.f32 0.0, %v3988
      %v3990 = vpop.f32.mrf.mxu0
      %v3991 = vpop.f32.mrf.mxu0
      %v3992 = vadd.f32 0.0, %v3991
      %v3993 = vpop.f32.mrf.mxu0
      %3994 = vmatprep.mubr.bf16.mxu0 0
      %3995 = vmatmul.mubr.bf16.gmra.mxu0 %v3895
      %v3996 = vpop.f32.mrf.mxu0
      %v3997 = vadd.f32 0.0, %v3996
      %v3998 = vpop.f32.mrf.mxu0
      %v3999 = vpop.f32.mrf.mxu0
      %v4000 = vadd.f32 0.0, %v3999
      %v4001 = vpop.f32.mrf.mxu0
      %4002 = vmatprep.mubr.bf16.mxu0 0
      %4003 = vmatmul.mubr.bf16.gmra.mxu0 %v3898
      %v4004 = vpop.f32.mrf.mxu0
      %v4005 = vadd.f32 0.0, %v4004
      %v4006 = vpop.f32.mrf.mxu0
      %v4007 = vpop.f32.mrf.mxu0
      %v4008 = vadd.f32 0.0, %v4007
      %v4009 = vpop.f32.mrf.mxu0
      %4010 = vmatprep.mubr.bf16.mxu0 0
      %4011 = vmatmul.mubr.bf16.gmra.mxu0 %v3901
      %v4012 = vpop.f32.mrf.mxu0
      %v4013 = vadd.f32 0.0, %v4012
      %v4014 = vpop.f32.mrf.mxu0
      %v4015 = vpop.f32.mrf.mxu0
      %v4016 = vadd.f32 0.0, %v4015
      %v4017 = vpop.f32.mrf.mxu0
      %4018 = vmatprep.mubr.bf16.mxu0 0
      %4019 = vmatmul.mubr.bf16.gmra.mxu0 %v3904
      %v4020 = vpop.f32.mrf.mxu0
      %v4021 = vadd.f32 0.0, %v4020
      %v4022 = vpop.f32.mrf.mxu0
      %v4023 = vpop.f32.mrf.mxu0
      %v4024 = vadd.f32 0.0, %v4023
      %v4025 = vpop.f32.mrf.mxu0
      %4026 = vmatprep.mubr.bf16.mxu0 0
      %4027 = vmatmul.mubr.bf16.gmra.mxu0 %v3907
      %v4028 = vpop.f32.mrf.mxu0
      %v4029 = vadd.f32 0.0, %v4028
      %v4030 = vpop.f32.mrf.mxu0
      %v4031 = vpop.f32.mrf.mxu0
      %v4032 = vadd.f32 0.0, %v4031
      %v4033 = vpop.f32.mrf.mxu0
      %4034 = vmatprep.mubr.bf16.mxu0 0
      %4035 = vmatmul.mubr.bf16.gmra.mxu0 %v3910
      %v4036 = vpop.f32.mrf.mxu0
      %v4037 = vadd.f32 0.0, %v4036
      %v4038 = vpop.f32.mrf.mxu0
      %v4039 = vpop.f32.mrf.mxu0
      %v4040 = vadd.f32 0.0, %v4039
      %v4041 = vpop.f32.mrf.mxu0
      %4042 = vmatprep.mubr.bf16.mxu0 0
      %4043 = vmatmul.mubr.bf16.gmra.mxu0 %v3913
      %v4044 = vpop.f32.mrf.mxu0
      %v4045 = vadd.f32 0.0, %v4044
      %v4046 = vpop.f32.mrf.mxu0
      %v4047 = vpop.f32.mrf.mxu0
      %v4048 = vadd.f32 0.0, %v4047
      %v4049 = vpop.f32.mrf.mxu0
      %4050 = vmatprep.mubr.bf16.mxu0 0
      %4051 = vmatmul.mubr.bf16.gmra.mxu0 %v3916
      %v4052 = vpop.f32.mrf.mxu0
      %v4053 = vadd.f32 0.0, %v4052
      %v4054 = vpop.f32.mrf.mxu0
      %v4055 = vpop.f32.mrf.mxu0
      %v4056 = vadd.f32 0.0, %v4055
      %v4057 = vpop.f32.mrf.mxu0
      %4058 = vmatprep.mubr.bf16.mxu0 0
      %4059 = vmatmul.mubr.bf16.gmra.mxu0 %v3919
      %v4060 = vpop.f32.mrf.mxu0
      %v4061 = vadd.f32 0.0, %v4060
      %v4062 = vpop.f32.mrf.mxu0
      %v4063 = vpop.f32.mrf.mxu0
      %v4064 = vadd.f32 0.0, %v4063
      %v4065 = vpop.f32.mrf.mxu0
      %4066 = vmatprep.mubr.bf16.mxu0 0
      %4067 = vmatmul.mubr.bf16.gmra.mxu0 %v3922
      %v4068 = vpop.f32.mrf.mxu0
      %v4069 = vadd.f32 0.0, %v4068
      %v4070 = vpop.f32.mrf.mxu0
      %v4071 = vpop.f32.mrf.mxu0
      %v4072 = vadd.f32 0.0, %v4071
      %v4073 = vpop.f32.mrf.mxu0
      %4074 = vmatprep.mubr.bf16.mxu0 0
      %4075 = vmatmul.mubr.bf16.gmra.mxu0 %v3925
      %v4076 = vpop.f32.mrf.mxu0
      %v4077 = vadd.f32 0.0, %v4076
      %v4078 = vpop.f32.mrf.mxu0
      %v4079 = vpop.f32.mrf.mxu0
      %v4080 = vadd.f32 0.0, %v4079
      %v4081 = vpop.f32.mrf.mxu0
      %4082 = vmatprep.mubr.bf16.mxu0 0
      %4083 = vmatmul.mubr.bf16.gmra.mxu0 %v3928
      %v4084 = vpop.f32.mrf.mxu0
      %v4085 = vadd.f32 0.0, %v4084
      %v4086 = vpop.f32.mrf.mxu0
      %v4087 = vpop.f32.mrf.mxu0
      %v4088 = vadd.f32 0.0, %v4087
      %v4089 = vpop.f32.mrf.mxu0
      %4090 = vdwg.mxu0
      %v4091 = vld [vmem:[%s5] sm:$0x1]
      %v4093 = vlaneseq
      %v4094 = vshrl.u32 %v4093, 7
      %v4095 = vsub.s32 0, %v4094
      %v4096 = vrot.slane %v4091, %v4095
      %v4098 = vmul.f32 %v3965, %v4096
      %v4099 = vmul.f32 %v3968, %v4096
      %v4100 = vmul.f32 %v3973, %v4096
      %v4101 = vmul.f32 %v3976, %v4096
      %v4102 = vmul.f32 %v3981, %v4096
      %v4103 = vmul.f32 %v3984, %v4096
      %v4104 = vmul.f32 %v3989, %v4096
      %v4105 = vmul.f32 %v3992, %v4096
      %v4106 = vmul.f32 %v3997, %v4096
      %v4107 = vmul.f32 %v4000, %v4096
      %v4108 = vmul.f32 %v4005, %v4096
      %v4109 = vmul.f32 %v4008, %v4096
      %v4110 = vmul.f32 %v4013, %v4096
      %v4111 = vmul.f32 %v4016, %v4096
      %v4112 = vmul.f32 %v4021, %v4096
      %v4113 = vmul.f32 %v4024, %v4096
      %v4114 = vmul.f32 %v4029, %v4096
      %v4115 = vmul.f32 %v4032, %v4096
      %v4116 = vmul.f32 %v4037, %v4096
      %v4117 = vmul.f32 %v4040, %v4096
      %v4118 = vmul.f32 %v4045, %v4096
      %v4119 = vmul.f32 %v4048, %v4096
      %v4120 = vmul.f32 %v4053, %v4096
      %v4121 = vmul.f32 %v4056, %v4096
      %v4122 = vmul.f32 %v4061, %v4096
      %v4123 = vmul.f32 %v4064, %v4096
      %v4124 = vmul.f32 %v4069, %v4096
      %v4125 = vmul.f32 %v4072, %v4096
      %v4126 = vmul.f32 %v4077, %v4096
      %v4127 = vmul.f32 %v4080, %v4096
      %v4128 = vmul.f32 %v4085, %v4096
      %v4129 = vmul.f32 %v4088, %v4096
      %v4130 = vld [vmem:[%s6] sm:$0x1]
      %v4132 = vlaneseq
      %v4133 = vshrl.u32 %v4132, 7
      %v4134 = vsub.s32 0, %v4133
      %v4135 = vrot.slane %v4130, %v4134
      %v4137 = vadd.f32 %v4098, %v4135
      %v4138 = vadd.f32 %v4099, %v4135
      %v4139 = vadd.f32 %v4100, %v4135
      %v4140 = vadd.f32 %v4101, %v4135
      %v4141 = vadd.f32 %v4102, %v4135
      %v4142 = vadd.f32 %v4103, %v4135
      %v4143 = vadd.f32 %v4104, %v4135
      %v4144 = vadd.f32 %v4105, %v4135
      %v4145 = vadd.f32 %v4106, %v4135
      %v4146 = vadd.f32 %v4107, %v4135
      %v4147 = vadd.f32 %v4108, %v4135
      %v4148 = vadd.f32 %v4109, %v4135
      %v4149 = vadd.f32 %v4110, %v4135
      %v4150 = vadd.f32 %v4111, %v4135
      %v4151 = vadd.f32 %v4112, %v4135
      %v4152 = vadd.f32 %v4113, %v4135
      %v4153 = vadd.f32 %v4114, %v4135
      %v4154 = vadd.f32 %v4115, %v4135
      %v4155 = vadd.f32 %v4116, %v4135
      %v4156 = vadd.f32 %v4117, %v4135
      %v4157 = vadd.f32 %v4118, %v4135
      %v4158 = vadd.f32 %v4119, %v4135
      %v4159 = vadd.f32 %v4120, %v4135
      %v4160 = vadd.f32 %v4121, %v4135
      %v4161 = vadd.f32 %v4122, %v4135
      %v4162 = vadd.f32 %v4123, %v4135
      %v4163 = vadd.f32 %v4124, %v4135
      %v4164 = vadd.f32 %v4125, %v4135
      %v4165 = vadd.f32 %v4126, %v4135
      %v4166 = vadd.f32 %v4127, %v4135
      %v4167 = vadd.f32 %v4128, %v4135
      %v4168 = vadd.f32 %v4129, %v4135
      %v4169 = vxor.u32 %v4137, 2147483648
      %v4170 = vxor.u32 %v4138, 2147483648
      %v4171 = vxor.u32 %v4139, 2147483648
      %v4172 = vxor.u32 %v4140, 2147483648
      %v4173 = vxor.u32 %v4141, 2147483648
      %v4174 = vxor.u32 %v4142, 2147483648
      %v4175 = vxor.u32 %v4143, 2147483648
      %v4176 = vxor.u32 %v4144, 2147483648
      %v4177 = vxor.u32 %v4145, 2147483648
      %v4178 = vxor.u32 %v4146, 2147483648
      %v4179 = vxor.u32 %v4147, 2147483648
      %v4180 = vxor.u32 %v4148, 2147483648
      %v4181 = vxor.u32 %v4149, 2147483648
      %v4182 = vxor.u32 %v4150, 2147483648
      %v4183 = vxor.u32 %v4151, 2147483648
      %v4184 = vxor.u32 %v4152, 2147483648
      %v4185 = vxor.u32 %v4153, 2147483648
      %v4186 = vxor.u32 %v4154, 2147483648
      %v4187 = vxor.u32 %v4155, 2147483648
      %v4188 = vxor.u32 %v4156, 2147483648
      %v4189 = vxor.u32 %v4157, 2147483648
      %v4190 = vxor.u32 %v4158, 2147483648
      %v4191 = vxor.u32 %v4159, 2147483648
      %v4192 = vxor.u32 %v4160, 2147483648
      %v4193 = vxor.u32 %v4161, 2147483648
      %v4194 = vxor.u32 %v4162, 2147483648
      %v4195 = vxor.u32 %v4163, 2147483648
      %v4196 = vxor.u32 %v4164, 2147483648
      %v4197 = vxor.u32 %v4165, 2147483648
      %v4198 = vxor.u32 %v4166, 2147483648
      %v4199 = vxor.u32 %v4167, 2147483648
      %v4200 = vxor.u32 %v4168, 2147483648
      %v4201 = vmul.f32 %v4169, 1.442695
      %v4202 = vpow.pop %v4201
      %v4203 = vmul.f32 %v4170, 1.442695
      %v4204 = vpow.pop %v4203
      %v4205 = vmul.f32 %v4171, 1.442695
      %v4206 = vpow.pop %v4205
      %v4207 = vmul.f32 %v4172, 1.442695
      %v4208 = vpow.pop %v4207
      %v4209 = vmul.f32 %v4173, 1.442695
      %v4210 = vpow.pop %v4209
      %v4211 = vmul.f32 %v4174, 1.442695
      %v4212 = vpow.pop %v4211
      %v4213 = vmul.f32 %v4175, 1.442695
      %v4214 = vpow.pop %v4213
      %v4215 = vmul.f32 %v4176, 1.442695
      %v4216 = vpow.pop %v4215
      %v4217 = vmul.f32 %v4177, 1.442695
      %v4218 = vpow.pop %v4217
      %v4219 = vmul.f32 %v4178, 1.442695
      %v4220 = vpow.pop %v4219
      %v4221 = vmul.f32 %v4179, 1.442695
      %v4222 = vpow.pop %v4221
      %v4223 = vmul.f32 %v4180, 1.442695
      %v4224 = vpow.pop %v4223
      %v4225 = vmul.f32 %v4181, 1.442695
      %v4226 = vpow.pop %v4225
      %v4227 = vmul.f32 %v4182, 1.442695
      %v4228 = vpow.pop %v4227
      %v4229 = vmul.f32 %v4183, 1.442695
      %v4230 = vpow.pop %v4229
      %v4231 = vmul.f32 %v4184, 1.442695
      %v4232 = vpow.pop %v4231
      %v4233 = vmul.f32 %v4185, 1.442695
      %v4234 = vpow.pop %v4233
      %v4235 = vmul.f32 %v4186, 1.442695
      %v4236 = vpow.pop %v4235
      %v4237 = vmul.f32 %v4187, 1.442695
      %v4238 = vpow.pop %v4237
      %v4239 = vmul.f32 %v4188, 1.442695
      %v4240 = vpow.pop %v4239
      %v4241 = vmul.f32 %v4189, 1.442695
      %v4242 = vpow.pop %v4241
      %v4243 = vmul.f32 %v4190, 1.442695
      %v4244 = vpow.pop %v4243
      %v4245 = vmul.f32 %v4191, 1.442695
      %v4246 = vpow.pop %v4245
      %v4247 = vmul.f32 %v4192, 1.442695
      %v4248 = vpow.pop %v4247
      %v4249 = vmul.f32 %v4193, 1.442695
      %v4250 = vpow.pop %v4249
      %v4251 = vmul.f32 %v4194, 1.442695
      %v4252 = vpow.pop %v4251
      %v4253 = vmul.f32 %v4195, 1.442695
      %v4254 = vpow.pop %v4253
      %v4255 = vmul.f32 %v4196, 1.442695
      %v4256 = vpow.pop %v4255
      %v4257 = vmul.f32 %v4197, 1.442695
      %v4258 = vpow.pop %v4257
      %v4259 = vmul.f32 %v4198, 1.442695
      %v4260 = vpow.pop %v4259
      %v4261 = vmul.f32 %v4199, 1.442695
      %v4262 = vpow.pop %v4261
      %v4263 = vmul.f32 %v4200, 1.442695
      %v4264 = vpow.pop %v4263
      %v4265 = vadd.f32 %v4202, 1.0
      %v4266 = vadd.f32 %v4204, 1.0
      %v4267 = vadd.f32 %v4206, 1.0
      %v4268 = vadd.f32 %v4208, 1.0
      %v4269 = vadd.f32 %v4210, 1.0
      %v4270 = vadd.f32 %v4212, 1.0
      %v4271 = vadd.f32 %v4214, 1.0
      %v4272 = vadd.f32 %v4216, 1.0
      %v4273 = vadd.f32 %v4218, 1.0
      %v4274 = vadd.f32 %v4220, 1.0
      %v4275 = vadd.f32 %v4222, 1.0
      %v4276 = vadd.f32 %v4224, 1.0
      %v4277 = vadd.f32 %v4226, 1.0
      %v4278 = vadd.f32 %v4228, 1.0
      %v4279 = vadd.f32 %v4230, 1.0
      %v4280 = vadd.f32 %v4232, 1.0
      %v4281 = vadd.f32 %v4234, 1.0
      %v4282 = vadd.f32 %v4236, 1.0
      %v4283 = vadd.f32 %v4238, 1.0
      %v4284 = vadd.f32 %v4240, 1.0
      %v4285 = vadd.f32 %v4242, 1.0
      %v4286 = vadd.f32 %v4244, 1.0
      %v4287 = vadd.f32 %v4246, 1.0
      %v4288 = vadd.f32 %v4248, 1.0
      %v4289 = vadd.f32 %v4250, 1.0
      %v4290 = vadd.f32 %v4252, 1.0
      %v4291 = vadd.f32 %v4254, 1.0
      %v4292 = vadd.f32 %v4256, 1.0
      %v4293 = vadd.f32 %v4258, 1.0
      %v4294 = vadd.f32 %v4260, 1.0
      %v4295 = vadd.f32 %v4262, 1.0
      %v4296 = vadd.f32 %v4264, 1.0
      %v4297 = vrcp.pop %v4265
      %v4298 = vmul.f32 1.0, %v4297
      %v4299 = vrcp.pop %v4266
      %v4300 = vmul.f32 1.0, %v4299
      %v4301 = vrcp.pop %v4267
      %v4302 = vmul.f32 1.0, %v4301
      %v4303 = vrcp.pop %v4268
      %v4304 = vmul.f32 1.0, %v4303
      %v4305 = vrcp.pop %v4269
      %v4306 = vmul.f32 1.0, %v4305
      %v4307 = vrcp.pop %v4270
      %v4308 = vmul.f32 1.0, %v4307
      %v4309 = vrcp.pop %v4271
      %v4310 = vmul.f32 1.0, %v4309
      %v4311 = vrcp.pop %v4272
      %v4312 = vmul.f32 1.0, %v4311
      %v4313 = vrcp.pop %v4273
      %v4314 = vmul.f32 1.0, %v4313
      %v4315 = vrcp.pop %v4274
      %v4316 = vmul.f32 1.0, %v4315
      %v4317 = vrcp.pop %v4275
      %v4318 = vmul.f32 1.0, %v4317
      %v4319 = vrcp.pop %v4276
      %v4320 = vmul.f32 1.0, %v4319
      %v4321 = vrcp.pop %v4277
      %v4322 = vmul.f32 1.0, %v4321
      %v4323 = vrcp.pop %v4278
      %v4324 = vmul.f32 1.0, %v4323
      %v4325 = vrcp.pop %v4279
      %v4326 = vmul.f32 1.0, %v4325
      %v4327 = vrcp.pop %v4280
      %v4328 = vmul.f32 1.0, %v4327
      %v4329 = vrcp.pop %v4281
      %v4330 = vmul.f32 1.0, %v4329
      %v4331 = vrcp.pop %v4282
      %v4332 = vmul.f32 1.0, %v4331
      %v4333 = vrcp.pop %v4283
      %v4334 = vmul.f32 1.0, %v4333
      %v4335 = vrcp.pop %v4284
      %v4336 = vmul.f32 1.0, %v4335
      %v4337 = vrcp.pop %v4285
      %v4338 = vmul.f32 1.0, %v4337
      %v4339 = vrcp.pop %v4286
      %v4340 = vmul.f32 1.0, %v4339
      %v4341 = vrcp.pop %v4287
      %v4342 = vmul.f32 1.0, %v4341
      %v4343 = vrcp.pop %v4288
      %v4344 = vmul.f32 1.0, %v4343
      %v4345 = vrcp.pop %v4289
      %v4346 = vmul.f32 1.0, %v4345
      %v4347 = vrcp.pop %v4290
      %v4348 = vmul.f32 1.0, %v4347
      %v4349 = vrcp.pop %v4291
      %v4350 = vmul.f32 1.0, %v4349
      %v4351 = vrcp.pop %v4292
      %v4352 = vmul.f32 1.0, %v4351
      %v4353 = vrcp.pop %v4293
      %v4354 = vmul.f32 1.0, %v4353
      %v4355 = vrcp.pop %v4294
      %v4356 = vmul.f32 1.0, %v4355
      %v4357 = vrcp.pop %v4295
      %v4358 = vmul.f32 1.0, %v4357
      %v4359 = vrcp.pop %v4296
      %v4360 = vmul.f32 1.0, %v4359
      %v4361 = vmul.f32 %v4137, %v4298
      %v4362 = vmul.f32 %v4138, %v4300
      %v4363 = vmul.f32 %v4139, %v4302
      %v4364 = vmul.f32 %v4140, %v4304
      %v4365 = vmul.f32 %v4141, %v4306
      %v4366 = vmul.f32 %v4142, %v4308
      %v4367 = vmul.f32 %v4143, %v4310
      %v4368 = vmul.f32 %v4144, %v4312
      %v4369 = vmul.f32 %v4145, %v4314
      %v4370 = vmul.f32 %v4146, %v4316
      %v4371 = vmul.f32 %v4147, %v4318
      %v4372 = vmul.f32 %v4148, %v4320
      %v4373 = vmul.f32 %v4149, %v4322
      %v4374 = vmul.f32 %v4150, %v4324
      %v4375 = vmul.f32 %v4151, %v4326
      %v4376 = vmul.f32 %v4152, %v4328
      %v4377 = vmul.f32 %v4153, %v4330
      %v4378 = vmul.f32 %v4154, %v4332
      %v4379 = vmul.f32 %v4155, %v4334
      %v4380 = vmul.f32 %v4156, %v4336
      %v4381 = vmul.f32 %v4157, %v4338
      %v4382 = vmul.f32 %v4158, %v4340
      %v4383 = vmul.f32 %v4159, %v4342
      %v4384 = vmul.f32 %v4160, %v4344
      %v4385 = vmul.f32 %v4161, %v4346
      %v4386 = vmul.f32 %v4162, %v4348
      %v4387 = vmul.f32 %v4163, %v4350
      %v4388 = vmul.f32 %v4164, %v4352
      %v4389 = vmul.f32 %v4165, %v4354
      %v4390 = vmul.f32 %v4166, %v4356
      %v4391 = vmul.f32 %v4167, %v4358
      %v4392 = vmul.f32 %v4168, %v4360
      %4393 = vxpose.xlu0.b32.start [1/16] %v4361, 128
      %4394 = vxpose.xlu0.b32.cont [2/16] %v4362, 128
      %4395 = vxpose.xlu0.b32.cont [3/16] %v4363, 128
      %4396 = vxpose.xlu0.b32.cont [4/16] %v4364, 128
      %4397 = vxpose.xlu0.b32.cont [5/16] %v4365, 128
      %4398 = vxpose.xlu0.b32.cont [6/16] %v4366, 128
      %4399 = vxpose.xlu0.b32.cont [7/16] %v4367, 128
      %4400 = vxpose.xlu0.b32.cont [8/16] %v4368, 128
      %4401 = vxpose.xlu0.b32.cont [9/16] %v4369, 128
      %4402 = vxpose.xlu0.b32.cont [10/16] %v4370, 128
      %4403 = vxpose.xlu0.b32.cont [11/16] %v4371, 128
      %4404 = vxpose.xlu0.b32.cont [12/16] %v4372, 128
      %4405 = vxpose.xlu0.b32.cont [13/16] %v4373, 128
      %4406 = vxpose.xlu0.b32.cont [14/16] %v4374, 128
      %4407 = vxpose.xlu0.b32.cont [15/16] %v4375, 128
      %4408 = vxpose.xlu0.b32.end [16/16] %v4376, 128
      %v4409 = vpop.trf.xlu0
      %v4410 = vpop.trf.xlu0
      %v4411 = vpop.trf.xlu0
      %v4412 = vpop.trf.xlu0
      %v4413 = vpop.trf.xlu0
      %v4414 = vpop.trf.xlu0
      %v4415 = vpop.trf.xlu0
      %v4416 = vpop.trf.xlu0
      %v4417 = vpop.trf.xlu0
      %v4418 = vpop.trf.xlu0
      %v4419 = vpop.trf.xlu0
      %v4420 = vpop.trf.xlu0
      %v4421 = vpop.trf.xlu0
      %v4422 = vpop.trf.xlu0
      %v4423 = vpop.trf.xlu0
      %v4424 = vpop.trf.xlu0
      %4425 = vxpose.xlu0.b32.start [1/16] %v4377, 128
      %4426 = vxpose.xlu0.b32.cont [2/16] %v4378, 128
      %4427 = vxpose.xlu0.b32.cont [3/16] %v4379, 128
      %4428 = vxpose.xlu0.b32.cont [4/16] %v4380, 128
      %4429 = vxpose.xlu0.b32.cont [5/16] %v4381, 128
      %4430 = vxpose.xlu0.b32.cont [6/16] %v4382, 128
      %4431 = vxpose.xlu0.b32.cont [7/16] %v4383, 128
      %4432 = vxpose.xlu0.b32.cont [8/16] %v4384, 128
      %4433 = vxpose.xlu0.b32.cont [9/16] %v4385, 128
      %4434 = vxpose.xlu0.b32.cont [10/16] %v4386, 128
      %4435 = vxpose.xlu0.b32.cont [11/16] %v4387, 128
      %4436 = vxpose.xlu0.b32.cont [12/16] %v4388, 128
      %4437 = vxpose.xlu0.b32.cont [13/16] %v4389, 128
      %4438 = vxpose.xlu0.b32.cont [14/16] %v4390, 128
      %4439 = vxpose.xlu0.b32.cont [15/16] %v4391, 128
      %4440 = vxpose.xlu0.b32.end [16/16] %v4392, 128
      %v4441 = vpop.trf.xlu0
      %v4442 = vpop.trf.xlu0
      %v4443 = vpop.trf.xlu0
      %v4444 = vpop.trf.xlu0
      %v4445 = vpop.trf.xlu0
      %v4446 = vpop.trf.xlu0
      %v4447 = vpop.trf.xlu0
      %v4448 = vpop.trf.xlu0
      %v4449 = vpop.trf.xlu0
      %v4450 = vpop.trf.xlu0
      %v4451 = vpop.trf.xlu0
      %v4452 = vpop.trf.xlu0
      %v4453 = vpop.trf.xlu0
      %v4454 = vpop.trf.xlu0
      %v4455 = vpop.trf.xlu0
      %v4456 = vpop.trf.xlu0
      %4457 = vst [vmem:[%s278] sm:$0xff] %v4409
      %4458 = vst [vmem:[%s278 + $0x8] sm:$0xff] %v4441
      %p4459 = scmp.lt.s32.totalorder %s18, 1
      %s4460 = scalar_select %p4459, %s18, 1
      %s4461 = smul.addr %s4460, 2
      %s4462 = smul.addr %s4461, 8
      %s4463 = scalar_lea.vmem %s7, %s4462
      // Predicated region
      $region49: #{sppelan_forward.1} parent=47 // pred_check
        %p4464 = pneg %p188
      $region50: #{sppelan_forward.1} parent=47 // pred_check_branch
        %4466 = sbr.rel (%p4464) target = $region52
      $region51: #{sppelan_forward.1} parent=47 // pred_region
        _
      $region52: #{sppelan_forward.1} parent=47 // pred_fallthru
        _
    $region48: #{sppelan_forward.1} parent=5 // pred_fallthru
      _
    %p4467 = scmp.le.s32.totalorder 2, %s13
    // Predicated region
    $region53: #{sppelan_forward.1} parent=5 // pred_check
      %p4468 = pneg %p4467
    $region54: #{sppelan_forward.1} parent=5 // pred_check_branch
      %4470 = sbr.rel (%p4468) target = $region56
    $region55: #{sppelan_forward.1} parent=5 // pred_region
      %s4471 = ssub.s32 %s13, 2
      // Predicated region
      $region57: #{sppelan_forward.1} parent=55 // pred_check
        %p4472 = pneg %p194
      $region58: #{sppelan_forward.1} parent=55 // pred_check_branch
        %4474 = sbr.rel (%p4472) target = $region60
      $region59: #{sppelan_forward.1} parent=55 // pred_region
        %p4475 = scmp.lt.s32.totalorder %s19, 1
        %s4476 = scalar_select %p4475, %s19, 1
        %s4477 = smul.addr %s4476, 2
        %s4478 = smul.addr %s4477, 8
        %s4479 = scalar_lea.vmem %s7, %s4478
      $region60: #{sppelan_forward.1} parent=55 // pred_fallthru
        _
    $region56: #{sppelan_forward.1} parent=5 // pred_fallthru
      _
  $region6: #{sppelan_forward.1} parent=0 // loop_footer
    %s17 = sadd.s32 1, %s13
  $region7: #{sppelan_forward.1} parent=0 // loop_footer_branch
    %12 = sbr.rel target = $region3
  $region8: #{sppelan_forward.1} parent=0 // loop_exit
    _

</llo_original>
